<compile_context>
chip_gen: v7x
topology: tpu7x:2x2x1
jax: 0.10.0
libtpu: 0.0.40
codegen_flags: <defaults>
</compile_context>

<pallas_src>
import functools

import jax
import jax.numpy as jnp
from jax import lax
from jax.experimental import pallas as pl
from jax.experimental.pallas import tpu as pltpu


# ----------------------------------------------------------------------------
# helpers
# ----------------------------------------------------------------------------
def _row_tile(m, target=256, min_steps=4):
    """Largest multiple-of-8 divisor of m that is <= target, preferring at
    least `min_steps` grid steps (per-core pipelining on v7x megacore)."""
    if m <= 8:
        return m
    cap = min(target, m)
    if m >= 8 * min_steps and m // cap < min_steps:
        cap = m // min_steps
    cap -= cap % 8
    while cap >= 8:
        if m % cap == 0:
            return cap
        cap -= 8
    return m  # no multiple-of-8 divisor: use the full extent


# ----------------------------------------------------------------------------
# Fused encoder attention block: LN1 -> QKV proj -> MHA -> out proj -> +res
# ----------------------------------------------------------------------------
def _attn_block_kernel(x_ref, g_ref, b_ref, wqkv_ref, wo_ref, o_ref, ctx_scr,
                       *, num_heads, d_model, scale):
    x = x_ref[0]                                    # [T, C] f32 (residual)
    mean = jnp.mean(x, axis=-1, keepdims=True)
    var = jnp.mean(jnp.square(x - mean), axis=-1, keepdims=True)
    y = ((x - mean) * lax.rsqrt(var + 1e-5) * g_ref[...] + b_ref[...]
         ).astype(jnp.bfloat16)
    # one large-K MXU matmul for the fused QKV projection (bias-free in SRN)
    qkv = jnp.dot(y, wqkv_ref[...],
                  preferred_element_type=jnp.float32).astype(jnp.bfloat16)

    d_key = d_model // num_heads
    for h in range(num_heads):                      # small static head count
        q = qkv[:, h * d_key:(h + 1) * d_key]
        k = qkv[:, d_model + h * d_key:d_model + (h + 1) * d_key]
        v = qkv[:, 2 * d_model + h * d_key:2 * d_model + (h + 1) * d_key]
        # contract last dims directly (no explicit transpose)
        s = lax.dot_general(q, k, (((1,), (1,)), ((), ())),
                            preferred_element_type=jnp.float32) * scale
        s = s - jnp.max(s, axis=-1, keepdims=True)
        p = jnp.exp(s)
        p = p / jnp.sum(p, axis=-1, keepdims=True)
        # write this head's context straight into VMEM scratch (no concat,
        # per-head values are not kept live across iterations)
        ctx_scr[:, pl.ds(h * d_key, d_key)] = jnp.dot(
            p.astype(jnp.bfloat16), v, preferred_element_type=jnp.float32)

    out = jnp.dot(ctx_scr[...].astype(jnp.bfloat16), wo_ref[...],
                  preferred_element_type=jnp.float32)
    o_ref[0] = x + out                              # fused residual add


def attention_block(x, gamma, beta, wqkv_bf16, wo_bf16, *, num_heads):
    """x:[B,T,C] f32; wqkv:[C,3C] bf16; wo:[C,C] bf16 -> x + MHA(LN(x))."""
    B, T, C = x.shape
    kern = functools.partial(_attn_block_kernel, num_heads=num_heads,
                             d_model=C, scale=float(C) ** -0.5)
    return pl.pallas_call(
        kern,
        out_shape=jax.ShapeDtypeStruct((B, T, C), jnp.float32),
        grid=(B,),
        in_specs=[
            pl.BlockSpec((1, T, C), lambda b: (b, 0, 0)),
            pl.BlockSpec((1, C), lambda b: (0, 0)),
            pl.BlockSpec((1, C), lambda b: (0, 0)),
            pl.BlockSpec((C, 3 * C), lambda b: (0, 0)),
            pl.BlockSpec((C, C), lambda b: (0, 0)),
        ],
        out_specs=pl.BlockSpec((1, T, C), lambda b: (b, 0, 0)),
        scratch_shapes=[pltpu.VMEM((T, C), jnp.float32)],
        compiler_params=pltpu.CompilerParams(dimension_semantics=("parallel",)),
    )(x, gamma, beta, wqkv_bf16, wo_bf16)


# ----------------------------------------------------------------------------
# Fused FFN block: LN2 -> w1 -> relu -> w2 -> +res
# ----------------------------------------------------------------------------
def _ffn_block_kernel(x_ref, g_ref, b_ref, w1_ref, b1_ref, w2_ref, b2_ref,
                      o_ref):
    x = x_ref[...]
    mean = jnp.mean(x, axis=-1, keepdims=True)
    var = jnp.mean(jnp.square(x - mean), axis=-1, keepdims=True)
    y = (x - mean) * lax.rsqrt(var + 1e-5) * g_ref[...] + b_ref[...]
    h = jnp.dot(y.astype(jnp.bfloat16), w1_ref[...],
                preferred_element_type=jnp.float32)
    h = jnp.maximum(h + b1_ref[...], 0.0)
    out = jnp.dot(h.astype(jnp.bfloat16), w2_ref[...],
                  preferred_element_type=jnp.float32)
    o_ref[...] = x + out + b2_ref[...]


def ffn_block(x2d, gamma, beta, w1_bf16, b1, w2_bf16, b2):
    M, C = x2d.shape
    D = w1_bf16.shape[1]
    rt = _row_tile(M)
    return pl.pallas_call(
        _ffn_block_kernel,
        out_shape=jax.ShapeDtypeStruct((M, C), jnp.float32),
        grid=(M // rt,),
        in_specs=[
            pl.BlockSpec((rt, C), lambda i: (i, 0)),
            pl.BlockSpec((1, C), lambda i: (0, 0)),
            pl.BlockSpec((1, C), lambda i: (0, 0)),
            pl.BlockSpec((C, D), lambda i: (0, 0)),
            pl.BlockSpec((1, D), lambda i: (0, 0)),
            pl.BlockSpec((D, C), lambda i: (0, 0)),
            pl.BlockSpec((1, C), lambda i: (0, 0)),
        ],
        out_specs=pl.BlockSpec((rt, C), lambda i: (i, 0)),
        compiler_params=pltpu.CompilerParams(dimension_semantics=("parallel",)),
    )(x2d, gamma, beta, w1_bf16, b1, w2_bf16, b2)


# ----------------------------------------------------------------------------
# PVAM head: fused final-LN + fc0 + tanh attention + online softmax over T
# ----------------------------------------------------------------------------
def _pvam_kernel(x_ref, g_ref, b_ref, w0_ref, b0_ref, pos_ref, w1_ref,
                 o_ref, m_scr, l_scr, acc_scr, s_scr, *, max_len):
    t = pl.program_id(1)

    @pl.when(t == 0)
    def _():
        m_scr[...] = jnp.full_like(m_scr, -jnp.inf)
        l_scr[...] = jnp.zeros_like(l_scr)
        acc_scr[...] = jnp.zeros_like(acc_scr)

    # ---- fused final-LN + fc0 for this T block (wf never hits HBM) ----
    x = x_ref[0]                                     # [tT, C]
    mean = jnp.mean(x, axis=-1, keepdims=True)
    var = jnp.mean(jnp.square(x - mean), axis=-1, keepdims=True)
    y = ((x - mean) * lax.rsqrt(var + 1e-5) * g_ref[...] + b_ref[...]
         ).astype(jnp.bfloat16)
    wf = jnp.dot(y, w0_ref[...],
                 preferred_element_type=jnp.float32) + b0_ref[...]   # [tT, C]

    pos = pos_ref[0]                                 # [M, C]
    w1 = w1_ref[...].astype(jnp.bfloat16)            # [1, C]

    # scores[m, :] = fc1(tanh(pos[m] + wf)).  Loop over m keeps the tanh
    # intermediate at [tT, C] (vs [M, tT, C]) and runs the C-reduction on the
    # MXU.  TODO(synk): on v6e/v7x a bf16 tanh (+bf16 intermediate) would
    # roughly double EUP throughput; kept f32 here for v5e correctness.
    for m in range(max_len):
        ym = jnp.tanh(wf + pos[m:m + 1, :])          # [tT, C] f32
        row = lax.dot_general(w1, ym.astype(jnp.bfloat16),
                              (((1,), (1,)), ((), ())),
                              preferred_element_type=jnp.float32)    # [1, tT]
        s_scr[pl.ds(m, 1), :] = row

    scores = s_scr[...]                              # [M, tT]
    m_prev = m_scr[...]
    m_new = jnp.maximum(m_prev, jnp.max(scores, axis=-1, keepdims=True))
    alpha = jnp.exp(m_prev - m_new)
    p = jnp.exp(scores - m_new)                      # [M, tT]
    l_scr[...] = alpha * l_scr[...] + jnp.sum(p, axis=-1, keepdims=True)
    acc_scr[...] = alpha * acc_scr[...] + jnp.dot(
        p.astype(jnp.bfloat16), wf.astype(jnp.bfloat16),
        preferred_element_type=jnp.float32)
    m_scr[...] = m_new

    @pl.when(t == pl.num_programs(1) - 1)
    def _():
        o_ref[0] = acc_scr[...] / l_scr[...]         # exact divide at finalize


def pvam_attention(x, lnf_g, lnf_b, fc0_w_bf16, fc0_b, pos_features, fc1_w):
    """x:[B,T,C] encoder output (pre final-LN); pos_features:[B,M,C];
    fc0_w:[C,C] bf16; fc0_b:[1,C]; fc1_w:[1,C] -> [B,M,C]."""
    B, T, C = x.shape
    M = pos_features.shape[1]
    tT = _row_tile(T, target=128, min_steps=2)
    kern = functools.partial(_pvam_kernel, max_len=M)
    return pl.pallas_call(
        kern,
        out_shape=jax.ShapeDtypeStruct((B, M, C), jnp.float32),
        grid=(B, T // tT),
        in_specs=[
            pl.BlockSpec((1, tT, C), lambda b, t: (b, t, 0)),
            pl.BlockSpec((1, C), lambda b, t: (0, 0)),
            pl.BlockSpec((1, C), lambda b, t: (0, 0)),
            pl.BlockSpec((C, C), lambda b, t: (0, 0)),
            pl.BlockSpec((1, C), lambda b, t: (0, 0)),
            pl.BlockSpec((1, M, C), lambda b, t: (b, 0, 0)),
            pl.BlockSpec((1, C), lambda b, t: (0, 0)),
        ],
        out_specs=pl.BlockSpec((1, M, C), lambda b, t: (b, 0, 0)),
        scratch_shapes=[
            pltpu.VMEM((M, 1), jnp.float32),    # running max
            pltpu.VMEM((M, 1), jnp.float32),    # running denom
            pltpu.VMEM((M, C), jnp.float32),    # running weighted sum
            pltpu.VMEM((M, tT), jnp.float32),   # per-block score rows
        ],
        compiler_params=pltpu.CompilerParams(
            dimension_semantics=("parallel", "arbitrary")),
    )(x, lnf_g, lnf_b, fc0_w_bf16, fc0_b, pos_features, fc1_w)


# ----------------------------------------------------------------------------
# Parameters (deterministic synthetic init, shapes from PVAM.__init__).
# All bf16 weight casts and the QKV concatenation are done ONCE here.
# ----------------------------------------------------------------------------
def init_params(key, in_channels, hidden_dims, max_text_length, num_heads,
                num_encoder_tus, enc_max_len=256):
    assert in_channels == hidden_dims, "SRN uses in_channels == hidden_dims"
    d = hidden_dims

    def nrm(k, shape):
        return jax.random.normal(k, shape, jnp.float32) * 0.02

    keys = jax.random.split(key, 4 + num_encoder_tus)
    params = {
        "enc_pos_emb": nrm(keys[0], (enc_max_len, d)),   # PrepareEncoder emb
        "emb": nrm(keys[1], (max_text_length, d)),        # PVAM.emb
        "ln_f_g": jnp.ones((1, d), jnp.float32),          # encoder final LN
        "ln_f_b": jnp.zeros((1, d), jnp.float32),
    }
    k2 = jax.random.split(keys[2], 2)
    params["fc0_w"] = nrm(k2[0], (d, d)).astype(jnp.bfloat16)   # PVAM.fc0
    params["fc0_b"] = jnp.zeros((1, d), jnp.float32)
    params["fc1_w"] = nrm(k2[1], (1, d))                        # PVAM.fc1

    layers = []
    for i in range(num_encoder_tus):
        lk = jax.random.split(keys[3 + i], 6)
        wq, wk, wv = nrm(lk[0], (d, d)), nrm(lk[1], (d, d)), nrm(lk[2], (d, d))
        layers.append(dict(
            ln1_g=jnp.ones((1, d), jnp.float32),
            ln1_b=jnp.zeros((1, d), jnp.float32),
            w_qkv=jnp.concatenate([wq, wk, wv], axis=1).astype(jnp.bfloat16),
            wo=nrm(lk[3], (d, d)).astype(jnp.bfloat16),
            ln2_g=jnp.ones((1, d), jnp.float32),
            ln2_b=jnp.zeros((1, d), jnp.float32),
            ffn_w1=nrm(lk[4], (d, d)).astype(jnp.bfloat16),
            ffn_b1=jnp.zeros((1, d), jnp.float32),
            ffn_w2=nrm(lk[5], (d, d)).astype(jnp.bfloat16),
            ffn_b2=jnp.zeros((1, d), jnp.float32),
        ))
    params["layers"] = layers
    return params


# ----------------------------------------------------------------------------
# PVAM forward (glue in JAX, hot paths fused into the Pallas kernels above)
# ----------------------------------------------------------------------------
def pvam_forward(params, inputs, encoder_word_pos, gsrm_word_pos, *,
                 num_heads, num_encoder_tus, max_text_length):
    B, C, H, W = inputs.shape
    T = H * W
    d_model = C

    # NCHW -> [B, T, C]
    conv = inputs.reshape(B, C, T).transpose(0, 2, 1).astype(jnp.float32)

    # ---- WrapEncoderForFeature: PrepareEncoder (gather + scale + pos add) ----
    # Embedding gathers stay in XLA; scale/add fuses into one elementwise pass.
    pos_idx = encoder_word_pos.reshape(B, T)
    pos_enc = jnp.take(params["enc_pos_emb"], pos_idx, axis=0)        # [B,T,C]
    x = conv * jnp.float32(d_model) ** 0.5 + pos_enc                  # dropout=0

    # ---- Encoder layers (preprocess 'n', postprocess 'da', dropout 0) ----
    for i in range(num_encoder_tus):
        lp = params["layers"][i]
        # fused LN1 + QKV + MHA + out-proj + residual (one kernel, no HBM qkv)
        x = attention_block(x, lp["ln1_g"], lp["ln1_b"], lp["w_qkv"], lp["wo"],
                            num_heads=num_heads)                       # [B,T,C]
        # fused LN2 + FFN + residual
        x2d = ffn_block(x.reshape(B * T, C), lp["ln2_g"], lp["ln2_b"],
                        lp["ffn_w1"], lp["ffn_b1"],
                        lp["ffn_w2"], lp["ffn_b2"])
        x = x2d.reshape(B, T, C)

    # ---- PVAM attention head (final-LN + fc0 fused inside the kernel) ----
    gpos = gsrm_word_pos.reshape(B, max_text_length)
    pos_feat = jnp.take(params["emb"], gpos, axis=0)                   # [B,M,C]
    pvam_features = pvam_attention(x, params["ln_f_g"], params["ln_f_b"],
                                   params["fc0_w"], params["fc0_b"],
                                   pos_feat, params["fc1_w"])          # [B,M,C]
    return pvam_features


# ----------------------------------------------------------------------------
if __name__ == "__main__":
    # small shapes consistent with the module (in_channels == hidden_dims)
    B, C, H, W = 2, 32, 8, 8
    hidden_dims = 32
    num_heads = 4
    num_encoder_tus = 2
    max_text_length = 8
    # char_num is unused in PVAM.forward

    key = jax.random.PRNGKey(0)
    kp, kx = jax.random.split(key)
    params = init_params(kp, C, hidden_dims, max_text_length, num_heads,
                         num_encoder_tus)

    inputs = jax.random.normal(kx, (B, C, H, W), jnp.float32)
    T = H * W
    encoder_word_pos = jnp.tile(
        jnp.arange(T, dtype=jnp.int32)[None, :, None], (B, 1, 1))          # [B,T,1]
    gsrm_word_pos = jnp.tile(
        jnp.arange(max_text_length, dtype=jnp.int32)[None, :, None],
        (B, 1, 1))                                                         # [B,M,1]

    fwd = jax.jit(functools.partial(
        pvam_forward, num_heads=num_heads, num_encoder_tus=num_encoder_tus,
        max_text_length=max_text_length))
    out = fwd(params, inputs, encoder_word_pos, gsrm_word_pos)
    jax.block_until_ready(out)
    assert out.shape == (B, max_text_length, C) and out.dtype == jnp.float32
    assert bool(jnp.all(jnp.isfinite(out)))
    print("KERNEL_OK")
</pallas_src>

<mosaic_0001>
module attributes {stable_mosaic.version = 11 : i64} {
  func.func @_ffn_block_kernel(%arg0: i32, %arg1: memref<32x32xf32, #tpu.memory_space<vmem>>, %arg2: memref<1x32xf32, #tpu.memory_space<vmem>>, %arg3: memref<1x32xf32, #tpu.memory_space<vmem>>, %arg4: memref<32x32xbf16, #tpu.memory_space<vmem>>, %arg5: memref<1x32xf32, #tpu.memory_space<vmem>>, %arg6: memref<32x32xbf16, #tpu.memory_space<vmem>>, %arg7: memref<1x32xf32, #tpu.memory_space<vmem>>, %arg8: memref<32x32xf32, #tpu.memory_space<vmem>>) attributes {dimension_semantics = [#tpu.dimension_semantics<parallel>], iteration_bounds = array<i64: 4>, scalar_prefetch = 0 : i64, scratch_operands = 0 : i64, tpu.core_type = #tpu.core_type<tc>, window_params = [{transform_indices = @transform_0, window_bounds = array<i64: 32, 32>}, {pipeline_mode = #tpu.pipeline_mode<synchronous>, transform_indices = @transform_1, window_bounds = array<i64: 1, 32>}, {pipeline_mode = #tpu.pipeline_mode<synchronous>, transform_indices = @transform_2, window_bounds = array<i64: 1, 32>}, {pipeline_mode = #tpu.pipeline_mode<synchronous>, transform_indices = @transform_3, window_bounds = array<i64: 32, 32>}, {pipeline_mode = #tpu.pipeline_mode<synchronous>, transform_indices = @transform_4, window_bounds = array<i64: 1, 32>}, {pipeline_mode = #tpu.pipeline_mode<synchronous>, transform_indices = @transform_5, window_bounds = array<i64: 32, 32>}, {pipeline_mode = #tpu.pipeline_mode<synchronous>, transform_indices = @transform_6, window_bounds = array<i64: 1, 32>}, {transform_indices = @transform_7, window_bounds = array<i64: 32, 32>}]} {
    %c0 = arith.constant 0 : index
    %c0_0 = arith.constant 0 : index
    %0 = vector.load %arg1[%c0, %c0_0] : memref<32x32xf32, #tpu.memory_space<vmem>>, vector<32x32xf32>
    %cst = arith.constant dense<0.000000e+00> : vector<32xf32>
    %1 = vector.multi_reduction <add>, %0, %cst [1] : vector<32x32xf32> to vector<32xf32>
    %2 = vector.shape_cast %1 : vector<32xf32> to vector<32x1xf32>
    %cst_1 = arith.constant 3.200000e+01 : f32
    %3 = vector.broadcast %cst_1 : f32 to vector<32x1xf32>
    %4 = arith.divf %2, %3 : vector<32x1xf32>
    %5 = vector.broadcast %4 : vector<32x1xf32> to vector<32x32xf32>
    %6 = arith.subf %0, %5 : vector<32x32xf32>
    %7 = arith.mulf %6, %6 : vector<32x32xf32>
    %cst_2 = arith.constant dense<0.000000e+00> : vector<32xf32>
    %8 = vector.multi_reduction <add>, %7, %cst_2 [1] : vector<32x32xf32> to vector<32xf32>
    %9 = vector.shape_cast %8 : vector<32xf32> to vector<32x1xf32>
    %cst_3 = arith.constant 3.200000e+01 : f32
    %10 = vector.broadcast %cst_3 : f32 to vector<32x1xf32>
    %11 = arith.divf %9, %10 : vector<32x1xf32>
    %12 = vector.broadcast %4 : vector<32x1xf32> to vector<32x32xf32>
    %13 = arith.subf %0, %12 : vector<32x32xf32>
    %cst_4 = arith.constant 9.99999974E-6 : f32
    %14 = vector.broadcast %cst_4 : f32 to vector<32x1xf32>
    %15 = arith.addf %11, %14 : vector<32x1xf32>
    %16 = math.rsqrt %15 : vector<32x1xf32>
    %17 = vector.broadcast %16 : vector<32x1xf32> to vector<32x32xf32>
    %18 = arith.mulf %13, %17 : vector<32x32xf32>
    %c0_5 = arith.constant 0 : index
    %c0_6 = arith.constant 0 : index
    %19 = vector.load %arg2[%c0_5, %c0_6] : memref<1x32xf32, #tpu.memory_space<vmem>>, vector<1x32xf32>
    %20 = vector.broadcast %19 : vector<1x32xf32> to vector<32x32xf32>
    %21 = arith.mulf %18, %20 : vector<32x32xf32>
    %c0_7 = arith.constant 0 : index
    %c0_8 = arith.constant 0 : index
    %22 = vector.load %arg3[%c0_7, %c0_8] : memref<1x32xf32, #tpu.memory_space<vmem>>, vector<1x32xf32>
    %23 = vector.broadcast %22 : vector<1x32xf32> to vector<32x32xf32>
    %24 = arith.addf %21, %23 : vector<32x32xf32>
    %25 = arith.truncf %24 : vector<32x32xf32> to vector<32x32xbf16>
    %c0_9 = arith.constant 0 : index
    %c0_10 = arith.constant 0 : index
    %26 = vector.load %arg4[%c0_9, %c0_10] : memref<32x32xbf16, #tpu.memory_space<vmem>>, vector<32x32xbf16>
    %cst_11 = arith.constant dense<0.000000e+00> : vector<32x32xf32>
    %27 = tpu.matmul %25, %26, %cst_11 {dimension_numbers = #tpu.dot_dimension_numbers<[1], [0], [0], [1], [0, 0, 1, 1], [], []>} : vector<32x32xbf16>, vector<32x32xbf16>, vector<32x32xf32> -> vector<32x32xf32>
    %c0_12 = arith.constant 0 : index
    %c0_13 = arith.constant 0 : index
    %28 = vector.load %arg5[%c0_12, %c0_13] : memref<1x32xf32, #tpu.memory_space<vmem>>, vector<1x32xf32>
    %29 = vector.broadcast %28 : vector<1x32xf32> to vector<32x32xf32>
    %30 = arith.addf %27, %29 : vector<32x32xf32>
    %cst_14 = arith.constant 0.000000e+00 : f32
    %31 = vector.broadcast %cst_14 : f32 to vector<32x32xf32>
    %32 = arith.maximumf %30, %31 : vector<32x32xf32>
    %33 = arith.truncf %32 : vector<32x32xf32> to vector<32x32xbf16>
    %c0_15 = arith.constant 0 : index
    %c0_16 = arith.constant 0 : index
    %34 = vector.load %arg6[%c0_15, %c0_16] : memref<32x32xbf16, #tpu.memory_space<vmem>>, vector<32x32xbf16>
    %cst_17 = arith.constant dense<0.000000e+00> : vector<32x32xf32>
    %35 = tpu.matmul %33, %34, %cst_17 {dimension_numbers = #tpu.dot_dimension_numbers<[1], [0], [0], [1], [0, 0, 1, 1], [], []>} : vector<32x32xbf16>, vector<32x32xbf16>, vector<32x32xf32> -> vector<32x32xf32>
    %36 = arith.addf %0, %35 : vector<32x32xf32>
    %c0_18 = arith.constant 0 : index
    %c0_19 = arith.constant 0 : index
    %37 = vector.load %arg7[%c0_18, %c0_19] : memref<1x32xf32, #tpu.memory_space<vmem>>, vector<1x32xf32>
    %38 = vector.broadcast %37 : vector<1x32xf32> to vector<32x32xf32>
    %39 = arith.addf %36, %38 : vector<32x32xf32>
    %c0_20 = arith.constant 0 : index
    %c0_21 = arith.constant 0 : index
    %40 = vector.load %arg8[%c0_20, %c0_21] : memref<32x32xf32, #tpu.memory_space<vmem>>, vector<32x32xf32>
    tpu.vector_store %arg8[%c0_20, %c0_21], %39 {strides = array<i32>} : memref<32x32xf32, #tpu.memory_space<vmem>>, vector<32x32xf32>,
    return
  }
  func.func @transform_0(%arg0: i32) -> (i32, i32) {
    %c0_i32 = arith.constant 0 : i32
    %c0_i32_0 = arith.constant 0 : i32
    return %arg0, %c0_i32 : i32, i32
  }
  func.func @transform_1(%arg0: i32) -> (i32, i32) {
    %c0_i32 = arith.constant 0 : i32
    %c0_i32_0 = arith.constant 0 : i32
    %c0_i32_1 = arith.constant 0 : i32
    return %c0_i32, %c0_i32_0 : i32, i32
  }
  func.func @transform_2(%arg0: i32) -> (i32, i32) {
    %c0_i32 = arith.constant 0 : i32
    %c0_i32_0 = arith.constant 0 : i32
    %c0_i32_1 = arith.constant 0 : i32
    return %c0_i32, %c0_i32_0 : i32, i32
  }
  func.func @transform_3(%arg0: i32) -> (i32, i32) {
    %c0_i32 = arith.constant 0 : i32
    %c0_i32_0 = arith.constant 0 : i32
    %c0_i32_1 = arith.constant 0 : i32
    return %c0_i32, %c0_i32_0 : i32, i32
  }
  func.func @transform_4(%arg0: i32) -> (i32, i32) {
    %c0_i32 = arith.constant 0 : i32
    %c0_i32_0 = arith.constant 0 : i32
    %c0_i32_1 = arith.constant 0 : i32
    return %c0_i32, %c0_i32_0 : i32, i32
  }
  func.func @transform_5(%arg0: i32) -> (i32, i32) {
    %c0_i32 = arith.constant 0 : i32
    %c0_i32_0 = arith.constant 0 : i32
    %c0_i32_1 = arith.constant 0 : i32
    return %c0_i32, %c0_i32_0 : i32, i32
  }
  func.func @transform_6(%arg0: i32) -> (i32, i32) {
    %c0_i32 = arith.constant 0 : i32
    %c0_i32_0 = arith.constant 0 : i32
    %c0_i32_1 = arith.constant 0 : i32
    return %c0_i32, %c0_i32_0 : i32, i32
  }
  func.func @transform_7(%arg0: i32) -> (i32, i32) {
    %c0_i32 = arith.constant 0 : i32
    %c0_i32_0 = arith.constant 0 : i32
    return %arg0, %c0_i32 : i32, i32
  }
}

module attributes {stable_mosaic.version = 11 : i64} {
  func.func @_attn_block_kernel(%arg0: i32, %arg1: memref<1x64x32xf32, #tpu.memory_space<vmem>>, %arg2: memref<1x32xf32, #tpu.memory_space<vmem>>, %arg3: memref<1x32xf32, #tpu.memory_space<vmem>>, %arg4: memref<32x96xbf16, #tpu.memory_space<vmem>>, %arg5: memref<32x32xbf16, #tpu.memory_space<vmem>>, %arg6: memref<1x64x32xf32, #tpu.memory_space<vmem>>, %arg7: memref<64x32xf32, #tpu.memory_space<vmem>>) attributes {dimension_semantics = [#tpu.dimension_semantics<parallel>], iteration_bounds = array<i64: 2>, scalar_prefetch = 0 : i64, scratch_operands = 1 : i64, tpu.core_type = #tpu.core_type<tc>, window_params = [{transform_indices = @transform_0, window_bounds = array<i64: 1, 64, 32>}, {pipeline_mode = #tpu.pipeline_mode<synchronous>, transform_indices = @transform_1, window_bounds = array<i64: 1, 32>}, {pipeline_mode = #tpu.pipeline_mode<synchronous>, transform_indices = @transform_2, window_bounds = array<i64: 1, 32>}, {pipeline_mode = #tpu.pipeline_mode<synchronous>, transform_indices = @transform_3, window_bounds = array<i64: 32, 96>}, {pipeline_mode = #tpu.pipeline_mode<synchronous>, transform_indices = @transform_4, window_bounds = array<i64: 32, 32>}, {transform_indices = @transform_5, window_bounds = array<i64: 1, 64, 32>}]} {
    %c0 = arith.constant 0 : index
    %c0_0 = arith.constant 0 : index
    %c0_1 = arith.constant 0 : index
    %0 = vector.load %arg1[%c0, %c0_0, %c0_1] : memref<1x64x32xf32, #tpu.memory_space<vmem>>, vector<1x64x32xf32>
    %1 = vector.shape_cast %0 : vector<1x64x32xf32> to vector<64x32xf32>
    %cst = arith.constant dense<0.000000e+00> : vector<64xf32>
    %2 = vector.multi_reduction <add>, %1, %cst [1] : vector<64x32xf32> to vector<64xf32>
    %3 = vector.shape_cast %2 : vector<64xf32> to vector<64x1xf32>
    %cst_2 = arith.constant 3.200000e+01 : f32
    %4 = vector.broadcast %cst_2 : f32 to vector<64x1xf32>
    %5 = arith.divf %3, %4 : vector<64x1xf32>
    %6 = vector.broadcast %5 : vector<64x1xf32> to vector<64x32xf32>
    %7 = arith.subf %1, %6 : vector<64x32xf32>
    %8 = arith.mulf %7, %7 : vector<64x32xf32>
    %cst_3 = arith.constant dense<0.000000e+00> : vector<64xf32>
    %9 = vector.multi_reduction <add>, %8, %cst_3 [1] : vector<64x32xf32> to vector<64xf32>
    %10 = vector.shape_cast %9 : vector<64xf32> to vector<64x1xf32>
    %cst_4 = arith.constant 3.200000e+01 : f32
    %11 = vector.broadcast %cst_4 : f32 to vector<64x1xf32>
    %12 = arith.divf %10, %11 : vector<64x1xf32>
    %13 = vector.broadcast %5 : vector<64x1xf32> to vector<64x32xf32>
    %14 = arith.subf %1, %13 : vector<64x32xf32>
    %cst_5 = arith.constant 9.99999974E-6 : f32
    %15 = vector.broadcast %cst_5 : f32 to vector<64x1xf32>
    %16 = arith.addf %12, %15 : vector<64x1xf32>
    %17 = math.rsqrt %16 : vector<64x1xf32>
    %18 = vector.broadcast %17 : vector<64x1xf32> to vector<64x32xf32>
    %19 = arith.mulf %14, %18 : vector<64x32xf32>
    %c0_6 = arith.constant 0 : index
    %c0_7 = arith.constant 0 : index
    %20 = vector.load %arg2[%c0_6, %c0_7] : memref<1x32xf32, #tpu.memory_space<vmem>>, vector<1x32xf32>
    %21 = vector.broadcast %20 : vector<1x32xf32> to vector<64x32xf32>
    %22 = arith.mulf %19, %21 : vector<64x32xf32>
    %c0_8 = arith.constant 0 : index
    %c0_9 = arith.constant 0 : index
    %23 = vector.load %arg3[%c0_8, %c0_9] : memref<1x32xf32, #tpu.memory_space<vmem>>, vector<1x32xf32>
    %24 = vector.broadcast %23 : vector<1x32xf32> to vector<64x32xf32>
    %25 = arith.addf %22, %24 : vector<64x32xf32>
    %26 = arith.truncf %25 : vector<64x32xf32> to vector<64x32xbf16>
    %c0_10 = arith.constant 0 : index
    %c0_11 = arith.constant 0 : index
    %27 = vector.load %arg4[%c0_10, %c0_11] : memref<32x96xbf16, #tpu.memory_space<vmem>>, vector<32x96xbf16>
    %cst_12 = arith.constant dense<0.000000e+00> : vector<64x96xf32>
    %28 = tpu.matmul %26, %27, %cst_12 {dimension_numbers = #tpu.dot_dimension_numbers<[1], [0], [0], [1], [0, 0, 1, 1], [], []>} : vector<64x32xbf16>, vector<32x96xbf16>, vector<64x96xf32> -> vector<64x96xf32>
    %29 = arith.truncf %28 : vector<64x96xf32> to vector<64x96xbf16>
    %30 = vector.extract_strided_slice %29 {offsets = [0, 0], sizes = [64, 8], strides = [1, 1]} : vector<64x96xbf16> to vector<64x8xbf16>
    %31 = vector.extract_strided_slice %29 {offsets = [0, 32], sizes = [64, 8], strides = [1, 1]} : vector<64x96xbf16> to vector<64x8xbf16>
    %32 = vector.extract_strided_slice %29 {offsets = [0, 64], sizes = [64, 8], strides = [1, 1]} : vector<64x96xbf16> to vector<64x8xbf16>
    %cst_13 = arith.constant dense<0.000000e+00> : vector<64x64xf32>
    %33 = tpu.matmul %30, %31, %cst_13 {dimension_numbers = #tpu.dot_dimension_numbers<[1], [1], [0], [0], [0, 0, 1, 0], [], []>} : vector<64x8xbf16>, vector<64x8xbf16>, vector<64x64xf32> -> vector<64x64xf32>
    %cst_14 = arith.constant 0.176776692 : f32
    %34 = vector.broadcast %cst_14 : f32 to vector<64x64xf32>
    %35 = arith.mulf %33, %34 : vector<64x64xf32>
    %cst_15 = arith.constant dense<0xFF800000> : vector<64xf32>
    %36 = vector.multi_reduction <maximumf>, %35, %cst_15 [1] : vector<64x64xf32> to vector<64xf32>
    %37 = vector.shape_cast %36 : vector<64xf32> to vector<64x1xf32>
    %38 = vector.broadcast %37 : vector<64x1xf32> to vector<64x64xf32>
    %39 = arith.subf %35, %38 : vector<64x64xf32>
    %40 = math.exp %39 : vector<64x64xf32>
    %cst_16 = arith.constant dense<0.000000e+00> : vector<64xf32>
    %41 = vector.multi_reduction <add>, %40, %cst_16 [1] : vector<64x64xf32> to vector<64xf32>
    %42 = vector.shape_cast %41 : vector<64xf32> to vector<64x1xf32>
    %43 = vector.broadcast %42 : vector<64x1xf32> to vector<64x64xf32>
    %44 = arith.divf %40, %43 : vector<64x64xf32>
    %45 = arith.truncf %44 : vector<64x64xf32> to vector<64x64xbf16>
    %cst_17 = arith.constant dense<0.000000e+00> : vector<64x8xf32>
    %46 = tpu.matmul %45, %32, %cst_17 {dimension_numbers = #tpu.dot_dimension_numbers<[1], [0], [0], [1], [0, 0, 1, 1], [], []>} : vector<64x64xbf16>, vector<64x8xbf16>, vector<64x8xf32> -> vector<64x8xf32>
    %c0_18 = arith.constant 0 : index
    %c0_19 = arith.constant 0 : index
    %47 = vector.load %arg7[%c0_18, %c0_19] : memref<64x32xf32, #tpu.memory_space<vmem>>, vector<64x8xf32>
    tpu.vector_store %arg7[%c0_18, %c0_19], %46 {strides = array<i32>} : memref<64x32xf32, #tpu.memory_space<vmem>>, vector<64x8xf32>,
    %48 = vector.extract_strided_slice %29 {offsets = [0, 8], sizes = [64, 8], strides = [1, 1]} : vector<64x96xbf16> to vector<64x8xbf16>
    %49 = vector.extract_strided_slice %29 {offsets = [0, 40], sizes = [64, 8], strides = [1, 1]} : vector<64x96xbf16> to vector<64x8xbf16>
    %50 = vector.extract_strided_slice %29 {offsets = [0, 72], sizes = [64, 8], strides = [1, 1]} : vector<64x96xbf16> to vector<64x8xbf16>
    %cst_20 = arith.constant dense<0.000000e+00> : vector<64x64xf32>
    %51 = tpu.matmul %48, %49, %cst_20 {dimension_numbers = #tpu.dot_dimension_numbers<[1], [1], [0], [0], [0, 0, 1, 0], [], []>} : vector<64x8xbf16>, vector<64x8xbf16>, vector<64x64xf32> -> vector<64x64xf32>
    %cst_21 = arith.constant 0.176776692 : f32
    %52 = vector.broadcast %cst_21 : f32 to vector<64x64xf32>
    %53 = arith.mulf %51, %52 : vector<64x64xf32>
    %cst_22 = arith.constant dense<0xFF800000> : vector<64xf32>
    %54 = vector.multi_reduction <maximumf>, %53, %cst_22 [1] : vector<64x64xf32> to vector<64xf32>
    %55 = vector.shape_cast %54 : vector<64xf32> to vector<64x1xf32>
    %56 = vector.broadcast %55 : vector<64x1xf32> to vector<64x64xf32>
    %57 = arith.subf %53, %56 : vector<64x64xf32>
    %58 = math.exp %57 : vector<64x64xf32>
    %cst_23 = arith.constant dense<0.000000e+00> : vector<64xf32>
    %59 = vector.multi_reduction <add>, %58, %cst_23 [1] : vector<64x64xf32> to vector<64xf32>
    %60 = vector.shape_cast %59 : vector<64xf32> to vector<64x1xf32>
    %61 = vector.broadcast %60 : vector<64x1xf32> to vector<64x64xf32>
    %62 = arith.divf %58, %61 : vector<64x64xf32>
    %63 = arith.truncf %62 : vector<64x64xf32> to vector<64x64xbf16>
    %cst_24 = arith.constant dense<0.000000e+00> : vector<64x8xf32>
    %64 = tpu.matmul %63, %50, %cst_24 {dimension_numbers = #tpu.dot_dimension_numbers<[1], [0], [0], [1], [0, 0, 1, 1], [], []>} : vector<64x64xbf16>, vector<64x8xbf16>, vector<64x8xf32> -> vector<64x8xf32>
    %c0_25 = arith.constant 0 : index
    %c8 = arith.constant 8 : index
    %65 = vector.load %arg7[%c0_25, %c8] : memref<64x32xf32, #tpu.memory_space<vmem>>, vector<64x8xf32>
    tpu.vector_store %arg7[%c0_25, %c8], %64 {strides = array<i32>} : memref<64x32xf32, #tpu.memory_space<vmem>>, vector<64x8xf32>,
    %66 = vector.extract_strided_slice %29 {offsets = [0, 16], sizes = [64, 8], strides = [1, 1]} : vector<64x96xbf16> to vector<64x8xbf16>
    %67 = vector.extract_strided_slice %29 {offsets = [0, 48], sizes = [64, 8], strides = [1, 1]} : vector<64x96xbf16> to vector<64x8xbf16>
    %68 = vector.extract_strided_slice %29 {offsets = [0, 80], sizes = [64, 8], strides = [1, 1]} : vector<64x96xbf16> to vector<64x8xbf16>
    %cst_26 = arith.constant dense<0.000000e+00> : vector<64x64xf32>
    %69 = tpu.matmul %66, %67, %cst_26 {dimension_numbers = #tpu.dot_dimension_numbers<[1], [1], [0], [0], [0, 0, 1, 0], [], []>} : vector<64x8xbf16>, vector<64x8xbf16>, vector<64x64xf32> -> vector<64x64xf32>
    %cst_27 = arith.constant 0.176776692 : f32
    %70 = vector.broadcast %cst_27 : f32 to vector<64x64xf32>
    %71 = arith.mulf %69, %70 : vector<64x64xf32>
    %cst_28 = arith.constant dense<0xFF800000> : vector<64xf32>
    %72 = vector.multi_reduction <maximumf>, %71, %cst_28 [1] : vector<64x64xf32> to vector<64xf32>
    %73 = vector.shape_cast %72 : vector<64xf32> to vector<64x1xf32>
    %74 = vector.broadcast %73 : vector<64x1xf32> to vector<64x64xf32>
    %75 = arith.subf %71, %74 : vector<64x64xf32>
    %76 = math.exp %75 : vector<64x64xf32>
    %cst_29 = arith.constant dense<0.000000e+00> : vector<64xf32>
    %77 = vector.multi_reduction <add>, %76, %cst_29 [1] : vector<64x64xf32> to vector<64xf32>
    %78 = vector.shape_cast %77 : vector<64xf32> to vector<64x1xf32>
    %79 = vector.broadcast %78 : vector<64x1xf32> to vector<64x64xf32>
    %80 = arith.divf %76, %79 : vector<64x64xf32>
    %81 = arith.truncf %80 : vector<64x64xf32> to vector<64x64xbf16>
    %cst_30 = arith.constant dense<0.000000e+00> : vector<64x8xf32>
    %82 = tpu.matmul %81, %68, %cst_30 {dimension_numbers = #tpu.dot_dimension_numbers<[1], [0], [0], [1], [0, 0, 1, 1], [], []>} : vector<64x64xbf16>, vector<64x8xbf16>, vector<64x8xf32> -> vector<64x8xf32>
    %c0_31 = arith.constant 0 : index
    %c16 = arith.constant 16 : index
    %83 = vector.load %arg7[%c0_31, %c16] : memref<64x32xf32, #tpu.memory_space<vmem>>, vector<64x8xf32>
    tpu.vector_store %arg7[%c0_31, %c16], %82 {strides = array<i32>} : memref<64x32xf32, #tpu.memory_space<vmem>>, vector<64x8xf32>,
    %84 = vector.extract_strided_slice %29 {offsets = [0, 24], sizes = [64, 8], strides = [1, 1]} : vector<64x96xbf16> to vector<64x8xbf16>
    %85 = vector.extract_strided_slice %29 {offsets = [0, 56], sizes = [64, 8], strides = [1, 1]} : vector<64x96xbf16> to vector<64x8xbf16>
    %86 = vector.extract_strided_slice %29 {offsets = [0, 88], sizes = [64, 8], strides = [1, 1]} : vector<64x96xbf16> to vector<64x8xbf16>
    %cst_32 = arith.constant dense<0.000000e+00> : vector<64x64xf32>
    %87 = tpu.matmul %84, %85, %cst_32 {dimension_numbers = #tpu.dot_dimension_numbers<[1], [1], [0], [0], [0, 0, 1, 0], [], []>} : vector<64x8xbf16>, vector<64x8xbf16>, vector<64x64xf32> -> vector<64x64xf32>
    %cst_33 = arith.constant 0.176776692 : f32
    %88 = vector.broadcast %cst_33 : f32 to vector<64x64xf32>
    %89 = arith.mulf %87, %88 : vector<64x64xf32>
    %cst_34 = arith.constant dense<0xFF800000> : vector<64xf32>
    %90 = vector.multi_reduction <maximumf>, %89, %cst_34 [1] : vector<64x64xf32> to vector<64xf32>
    %91 = vector.shape_cast %90 : vector<64xf32> to vector<64x1xf32>
    %92 = vector.broadcast %91 : vector<64x1xf32> to vector<64x64xf32>
    %93 = arith.subf %89, %92 : vector<64x64xf32>
    %94 = math.exp %93 : vector<64x64xf32>
    %cst_35 = arith.constant dense<0.000000e+00> : vector<64xf32>
    %95 = vector.multi_reduction <add>, %94, %cst_35 [1] : vector<64x64xf32> to vector<64xf32>
    %96 = vector.shape_cast %95 : vector<64xf32> to vector<64x1xf32>
    %97 = vector.broadcast %96 : vector<64x1xf32> to vector<64x64xf32>
    %98 = arith.divf %94, %97 : vector<64x64xf32>
    %99 = arith.truncf %98 : vector<64x64xf32> to vector<64x64xbf16>
    %cst_36 = arith.constant dense<0.000000e+00> : vector<64x8xf32>
    %100 = tpu.matmul %99, %86, %cst_36 {dimension_numbers = #tpu.dot_dimension_numbers<[1], [0], [0], [1], [0, 0, 1, 1], [], []>} : vector<64x64xbf16>, vector<64x8xbf16>, vector<64x8xf32> -> vector<64x8xf32>
    %c0_37 = arith.constant 0 : index
    %c24 = arith.constant 24 : index
    %101 = vector.load %arg7[%c0_37, %c24] : memref<64x32xf32, #tpu.memory_space<vmem>>, vector<64x8xf32>
    tpu.vector_store %arg7[%c0_37, %c24], %100 {strides = array<i32>} : memref<64x32xf32, #tpu.memory_space<vmem>>, vector<64x8xf32>,
    %c0_38 = arith.constant 0 : index
    %c0_39 = arith.constant 0 : index
    %102 = vector.load %arg7[%c0_38, %c0_39] : memref<64x32xf32, #tpu.memory_space<vmem>>, vector<64x32xf32>
    %103 = arith.truncf %102 : vector<64x32xf32> to vector<64x32xbf16>
    %c0_40 = arith.constant 0 : index
    %c0_41 = arith.constant 0 : index
    %104 = vector.load %arg5[%c0_40, %c0_41] : memref<32x32xbf16, #tpu.memory_space<vmem>>, vector<32x32xbf16>
    %cst_42 = arith.constant dense<0.000000e+00> : vector<64x32xf32>
    %105 = tpu.matmul %103, %104, %cst_42 {dimension_numbers = #tpu.dot_dimension_numbers<[1], [0], [0], [1], [0, 0, 1, 1], [], []>} : vector<64x32xbf16>, vector<32x32xbf16>, vector<64x32xf32> -> vector<64x32xf32>
    %106 = arith.addf %1, %105 : vector<64x32xf32>
    %c0_43 = arith.constant 0 : index
    %c0_44 = arith.constant 0 : index
    %c0_45 = arith.constant 0 : index
    %107 = vector.load %arg6[%c0_43, %c0_44, %c0_45] : memref<1x64x32xf32, #tpu.memory_space<vmem>>, vector<1x64x32xf32>
    %108 = vector.shape_cast %107 : vector<1x64x32xf32> to vector<64x32xf32>
    %109 = vector.shape_cast %106 : vector<64x32xf32> to vector<1x64x32xf32>
    tpu.vector_store %arg6[%c0_43, %c0_44, %c0_45], %109 {strides = array<i32>} : memref<1x64x32xf32, #tpu.memory_space<vmem>>, vector<1x64x32xf32>,
    return
  }
  func.func @transform_0(%arg0: i32) -> (i32, i32, i32) {
    %c0_i32 = arith.constant 0 : i32
    %c0_i32_0 = arith.constant 0 : i32
    %c0_i32_1 = arith.constant 0 : i32
    return %arg0, %c0_i32, %c0_i32_0 : i32, i32, i32
  }
  func.func @transform_1(%arg0: i32) -> (i32, i32) {
    %c0_i32 = arith.constant 0 : i32
    %c0_i32_0 = arith.constant 0 : i32
    %c0_i32_1 = arith.constant 0 : i32
    return %c0_i32, %c0_i32_0 : i32, i32
  }
  func.func @transform_2(%arg0: i32) -> (i32, i32) {
    %c0_i32 = arith.constant 0 : i32
    %c0_i32_0 = arith.constant 0 : i32
    %c0_i32_1 = arith.constant 0 : i32
    return %c0_i32, %c0_i32_0 : i32, i32
  }
  func.func @transform_3(%arg0: i32) -> (i32, i32) {
    %c0_i32 = arith.constant 0 : i32
    %c0_i32_0 = arith.constant 0 : i32
    %c0_i32_1 = arith.constant 0 : i32
    return %c0_i32, %c0_i32_0 : i32, i32
  }
  func.func @transform_4(%arg0: i32) -> (i32, i32) {
    %c0_i32 = arith.constant 0 : i32
    %c0_i32_0 = arith.constant 0 : i32
    %c0_i32_1 = arith.constant 0 : i32
    return %c0_i32, %c0_i32_0 : i32, i32
  }
  func.func @transform_5(%arg0: i32) -> (i32, i32, i32) {
    %c0_i32 = arith.constant 0 : i32
    %c0_i32_0 = arith.constant 0 : i32
    %c0_i32_1 = arith.constant 0 : i32
    return %arg0, %c0_i32, %c0_i32_0 : i32, i32, i32
  }
}

module attributes {stable_mosaic.version = 11 : i64} {
  func.func @_pvam_kernel(%arg0: i32, %arg1: i32, %arg2: memref<1x32x32xf32, #tpu.memory_space<vmem>>, %arg3: memref<1x32xf32, #tpu.memory_space<vmem>>, %arg4: memref<1x32xf32, #tpu.memory_space<vmem>>, %arg5: memref<32x32xbf16, #tpu.memory_space<vmem>>, %arg6: memref<1x32xf32, #tpu.memory_space<vmem>>, %arg7: memref<1x8x32xf32, #tpu.memory_space<vmem>>, %arg8: memref<1x32xf32, #tpu.memory_space<vmem>>, %arg9: memref<1x8x32xf32, #tpu.memory_space<vmem>>, %arg10: memref<8x1xf32, #tpu.memory_space<vmem>>, %arg11: memref<8x1xf32, #tpu.memory_space<vmem>>, %arg12: memref<8x32xf32, #tpu.memory_space<vmem>>, %arg13: memref<8x32xf32, #tpu.memory_space<vmem>>) attributes {dimension_semantics = [#tpu.dimension_semantics<parallel>, #tpu.dimension_semantics<arbitrary>], iteration_bounds = array<i64: 2, 2>, scalar_prefetch = 0 : i64, scratch_operands = 4 : i64, tpu.core_type = #tpu.core_type<tc>, window_params = [{transform_indices = @transform_0, window_bounds = array<i64: 1, 32, 32>}, {pipeline_mode = #tpu.pipeline_mode<synchronous>, transform_indices = @transform_1, window_bounds = array<i64: 1, 32>}, {pipeline_mode = #tpu.pipeline_mode<synchronous>, transform_indices = @transform_2, window_bounds = array<i64: 1, 32>}, {pipeline_mode = #tpu.pipeline_mode<synchronous>, transform_indices = @transform_3, window_bounds = array<i64: 32, 32>}, {pipeline_mode = #tpu.pipeline_mode<synchronous>, transform_indices = @transform_4, window_bounds = array<i64: 1, 32>}, {transform_indices = @transform_5, window_bounds = array<i64: 1, 8, 32>}, {pipeline_mode = #tpu.pipeline_mode<synchronous>, transform_indices = @transform_6, window_bounds = array<i64: 1, 32>}, {transform_indices = @transform_7, window_bounds = array<i64: 1, 8, 32>}]} {
    %c0_i32 = arith.constant 0 : i32
    %0 = arith.cmpi eq, %arg1, %c0_i32 : i32
    %1 = arith.extui %0 : i1 to i32
    %c0_i32_0 = arith.constant 0 : i32
    %2 = arith.cmpi ne, %1, %c0_i32_0 : i32
    scf.if %2 {
      %cst_56 = arith.constant 0xFF800000 : f32
      %123 = vector.broadcast %cst_56 : f32 to vector<8x1xf32>
      %c0_57 = arith.constant 0 : index
      %c0_58 = arith.constant 0 : index
      %124 = vector.load %arg10[%c0_57, %c0_58] : memref<8x1xf32, #tpu.memory_space<vmem>>, vector<8x1xf32>
      tpu.vector_store %arg10[%c0_57, %c0_58], %123 {strides = array<i32>} : memref<8x1xf32, #tpu.memory_space<vmem>>, vector<8x1xf32>,
      %cst_59 = arith.constant 0.000000e+00 : f32
      %125 = vector.broadcast %cst_59 : f32 to vector<8x1xf32>
      %c0_60 = arith.constant 0 : index
      %c0_61 = arith.constant 0 : index
      %126 = vector.load %arg11[%c0_60, %c0_61] : memref<8x1xf32, #tpu.memory_space<vmem>>, vector<8x1xf32>
      tpu.vector_store %arg11[%c0_60, %c0_61], %125 {strides = array<i32>} : memref<8x1xf32, #tpu.memory_space<vmem>>, vector<8x1xf32>,
      %cst_62 = arith.constant 0.000000e+00 : f32
      %127 = vector.broadcast %cst_62 : f32 to vector<8x32xf32>
      %c0_63 = arith.constant 0 : index
      %c0_64 = arith.constant 0 : index
      %128 = vector.load %arg12[%c0_63, %c0_64] : memref<8x32xf32, #tpu.memory_space<vmem>>, vector<8x32xf32>
      tpu.vector_store %arg12[%c0_63, %c0_64], %127 {strides = array<i32>} : memref<8x32xf32, #tpu.memory_space<vmem>>, vector<8x32xf32>,
    } else {
    }
    %c0 = arith.constant 0 : index
    %c0_1 = arith.constant 0 : index
    %c0_2 = arith.constant 0 : index
    %3 = vector.load %arg2[%c0, %c0_1, %c0_2] : memref<1x32x32xf32, #tpu.memory_space<vmem>>, vector<1x32x32xf32>
    %4 = vector.shape_cast %3 : vector<1x32x32xf32> to vector<32x32xf32>
    %cst = arith.constant dense<0.000000e+00> : vector<32xf32>
    %5 = vector.multi_reduction <add>, %4, %cst [1] : vector<32x32xf32> to vector<32xf32>
    %6 = vector.shape_cast %5 : vector<32xf32> to vector<32x1xf32>
    %cst_3 = arith.constant 3.200000e+01 : f32
    %7 = vector.broadcast %cst_3 : f32 to vector<32x1xf32>
    %8 = arith.divf %6, %7 : vector<32x1xf32>
    %9 = vector.broadcast %8 : vector<32x1xf32> to vector<32x32xf32>
    %10 = arith.subf %4, %9 : vector<32x32xf32>
    %11 = arith.mulf %10, %10 : vector<32x32xf32>
    %cst_4 = arith.constant dense<0.000000e+00> : vector<32xf32>
    %12 = vector.multi_reduction <add>, %11, %cst_4 [1] : vector<32x32xf32> to vector<32xf32>
    %13 = vector.shape_cast %12 : vector<32xf32> to vector<32x1xf32>
    %cst_5 = arith.constant 3.200000e+01 : f32
    %14 = vector.broadcast %cst_5 : f32 to vector<32x1xf32>
    %15 = arith.divf %13, %14 : vector<32x1xf32>
    %16 = vector.broadcast %8 : vector<32x1xf32> to vector<32x32xf32>
    %17 = arith.subf %4, %16 : vector<32x32xf32>
    %cst_6 = arith.constant 9.99999974E-6 : f32
    %18 = vector.broadcast %cst_6 : f32 to vector<32x1xf32>
    %19 = arith.addf %15, %18 : vector<32x1xf32>
    %20 = math.rsqrt %19 : vector<32x1xf32>
    %21 = vector.broadcast %20 : vector<32x1xf32> to vector<32x32xf32>
    %22 = arith.mulf %17, %21 : vector<32x32xf32>
    %c0_7 = arith.constant 0 : index
    %c0_8 = arith.constant 0 : index
    %23 = vector.load %arg3[%c0_7, %c0_8] : memref<1x32xf32, #tpu.memory_space<vmem>>, vector<1x32xf32>
    %24 = vector.broadcast %23 : vector<1x32xf32> to vector<32x32xf32>
    %25 = arith.mulf %22, %24 : vector<32x32xf32>
    %c0_9 = arith.constant 0 : index
    %c0_10 = arith.constant 0 : index
    %26 = vector.load %arg4[%c0_9, %c0_10] : memref<1x32xf32, #tpu.memory_space<vmem>>, vector<1x32xf32>
    %27 = vector.broadcast %26 : vector<1x32xf32> to vector<32x32xf32>
    %28 = arith.addf %25, %27 : vector<32x32xf32>
    %29 = arith.truncf %28 : vector<32x32xf32> to vector<32x32xbf16>
    %c0_11 = arith.constant 0 : index
    %c0_12 = arith.constant 0 : index
    %30 = vector.load %arg5[%c0_11, %c0_12] : memref<32x32xbf16, #tpu.memory_space<vmem>>, vector<32x32xbf16>
    %cst_13 = arith.constant dense<0.000000e+00> : vector<32x32xf32>
    %31 = tpu.matmul %29, %30, %cst_13 {dimension_numbers = #tpu.dot_dimension_numbers<[1], [0], [0], [1], [0, 0, 1, 1], [], []>} : vector<32x32xbf16>, vector<32x32xbf16>, vector<32x32xf32> -> vector<32x32xf32>
    %c0_14 = arith.constant 0 : index
    %c0_15 = arith.constant 0 : index
    %32 = vector.load %arg6[%c0_14, %c0_15] : memref<1x32xf32, #tpu.memory_space<vmem>>, vector<1x32xf32>
    %33 = vector.broadcast %32 : vector<1x32xf32> to vector<32x32xf32>
    %34 = arith.addf %31, %33 : vector<32x32xf32>
    %c0_16 = arith.constant 0 : index
    %c0_17 = arith.constant 0 : index
    %c0_18 = arith.constant 0 : index
    %35 = vector.load %arg7[%c0_16, %c0_17, %c0_18] : memref<1x8x32xf32, #tpu.memory_space<vmem>>, vector<1x8x32xf32>
    %36 = vector.shape_cast %35 : vector<1x8x32xf32> to vector<8x32xf32>
    %c0_19 = arith.constant 0 : index
    %c0_20 = arith.constant 0 : index
    %37 = vector.load %arg8[%c0_19, %c0_20] : memref<1x32xf32, #tpu.memory_space<vmem>>, vector<1x32xf32>
    %38 = arith.truncf %37 : vector<1x32xf32> to vector<1x32xbf16>
    %39 = vector.extract_strided_slice %36 {offsets = [0, 0], sizes = [1, 32], strides = [1, 1]} : vector<8x32xf32> to vector<1x32xf32>
    %40 = vector.broadcast %39 : vector<1x32xf32> to vector<32x32xf32>
    %41 = arith.addf %34, %40 : vector<32x32xf32>
    %42 = math.tanh %41 : vector<32x32xf32>
    %43 = arith.truncf %42 : vector<32x32xf32> to vector<32x32xbf16>
    %cst_21 = arith.constant dense<0.000000e+00> : vector<1x32xf32>
    %44 = tpu.matmul %38, %43, %cst_21 {dimension_numbers = #tpu.dot_dimension_numbers<[1], [1], [0], [0], [0, 0, 1, 0], [], []>} : vector<1x32xbf16>, vector<32x32xbf16>, vector<1x32xf32> -> vector<1x32xf32>
    %c0_22 = arith.constant 0 : index
    %c0_23 = arith.constant 0 : index
    %45 = vector.load %arg13[%c0_22, %c0_23] : memref<8x32xf32, #tpu.memory_space<vmem>>, vector<1x32xf32>
    tpu.vector_store %arg13[%c0_22, %c0_23], %44 {strides = array<i32>} : memref<8x32xf32, #tpu.memory_space<vmem>>, vector<1x32xf32>,
    %46 = vector.extract_strided_slice %36 {offsets = [1, 0], sizes = [1, 32], strides = [1, 1]} : vector<8x32xf32> to vector<1x32xf32>
    %47 = vector.broadcast %46 : vector<1x32xf32> to vector<32x32xf32>
    %48 = arith.addf %34, %47 : vector<32x32xf32>
    %49 = math.tanh %48 : vector<32x32xf32>
    %50 = arith.truncf %49 : vector<32x32xf32> to vector<32x32xbf16>
    %cst_24 = arith.constant dense<0.000000e+00> : vector<1x32xf32>
    %51 = tpu.matmul %38, %50, %cst_24 {dimension_numbers = #tpu.dot_dimension_numbers<[1], [1], [0], [0], [0, 0, 1, 0], [], []>} : vector<1x32xbf16>, vector<32x32xbf16>, vector<1x32xf32> -> vector<1x32xf32>
    %c1 = arith.constant 1 : index
    %c0_25 = arith.constant 0 : index
    %52 = vector.load %arg13[%c1, %c0_25] : memref<8x32xf32, #tpu.memory_space<vmem>>, vector<1x32xf32>
    tpu.vector_store %arg13[%c1, %c0_25], %51 {strides = array<i32>} : memref<8x32xf32, #tpu.memory_space<vmem>>, vector<1x32xf32>,
    %53 = vector.extract_strided_slice %36 {offsets = [2, 0], sizes = [1, 32], strides = [1, 1]} : vector<8x32xf32> to vector<1x32xf32>
    %54 = vector.broadcast %53 : vector<1x32xf32> to vector<32x32xf32>
    %55 = arith.addf %34, %54 : vector<32x32xf32>
    %56 = math.tanh %55 : vector<32x32xf32>
    %57 = arith.truncf %56 : vector<32x32xf32> to vector<32x32xbf16>
    %cst_26 = arith.constant dense<0.000000e+00> : vector<1x32xf32>
    %58 = tpu.matmul %38, %57, %cst_26 {dimension_numbers = #tpu.dot_dimension_numbers<[1], [1], [0], [0], [0, 0, 1, 0], [], []>} : vector<1x32xbf16>, vector<32x32xbf16>, vector<1x32xf32> -> vector<1x32xf32>
    %c2 = arith.constant 2 : index
    %c0_27 = arith.constant 0 : index
    %59 = vector.load %arg13[%c2, %c0_27] : memref<8x32xf32, #tpu.memory_space<vmem>>, vector<1x32xf32>
    tpu.vector_store %arg13[%c2, %c0_27], %58 {strides = array<i32>} : memref<8x32xf32, #tpu.memory_space<vmem>>, vector<1x32xf32>,
    %60 = vector.extract_strided_slice %36 {offsets = [3, 0], sizes = [1, 32], strides = [1, 1]} : vector<8x32xf32> to vector<1x32xf32>
    %61 = vector.broadcast %60 : vector<1x32xf32> to vector<32x32xf32>
    %62 = arith.addf %34, %61 : vector<32x32xf32>
    %63 = math.tanh %62 : vector<32x32xf32>
    %64 = arith.truncf %63 : vector<32x32xf32> to vector<32x32xbf16>
    %cst_28 = arith.constant dense<0.000000e+00> : vector<1x32xf32>
    %65 = tpu.matmul %38, %64, %cst_28 {dimension_numbers = #tpu.dot_dimension_numbers<[1], [1], [0], [0], [0, 0, 1, 0], [], []>} : vector<1x32xbf16>, vector<32x32xbf16>, vector<1x32xf32> -> vector<1x32xf32>
    %c3 = arith.constant 3 : index
    %c0_29 = arith.constant 0 : index
    %66 = vector.load %arg13[%c3, %c0_29] : memref<8x32xf32, #tpu.memory_space<vmem>>, vector<1x32xf32>
    tpu.vector_store %arg13[%c3, %c0_29], %65 {strides = array<i32>} : memref<8x32xf32, #tpu.memory_space<vmem>>, vector<1x32xf32>,
    %67 = vector.extract_strided_slice %36 {offsets = [4, 0], sizes = [1, 32], strides = [1, 1]} : vector<8x32xf32> to vector<1x32xf32>
    %68 = vector.broadcast %67 : vector<1x32xf32> to vector<32x32xf32>
    %69 = arith.addf %34, %68 : vector<32x32xf32>
    %70 = math.tanh %69 : vector<32x32xf32>
    %71 = arith.truncf %70 : vector<32x32xf32> to vector<32x32xbf16>
    %cst_30 = arith.constant dense<0.000000e+00> : vector<1x32xf32>
    %72 = tpu.matmul %38, %71, %cst_30 {dimension_numbers = #tpu.dot_dimension_numbers<[1], [1], [0], [0], [0, 0, 1, 0], [], []>} : vector<1x32xbf16>, vector<32x32xbf16>, vector<1x32xf32> -> vector<1x32xf32>
    %c4 = arith.constant 4 : index
    %c0_31 = arith.constant 0 : index
    %73 = vector.load %arg13[%c4, %c0_31] : memref<8x32xf32, #tpu.memory_space<vmem>>, vector<1x32xf32>
    tpu.vector_store %arg13[%c4, %c0_31], %72 {strides = array<i32>} : memref<8x32xf32, #tpu.memory_space<vmem>>, vector<1x32xf32>,
    %74 = vector.extract_strided_slice %36 {offsets = [5, 0], sizes = [1, 32], strides = [1, 1]} : vector<8x32xf32> to vector<1x32xf32>
    %75 = vector.broadcast %74 : vector<1x32xf32> to vector<32x32xf32>
    %76 = arith.addf %34, %75 : vector<32x32xf32>
    %77 = math.tanh %76 : vector<32x32xf32>
    %78 = arith.truncf %77 : vector<32x32xf32> to vector<32x32xbf16>
    %cst_32 = arith.constant dense<0.000000e+00> : vector<1x32xf32>
    %79 = tpu.matmul %38, %78, %cst_32 {dimension_numbers = #tpu.dot_dimension_numbers<[1], [1], [0], [0], [0, 0, 1, 0], [], []>} : vector<1x32xbf16>, vector<32x32xbf16>, vector<1x32xf32> -> vector<1x32xf32>
    %c5 = arith.constant 5 : index
    %c0_33 = arith.constant 0 : index
    %80 = vector.load %arg13[%c5, %c0_33] : memref<8x32xf32, #tpu.memory_space<vmem>>, vector<1x32xf32>
    tpu.vector_store %arg13[%c5, %c0_33], %79 {strides = array<i32>} : memref<8x32xf32, #tpu.memory_space<vmem>>, vector<1x32xf32>,
    %81 = vector.extract_strided_slice %36 {offsets = [6, 0], sizes = [1, 32], strides = [1, 1]} : vector<8x32xf32> to vector<1x32xf32>
    %82 = vector.broadcast %81 : vector<1x32xf32> to vector<32x32xf32>
    %83 = arith.addf %34, %82 : vector<32x32xf32>
    %84 = math.tanh %83 : vector<32x32xf32>
    %85 = arith.truncf %84 : vector<32x32xf32> to vector<32x32xbf16>
    %cst_34 = arith.constant dense<0.000000e+00> : vector<1x32xf32>
    %86 = tpu.matmul %38, %85, %cst_34 {dimension_numbers = #tpu.dot_dimension_numbers<[1], [1], [0], [0], [0, 0, 1, 0], [], []>} : vector<1x32xbf16>, vector<32x32xbf16>, vector<1x32xf32> -> vector<1x32xf32>
    %c6 = arith.constant 6 : index
    %c0_35 = arith.constant 0 : index
    %87 = vector.load %arg13[%c6, %c0_35] : memref<8x32xf32, #tpu.memory_space<vmem>>, vector<1x32xf32>
    tpu.vector_store %arg13[%c6, %c0_35], %86 {strides = array<i32>} : memref<8x32xf32, #tpu.memory_space<vmem>>, vector<1x32xf32>,
    %88 = vector.extract_strided_slice %36 {offsets = [7, 0], sizes = [1, 32], strides = [1, 1]} : vector<8x32xf32> to vector<1x32xf32>
    %89 = vector.broadcast %88 : vector<1x32xf32> to vector<32x32xf32>
    %90 = arith.addf %34, %89 : vector<32x32xf32>
    %91 = math.tanh %90 : vector<32x32xf32>
    %92 = arith.truncf %91 : vector<32x32xf32> to vector<32x32xbf16>
    %cst_36 = arith.constant dense<0.000000e+00> : vector<1x32xf32>
    %93 = tpu.matmul %38, %92, %cst_36 {dimension_numbers = #tpu.dot_dimension_numbers<[1], [1], [0], [0], [0, 0, 1, 0], [], []>} : vector<1x32xbf16>, vector<32x32xbf16>, vector<1x32xf32> -> vector<1x32xf32>
    %c7 = arith.constant 7 : index
    %c0_37 = arith.constant 0 : index
    %94 = vector.load %arg13[%c7, %c0_37] : memref<8x32xf32, #tpu.memory_space<vmem>>, vector<1x32xf32>
    tpu.vector_store %arg13[%c7, %c0_37], %93 {strides = array<i32>} : memref<8x32xf32, #tpu.memory_space<vmem>>, vector<1x32xf32>,
    %c0_38 = arith.constant 0 : index
    %c0_39 = arith.constant 0 : index
    %95 = vector.load %arg13[%c0_38, %c0_39] : memref<8x32xf32, #tpu.memory_space<vmem>>, vector<8x32xf32>
    %c0_40 = arith.constant 0 : index
    %c0_41 = arith.constant 0 : index
    %96 = vector.load %arg10[%c0_40, %c0_41] : memref<8x1xf32, #tpu.memory_space<vmem>>, vector<8x1xf32>
    %cst_42 = arith.constant dense<0xFF800000> : vector<8xf32>
    %97 = vector.multi_reduction <maximumf>, %95, %cst_42 [1] : vector<8x32xf32> to vector<8xf32>
    %98 = vector.shape_cast %97 : vector<8xf32> to vector<8x1xf32>
    %99 = arith.maximumf %96, %98 : vector<8x1xf32>
    %100 = arith.subf %96, %99 : vector<8x1xf32>
    %101 = math.exp %100 : vector<8x1xf32>
    %102 = vector.broadcast %99 : vector<8x1xf32> to vector<8x32xf32>
    %103 = arith.subf %95, %102 : vector<8x32xf32>
    %104 = math.exp %103 : vector<8x32xf32>
    %c0_43 = arith.constant 0 : index
    %c0_44 = arith.constant 0 : index
    %105 = vector.load %arg11[%c0_43, %c0_44] : memref<8x1xf32, #tpu.memory_space<vmem>>, vector<8x1xf32>
    %106 = arith.mulf %101, %105 : vector<8x1xf32>
    %cst_45 = arith.constant dense<0.000000e+00> : vector<8xf32>
    %107 = vector.multi_reduction <add>, %104, %cst_45 [1] : vector<8x32xf32> to vector<8xf32>
    %108 = vector.shape_cast %107 : vector<8xf32> to vector<8x1xf32>
    %109 = arith.addf %106, %108 : vector<8x1xf32>
    %c0_46 = arith.constant 0 : index
    %c0_47 = arith.constant 0 : index
    %110 = vector.load %arg11[%c0_46, %c0_47] : memref<8x1xf32, #tpu.memory_space<vmem>>, vector<8x1xf32>
    tpu.vector_store %arg11[%c0_46, %c0_47], %109 {strides = array<i32>} : memref<8x1xf32, #tpu.memory_space<vmem>>, vector<8x1xf32>,
    %c0_48 = arith.constant 0 : index
    %c0_49 = arith.constant 0 : index
    %111 = vector.load %arg12[%c0_48, %c0_49] : memref<8x32xf32, #tpu.memory_space<vmem>>, vector<8x32xf32>
    %112 = vector.broadcast %101 : vector<8x1xf32> to vector<8x32xf32>
    %113 = arith.mulf %112, %111 : vector<8x32xf32>
    %114 = arith.truncf %104 : vector<8x32xf32> to vector<8x32xbf16>
    %115 = arith.truncf %34 : vector<32x32xf32> to vector<32x32xbf16>
    %cst_50 = arith.constant dense<0.000000e+00> : vector<8x32xf32>
    %116 = tpu.matmul %114, %115, %cst_50 {dimension_numbers = #tpu.dot_dimension_numbers<[1], [0], [0], [1], [0, 0, 1, 1], [], []>} : vector<8x32xbf16>, vector<32x32xbf16>, vector<8x32xf32> -> vector<8x32xf32>
    %117 = arith.addf %113, %116 : vector<8x32xf32>
    %c0_51 = arith.constant 0 : index
    %c0_52 = arith.constant 0 : index
    %118 = vector.load %arg12[%c0_51, %c0_52] : memref<8x32xf32, #tpu.memory_space<vmem>>, vector<8x32xf32>
    tpu.vector_store %arg12[%c0_51, %c0_52], %117 {strides = array<i32>} : memref<8x32xf32, #tpu.memory_space<vmem>>, vector<8x32xf32>,
    %c0_53 = arith.constant 0 : index
    %c0_54 = arith.constant 0 : index
    %119 = vector.load %arg10[%c0_53, %c0_54] : memref<8x1xf32, #tpu.memory_space<vmem>>, vector<8x1xf32>
    tpu.vector_store %arg10[%c0_53, %c0_54], %99 {strides = array<i32>} : memref<8x1xf32, #tpu.memory_space<vmem>>, vector<8x1xf32>,
    %c1_i32 = arith.constant 1 : i32
    %120 = arith.cmpi eq, %arg1, %c1_i32 : i32
    %121 = arith.extui %120 : i1 to i32
    %c0_i32_55 = arith.constant 0 : i32
    %122 = arith.cmpi ne, %121, %c0_i32_55 : i32
    scf.if %122 {
      %c0_56 = arith.constant 0 : index
      %c0_57 = arith.constant 0 : index
      %123 = vector.load %arg12[%c0_56, %c0_57] : memref<8x32xf32, #tpu.memory_space<vmem>>, vector<8x32xf32>
      %c0_58 = arith.constant 0 : index
      %c0_59 = arith.constant 0 : index
      %124 = vector.load %arg11[%c0_58, %c0_59] : memref<8x1xf32, #tpu.memory_space<vmem>>, vector<8x1xf32>
      %125 = vector.broadcast %124 : vector<8x1xf32> to vector<8x32xf32>
      %126 = arith.divf %123, %125 : vector<8x32xf32>
      %c0_60 = arith.constant 0 : index
      %c0_61 = arith.constant 0 : index
      %c0_62 = arith.constant 0 : index
      %127 = vector.load %arg9[%c0_60, %c0_61, %c0_62] : memref<1x8x32xf32, #tpu.memory_space<vmem>>, vector<1x8x32xf32>
      %128 = vector.shape_cast %127 : vector<1x8x32xf32> to vector<8x32xf32>
      %129 = vector.shape_cast %126 : vector<8x32xf32> to vector<1x8x32xf32>
      tpu.vector_store %arg9[%c0_60, %c0_61, %c0_62], %129 {strides = array<i32>} : memref<1x8x32xf32, #tpu.memory_space<vmem>>, vector<1x8x32xf32>,
    } else {
    }
    return
  }
  func.func @transform_0(%arg0: i32, %arg1: i32) -> (i32, i32, i32) {
    %c0_i32 = arith.constant 0 : i32
    %c0_i32_0 = arith.constant 0 : i32
    return %arg0, %arg1, %c0_i32 : i32, i32, i32
  }
  func.func @transform_1(%arg0: i32, %arg1: i32) -> (i32, i32) {
    %c0_i32 = arith.constant 0 : i32
    %c0_i32_0 = arith.constant 0 : i32
    %c0_i32_1 = arith.constant 0 : i32
    return %c0_i32, %c0_i32_0 : i32, i32
  }
  func.func @transform_2(%arg0: i32, %arg1: i32) -> (i32, i32) {
    %c0_i32 = arith.constant 0 : i32
    %c0_i32_0 = arith.constant 0 : i32
    %c0_i32_1 = arith.constant 0 : i32
    return %c0_i32, %c0_i32_0 : i32, i32
  }
  func.func @transform_3(%arg0: i32, %arg1: i32) -> (i32, i32) {
    %c0_i32 = arith.constant 0 : i32
    %c0_i32_0 = arith.constant 0 : i32
    %c0_i32_1 = arith.constant 0 : i32
    return %c0_i32, %c0_i32_0 : i32, i32
  }
  func.func @transform_4(%arg0: i32, %arg1: i32) -> (i32, i32) {
    %c0_i32 = arith.constant 0 : i32
    %c0_i32_0 = arith.constant 0 : i32
    %c0_i32_1 = arith.constant 0 : i32
    return %c0_i32, %c0_i32_0 : i32, i32
  }
  func.func @transform_5(%arg0: i32, %arg1: i32) -> (i32, i32, i32) {
    %c0_i32 = arith.constant 0 : i32
    %c0_i32_0 = arith.constant 0 : i32
    %c0_i32_1 = arith.constant 0 : i32
    return %arg0, %c0_i32, %c0_i32_0 : i32, i32, i32
  }
  func.func @transform_6(%arg0: i32, %arg1: i32) -> (i32, i32) {
    %c0_i32 = arith.constant 0 : i32
    %c0_i32_0 = arith.constant 0 : i32
    %c0_i32_1 = arith.constant 0 : i32
    return %c0_i32, %c0_i32_0 : i32, i32
  }
  func.func @transform_7(%arg0: i32, %arg1: i32) -> (i32, i32, i32) {
    %c0_i32 = arith.constant 0 : i32
    %c0_i32_0 = arith.constant 0 : i32
    %c0_i32_1 = arith.constant 0 : i32
    return %arg0, %c0_i32, %c0_i32_0 : i32, i32, i32
  }
}

</mosaic_0001>

<llo_original>
// kernel: pvam_forward.6
$region0: #{pvam_forward.6}
  #allocation0 [shape = 'u32[]', space=smem, size = 0x4, offset = 0x4, fixed_abs, tag = 'smem constant byte address 0x4 - core index']
  #allocation1 [shape = 'u32[144,128]{1,0:T(1,128)}', space=vmem, size = 0x12000, scoped, tag = 'internal scratch']
  %s0 = inlined_call_operand.vmem [shape: f32[128,32], index: 0, kind: input, shape index: {}]
  %s1 = inlined_call_operand.vmem [shape: f32[1,32], index: 1, kind: input, shape index: {}]
  %s2 = inlined_call_operand.vmem [shape: f32[1,32], index: 2, kind: input, shape index: {}]
  %s3 = inlined_call_operand.vmem [shape: bf16[32,32], index: 3, kind: input, shape index: {}]
  %s4 = inlined_call_operand.vmem [shape: f32[1,32], index: 4, kind: input, shape index: {}]
  %s5 = inlined_call_operand.vmem [shape: bf16[32,32], index: 5, kind: input, shape index: {}]
  %s6 = inlined_call_operand.vmem [shape: f32[1,32], index: 6, kind: input, shape index: {}]
  %s7 = inlined_call_operand.vmem [shape: f32[128,32], index: 7, kind: output, shape index: {}]
  %s8 = sld [smem:[#allocation0]]
  $region61: #{pvam_forward.6} parent=0
    _
  %s10 = ssub.s32 1, %s8
  %s11 = scalar_select 0, %s10, %s8
  loop: start=0, step=1, limit=6
  $region2: #{pvam_forward.6} parent=0 // loop_pre_header
    _
  $region3: #{pvam_forward.6} parent=0 // loop_header
    %s13 = sphi 0, %s17
    %p14 = scmp.ge.s32.totalorder %s13, 6
    %s23 = sphi 0, %s25
    %s26 = sphi 0, %s23
    %s27 = sphi 0, %s26
    %s43 = sphi 0, %s27
    %s47 = sphi 0, %s47
    %s49 = sphi 0, %s47
    %s50 = sphi 0, %s49
    %s64 = sphi 0, %s50
    %s68 = sphi 0, %s68
    %s70 = sphi 0, %s68
    %s71 = sphi 0, %s70
    %s85 = sphi 0, %s71
    %s89 = sphi 0, %s89
    %s91 = sphi 0, %s89
    %s92 = sphi 0, %s91
    %s106 = sphi 0, %s92
    %s110 = sphi 0, %s110
    %s112 = sphi 0, %s110
    %s113 = sphi 0, %s112
    %s127 = sphi 0, %s113
    %s131 = sphi 0, %s131
    %s133 = sphi 0, %s131
    %s134 = sphi 0, %s133
    %s148 = sphi 0, %s134
    %s152 = sphi 0, %s152
    %s154 = sphi 0, %s152
    %s155 = sphi 0, %s154
    %s169 = sphi 0, %s155
    %s175 = sphi 0, %s177
    %s178 = sphi 0, %s175
    %s179 = sphi 0, %s178
    %s195 = sphi 0, %s179
  $region4: #{pvam_forward.6} parent=0 // loop_header_branch
    %16 = sbr.rel (%p14) target = $region8
  $region5: #{pvam_forward.6} parent=0 // loop_body
    %s18 = ssub.s32 %s13, 1
    %s19 = ssub.s32 %s13, 2
    %s20 = sadd.s32 %s13, 1
    %s21 = ssub.s32 %s13, %s20
    %p22 = scmp.eq.s32.totalorder %s21, 0
    %s24 = sadd.s32 %s23, 1
    %s25 = scalar_select %p22, %s23, %s24
    %p28 = pneg %p22
    %p29 = scmp.eq.s32.totalorder %s13, 3
    %p30 = por %p28, %p29
    %p31 = scmp.ne.s32.totalorder %s23, %s26
    %p32 = scmp.eq.s32.totalorder %s13, 0
    %p33 = por %p31, %p32
    %p34 = scmp.ne.s32.totalorder %s23, %s26
    %p35 = scmp.eq.s32.totalorder %s18, 3
    %p36 = por %p34, %p35
    %p37 = scmp.ne.s32.totalorder %s26, %s27
    %p38 = scmp.eq.s32.totalorder %s18, 0
    %p39 = por %p37, %p38
    %p40 = scmp.ne.s32.totalorder %s26, %s27
    %p41 = scmp.eq.s32.totalorder %s19, 3
    %p42 = por %p40, %p41
    %p44 = scmp.ne.s32.totalorder %s27, %s43
    %p45 = scmp.eq.s32.totalorder %s19, 0
    %p46 = por %p44, %p45
    %s48 = sadd.s32 %s47, 1
    %p51 = scmp.eq.s32.totalorder %s13, 3
    %p52 = scmp.ne.s32.totalorder %s47, %s49
    %p53 = scmp.eq.s32.totalorder %s13, 0
    %p54 = por %p52, %p53
    %p55 = scmp.ne.s32.totalorder %s47, %s49
    %p56 = scmp.eq.s32.totalorder %s18, 3
    %p57 = por %p55, %p56
    %p58 = scmp.ne.s32.totalorder %s49, %s50
    %p59 = scmp.eq.s32.totalorder %s18, 0
    %p60 = por %p58, %p59
    %p61 = scmp.ne.s32.totalorder %s49, %s50
    %p62 = scmp.eq.s32.totalorder %s19, 3
    %p63 = por %p61, %p62
    %p65 = scmp.ne.s32.totalorder %s50, %s64
    %p66 = scmp.eq.s32.totalorder %s19, 0
    %p67 = por %p65, %p66
    %s69 = sadd.s32 %s68, 1
    %p72 = scmp.eq.s32.totalorder %s13, 3
    %p73 = scmp.ne.s32.totalorder %s68, %s70
    %p74 = scmp.eq.s32.totalorder %s13, 0
    %p75 = por %p73, %p74
    %p76 = scmp.ne.s32.totalorder %s68, %s70
    %p77 = scmp.eq.s32.totalorder %s18, 3
    %p78 = por %p76, %p77
    %p79 = scmp.ne.s32.totalorder %s70, %s71
    %p80 = scmp.eq.s32.totalorder %s18, 0
    %p81 = por %p79, %p80
    %p82 = scmp.ne.s32.totalorder %s70, %s71
    %p83 = scmp.eq.s32.totalorder %s19, 3
    %p84 = por %p82, %p83
    %p86 = scmp.ne.s32.totalorder %s71, %s85
    %p87 = scmp.eq.s32.totalorder %s19, 0
    %p88 = por %p86, %p87
    %s90 = sadd.s32 %s89, 1
    %p93 = scmp.eq.s32.totalorder %s13, 3
    %p94 = scmp.ne.s32.totalorder %s89, %s91
    %p95 = scmp.eq.s32.totalorder %s13, 0
    %p96 = por %p94, %p95
    %p97 = scmp.ne.s32.totalorder %s89, %s91
    %p98 = scmp.eq.s32.totalorder %s18, 3
    %p99 = por %p97, %p98
    %p100 = scmp.ne.s32.totalorder %s91, %s92
    %p101 = scmp.eq.s32.totalorder %s18, 0
    %p102 = por %p100, %p101
    %p103 = scmp.ne.s32.totalorder %s91, %s92
    %p104 = scmp.eq.s32.totalorder %s19, 3
    %p105 = por %p103, %p104
    %p107 = scmp.ne.s32.totalorder %s92, %s106
    %p108 = scmp.eq.s32.totalorder %s19, 0
    %p109 = por %p107, %p108
    %s111 = sadd.s32 %s110, 1
    %p114 = scmp.eq.s32.totalorder %s13, 3
    %p115 = scmp.ne.s32.totalorder %s110, %s112
    %p116 = scmp.eq.s32.totalorder %s13, 0
    %p117 = por %p115, %p116
    %p118 = scmp.ne.s32.totalorder %s110, %s112
    %p119 = scmp.eq.s32.totalorder %s18, 3
    %p120 = por %p118, %p119
    %p121 = scmp.ne.s32.totalorder %s112, %s113
    %p122 = scmp.eq.s32.totalorder %s18, 0
    %p123 = por %p121, %p122
    %p124 = scmp.ne.s32.totalorder %s112, %s113
    %p125 = scmp.eq.s32.totalorder %s19, 3
    %p126 = por %p124, %p125
    %p128 = scmp.ne.s32.totalorder %s113, %s127
    %p129 = scmp.eq.s32.totalorder %s19, 0
    %p130 = por %p128, %p129
    %s132 = sadd.s32 %s131, 1
    %p135 = scmp.eq.s32.totalorder %s13, 3
    %p136 = scmp.ne.s32.totalorder %s131, %s133
    %p137 = scmp.eq.s32.totalorder %s13, 0
    %p138 = por %p136, %p137
    %p139 = scmp.ne.s32.totalorder %s131, %s133
    %p140 = scmp.eq.s32.totalorder %s18, 3
    %p141 = por %p139, %p140
    %p142 = scmp.ne.s32.totalorder %s133, %s134
    %p143 = scmp.eq.s32.totalorder %s18, 0
    %p144 = por %p142, %p143
    %p145 = scmp.ne.s32.totalorder %s133, %s134
    %p146 = scmp.eq.s32.totalorder %s19, 3
    %p147 = por %p145, %p146
    %p149 = scmp.ne.s32.totalorder %s134, %s148
    %p150 = scmp.eq.s32.totalorder %s19, 0
    %p151 = por %p149, %p150
    %s153 = sadd.s32 %s152, 1
    %p156 = scmp.eq.s32.totalorder %s13, 3
    %p157 = scmp.ne.s32.totalorder %s152, %s154
    %p158 = scmp.eq.s32.totalorder %s13, 0
    %p159 = por %p157, %p158
    %p160 = scmp.ne.s32.totalorder %s152, %s154
    %p161 = scmp.eq.s32.totalorder %s18, 3
    %p162 = por %p160, %p161
    %p163 = scmp.ne.s32.totalorder %s154, %s155
    %p164 = scmp.eq.s32.totalorder %s18, 0
    %p165 = por %p163, %p164
    %p166 = scmp.ne.s32.totalorder %s154, %s155
    %p167 = scmp.eq.s32.totalorder %s19, 3
    %p168 = por %p166, %p167
    %p170 = scmp.ne.s32.totalorder %s155, %s169
    %p171 = scmp.eq.s32.totalorder %s19, 0
    %p172 = por %p170, %p171
    %s173 = ssub.s32 %s13, %s20
    %p174 = scmp.eq.s32.totalorder %s173, 0
    %s176 = sadd.s32 %s175, 1
    %s177 = scalar_select %p174, %s175, %s176
    %p180 = pneg %p174
    %p181 = scmp.eq.s32.totalorder %s13, 3
    %p182 = por %p180, %p181
    %p183 = scmp.ne.s32.totalorder %s175, %s178
    %p184 = scmp.eq.s32.totalorder %s13, 0
    %p185 = por %p183, %p184
    %p186 = scmp.ne.s32.totalorder %s175, %s178
    %p187 = scmp.eq.s32.totalorder %s18, 3
    %p188 = por %p186, %p187
    %p189 = scmp.ne.s32.totalorder %s178, %s179
    %p190 = scmp.eq.s32.totalorder %s18, 0
    %p191 = por %p189, %p190
    %p192 = scmp.ne.s32.totalorder %s178, %s179
    %p193 = scmp.eq.s32.totalorder %s19, 3
    %p194 = por %p192, %p193
    %p196 = scmp.ne.s32.totalorder %s179, %s195
    %p197 = scmp.eq.s32.totalorder %s19, 0
    %p198 = por %p196, %p197
    %p199 = scmp.le.s32.totalorder 1, %s13
    %p200 = scmp.lt.s32.totalorder %s13, 5
    %p201 = pnand %p199, %p200
    %p202 = pneg %p201
    // Predicated region
    $region9: #{pvam_forward.6} parent=5 // pred_check
      _
    $region10: #{pvam_forward.6} parent=5 // pred_check_branch
      %204 = sbr.rel (%p201) target = $region12
    $region11: #{pvam_forward.6} parent=5 // pred_region
      %s205 = ssub.s32 %s13, 1
      // Predicated region
      $region13: #{pvam_forward.6} parent=11 // pred_check
        %p206 = pneg %p60
      $region14: #{pvam_forward.6} parent=11 // pred_check_branch
        %208 = sbr.rel (%p206) target = $region16
      $region15: #{pvam_forward.6} parent=11 // pred_region
        _
      $region16: #{pvam_forward.6} parent=11 // pred_fallthru
        _
      // Predicated region
      $region17: #{pvam_forward.6} parent=11 // pred_check
        %p209 = pneg %p81
      $region18: #{pvam_forward.6} parent=11 // pred_check_branch
        %211 = sbr.rel (%p209) target = $region20
      $region19: #{pvam_forward.6} parent=11 // pred_region
        _
      $region20: #{pvam_forward.6} parent=11 // pred_fallthru
        _
      // Predicated region
      $region21: #{pvam_forward.6} parent=11 // pred_check
        %p212 = pneg %p102
      $region22: #{pvam_forward.6} parent=11 // pred_check_branch
        %214 = sbr.rel (%p212) target = $region24
      $region23: #{pvam_forward.6} parent=11 // pred_region
        _
      $region24: #{pvam_forward.6} parent=11 // pred_fallthru
        _
      // Predicated region
      $region25: #{pvam_forward.6} parent=11 // pred_check
        %p215 = pneg %p123
      $region26: #{pvam_forward.6} parent=11 // pred_check_branch
        %217 = sbr.rel (%p215) target = $region28
      $region27: #{pvam_forward.6} parent=11 // pred_region
        _
      $region28: #{pvam_forward.6} parent=11 // pred_fallthru
        _
      // Predicated region
      $region29: #{pvam_forward.6} parent=11 // pred_check
        %p218 = pneg %p144
      $region30: #{pvam_forward.6} parent=11 // pred_check_branch
        %220 = sbr.rel (%p218) target = $region32
      $region31: #{pvam_forward.6} parent=11 // pred_region
        _
      $region32: #{pvam_forward.6} parent=11 // pred_fallthru
        _
      // Predicated region
      $region33: #{pvam_forward.6} parent=11 // pred_check
        %p221 = pneg %p165
      $region34: #{pvam_forward.6} parent=11 // pred_check_branch
        %223 = sbr.rel (%p221) target = $region36
      $region35: #{pvam_forward.6} parent=11 // pred_region
        _
      $region36: #{pvam_forward.6} parent=11 // pred_fallthru
        _
    $region12: #{pvam_forward.6} parent=5 // pred_fallthru
      _
    %p224 = scmp.lt.s32.totalorder %s13, 4
    // Predicated region
    $region37: #{pvam_forward.6} parent=5 // pred_check
      %p225 = pneg %p224
    $region38: #{pvam_forward.6} parent=5 // pred_check_branch
      %227 = sbr.rel (%p225) target = $region40
    $region39: #{pvam_forward.6} parent=5 // pred_region
      // Predicated region
      $region41: #{pvam_forward.6} parent=39 // pred_check
        %p228 = pneg %p33
      $region42: #{pvam_forward.6} parent=39 // pred_check_branch
        %230 = sbr.rel (%p228) target = $region44
      $region43: #{pvam_forward.6} parent=39 // pred_region
        %s231 = smul.u32 4, %s13
        %p232 = scmp.lt.s32.totalorder %s231, 15
        %s233 = scalar_select %p232, %s231, 15
        %s234 = smul.addr %s233, 8
        %s235 = scalar_lea.vmem %s0, %s234
        %s236 = smul.u32 4, %s13
      $region44: #{pvam_forward.6} parent=39 // pred_fallthru
        _
    $region40: #{pvam_forward.6} parent=5 // pred_fallthru
      _
    %p237 = scmp.le.s32.totalorder 1, %s13
    %p238 = scmp.lt.s32.totalorder %s13, 5
    %p239 = pnand %p237, %p238
    %p240 = pneg %p239
    // Predicated region
    $region45: #{pvam_forward.6} parent=5 // pred_check
      _
    $region46: #{pvam_forward.6} parent=5 // pred_check_branch
      %242 = sbr.rel (%p239) target = $region48
    $region47: #{pvam_forward.6} parent=5 // pred_region
      %s243 = ssub.s32 %s13, 1
      %s244 = smul.u32 4, %s18
      %p245 = scmp.lt.s32.totalorder %s244, 15
      %s246 = scalar_select %p245, %s244, 15
      %s247 = smul.addr %s246, 8
      %s248 = scalar_lea.vmem %s0, %s247
      %p249 = pneg %p39
      %p250 = pneg %p36
      %p251 = pneg %p60
      %p252 = pneg %p57
      %p253 = pneg %p81
      %p254 = pneg %p78
      %p255 = pneg %p102
      %p256 = pneg %p99
      %p257 = pneg %p123
      %p258 = pneg %p120
      %p259 = pneg %p144
      %p260 = pneg %p141
      %p261 = pneg %p165
      %p262 = pneg %p162
      %p263 = pneg %p191
      %p264 = pneg %p188
      %s265 = smul.u32 4, %s18
      %p266 = scmp.lt.s32.totalorder %s265, 15
      %s267 = scalar_select %p266, %s265, 15
      %s268 = smul.addr %s267, 8
      %s269 = scalar_lea.vmem %s7, %s268
      %s270 = smul.u32 4, %s18
      %p271 = scmp.lt.s32.totalorder %s270, 15
      %s272 = scalar_select %p271, %s270, 15
      %s273 = smul.addr %s272, 8
      %s274 = scalar_lea.vmem %s0, %s273
      %s275 = smul.u32 4, %s18
      %s276 = smul.u32 4, %s18
      %p277 = scmp.lt.s32.totalorder %s276, 15
      %s278 = scalar_select %p277, %s276, 15
      %s279 = smul.addr %s278, 8
      %s280 = scalar_lea.vmem %s7, %s279
      %s281 = smul.u32 4, %s18
      %v283 = vld [vmem:[%s274] sm:$0xff]
      %v284 = vld [vmem:[%s274 + $0x8] sm:$0xff]
      %v285 = vld [vmem:[%s274 + $0x10] sm:$0xff]
      %v286 = vld [vmem:[%s274 + $0x18] sm:$0xff]
      %vm287 = vcmask 261120
      %v288 = vsel %vm287, %v283, 0.0
      %289 = vadd.xlane.f32.xlu0 %v288
      %v290 = vpop.xlane.xlu0 %289
      %v291 = vsel %vm287, %v284, 0.0
      %292 = vadd.xlane.f32.xlu0 %v291
      %v293 = vpop.xlane.xlu0 %292
      %v294 = vsel %vm287, %v285, 0.0
      %295 = vadd.xlane.f32.xlu0 %v294
      %v296 = vpop.xlane.xlu0 %295
      %v297 = vsel %vm287, %v286, 0.0
      %298 = vadd.xlane.f32.xlu0 %v297
      %v299 = vpop.xlane.xlu0 %298
      %v300 = vrcp.pop 32.0
      %v301 = vmul.f32 %v290, %v300
      %v302 = vmul.f32 %v293, %v300
      %v303 = vmul.f32 %v296, %v300
      %v304 = vmul.f32 %v299, %v300
      %v305 = vsub.f32 %v283, %v301
      %v306 = vsub.f32 %v284, %v302
      %v307 = vsub.f32 %v285, %v303
      %v308 = vsub.f32 %v286, %v304
      %v309 = vmul.f32 %v305, %v305
      %v310 = vmul.f32 %v306, %v306
      %v311 = vmul.f32 %v307, %v307
      %v312 = vmul.f32 %v308, %v308
      %v313 = vsel %vm287, %v309, 0.0
      %314 = vadd.xlane.f32.xlu0 %v313
      %v315 = vpop.xlane.xlu0 %314
      %v316 = vsel %vm287, %v310, 0.0
      %317 = vadd.xlane.f32.xlu0 %v316
      %v318 = vpop.xlane.xlu0 %317
      %v319 = vsel %vm287, %v311, 0.0
      %320 = vadd.xlane.f32.xlu0 %v319
      %v321 = vpop.xlane.xlu0 %320
      %v322 = vsel %vm287, %v312, 0.0
      %323 = vadd.xlane.f32.xlu0 %v322
      %v324 = vpop.xlane.xlu0 %323
      %v325 = vmul.f32 %v315, %v300
      %v326 = vmul.f32 %v318, %v300
      %v327 = vmul.f32 %v321, %v300
      %v328 = vmul.f32 %v324, %v300
      %v329 = vadd.f32 %v325, 1e-05
      %v330 = vadd.f32 %v326, 1e-05
      %v331 = vadd.f32 %v327, 1e-05
      %v332 = vadd.f32 %v328, 1e-05
      %v333 = vrsqrt.pop %v329
      %v334 = vrsqrt.pop %v330
      %v335 = vrsqrt.pop %v331
      %v336 = vrsqrt.pop %v332
      %v337 = vmul.f32 %v305, %v333
      %v338 = vmul.f32 %v306, %v334
      %v339 = vmul.f32 %v307, %v335
      %v340 = vmul.f32 %v308, %v336
      %v341 = vld [vmem:[%s1] sm:$0x1]
      %v343 = vlaneseq
      %v344 = vshrl.u32 %v343, 7
      %v345 = vsub.s32 0, %v344
      %v346 = vrot.slane %v341, %v345
      %v348 = vmul.f32 %v337, %v346
      %v349 = vmul.f32 %v338, %v346
      %v350 = vmul.f32 %v339, %v346
      %v351 = vmul.f32 %v340, %v346
      %v352 = vld [vmem:[%s2] sm:$0x1]
      %v354 = vlaneseq
      %v355 = vshrl.u32 %v354, 7
      %v356 = vsub.s32 0, %v355
      %v357 = vrot.slane %v352, %v356
      %v359 = vadd.f32 %v348, %v357
      %v360 = vadd.f32 %v349, %v357
      %v361 = vadd.f32 %v350, %v357
      %v362 = vadd.f32 %v351, %v357
      %v363 = vpack.c.bf16 %v360, %v359
      %v364 = vpack.c.bf16 %v362, %v361
      %v365 = vld [vmem:[%s3] sm:$0xf]
      %v366 = vld [vmem:[%s3 + $0x4] sm:$0xf]
      %v367 = vld [vmem:[%s3 + $0x8] sm:$0xf]
      %v368 = vld [vmem:[%s3 + $0xc] sm:$0xf]
      %v369 = vld [vmem:[%s4] sm:$0x1]
      %v371 = vlaneseq
      %v372 = vshrl.u32 %v371, 7
      %v373 = vsub.s32 0, %v372
      %v374 = vrot.slane %v369, %v373
      %v380 = vunpack.c.l.b16 %v365
      %v381 = vunpack.c.l.b16 %v366
      %v382 = vunpack.c.l.b16 %v367
      %v383 = vunpack.c.l.b16 %v368
      %v384 = vpack.c.b16 %v381, %v380
      %v385 = vpack.c.b16 %v383, %v382
      %v389 = vsel %vm287, %v363, 0
      %v392 = vsel %vm287, %v364, 0
      %394 = vmatprep.subr.bf16.mxu0 0
      %395 = vmatpush1.bf16.msra.mxu0 %v384
      %396 = vmatprep.subr.bf16.mxu0 0
      %397 = vmatpush1.bf16.msra.mxu0 %v385
      %398 = vmatprep.subr.bf16.mxu0 0
      %399 = vmatpush1.bf16.msra.mxu0 0
      %400 = vmatprep.subr.bf16.mxu0 0
      %401 = vmatpush1.bf16.msra.mxu0 0
      %402 = vmatprep.subr.bf16.mxu0 0
      %403 = vmatpush1.bf16.msra.mxu0 0
      %404 = vmatprep.subr.bf16.mxu0 0
      %405 = vmatpush1.bf16.msra.mxu0 0
      %406 = vmatprep.subr.bf16.mxu0 0
      %407 = vmatpush1.bf16.msra.mxu0 0
      %408 = vmatprep.subr.bf16.mxu0 0
      %409 = vmatpush1.bf16.msra.mxu0 0
      %410 = vmatprep.subr.bf16.mxu0 0
      %411 = vmatpush1.bf16.msra.mxu0 0
      %412 = vmatprep.subr.bf16.mxu0 0
      %413 = vmatpush1.bf16.msra.mxu0 0
      %414 = vmatprep.subr.bf16.mxu0 0
      %415 = vmatpush1.bf16.msra.mxu0 0
      %416 = vmatprep.subr.bf16.mxu0 0
      %417 = vmatpush1.bf16.msra.mxu0 0
      %418 = vmatprep.subr.bf16.mxu0 0
      %419 = vmatpush1.bf16.msra.mxu0 0
      %420 = vmatprep.subr.bf16.mxu0 0
      %421 = vmatpush1.bf16.msra.mxu0 0
      %422 = vmatprep.subr.bf16.mxu0 0
      %423 = vmatpush1.bf16.msra.mxu0 0
      %424 = vmatprep.subr.bf16.mxu0 0
      %425 = vmatpush1.bf16.msra.mxu0 0
      %426 = vmatprep.mubr.bf16.mxu0 0
      %427 = vmatmul.mubr.bf16.gmra.mrb[0].mxu0 %v389
      %v428 = vpop.f32.mrb[0].mxu0
      %v429 = vadd.f32 %v374, %v428
      %v430 = vpop.f32.mrb[0].mxu0
      %v431 = vpop.f32.mrb[0].mxu0
      %v432 = vadd.f32 %v374, %v431
      %v433 = vpop.f32.mrb[0].mxu0
      %434 = vmatprep.mubr.bf16.mxu0 0
      %435 = vmatmul.mubr.bf16.gmra.mrb[0].mxu0 %v392
      %v436 = vpop.f32.mrb[0].mxu0
      %v437 = vadd.f32 %v374, %v436
      %v438 = vpop.f32.mrb[0].mxu0
      %v439 = vpop.f32.mrb[0].mxu0
      %v440 = vadd.f32 %v374, %v439
      %v441 = vpop.f32.mrb[0].mxu0
      %442 = vdwg.mxu0
      %v443 = vmax.f32 %v429, 0.0
      %v444 = vmax.f32 %v432, 0.0
      %v445 = vmax.f32 %v437, 0.0
      %v446 = vmax.f32 %v440, 0.0
      %v447 = vpack.c.bf16 %v444, %v443
      %v448 = vpack.c.bf16 %v446, %v445
      %v449 = vld [vmem:[%s5] sm:$0xf]
      %v450 = vld [vmem:[%s5 + $0x4] sm:$0xf]
      %v451 = vld [vmem:[%s5 + $0x8] sm:$0xf]
      %v452 = vld [vmem:[%s5 + $0xc] sm:$0xf]
      %v457 = vunpack.c.l.b16 %v449
      %v458 = vunpack.c.l.b16 %v450
      %v459 = vunpack.c.l.b16 %v451
      %v460 = vunpack.c.l.b16 %v452
      %v461 = vpack.c.b16 %v458, %v457
      %v462 = vpack.c.b16 %v460, %v459
      %v466 = vsel %vm287, %v447, 0
      %v469 = vsel %vm287, %v448, 0
      %471 = vmatprep.subr.bf16.mxu0 0
      %472 = vmatpush1.bf16.msra.mxu0 %v461
      %473 = vmatprep.subr.bf16.mxu0 0
      %474 = vmatpush1.bf16.msra.mxu0 %v462
      %475 = vmatprep.subr.bf16.mxu0 0
      %476 = vmatpush1.bf16.msra.mxu0 0
      %477 = vmatprep.subr.bf16.mxu0 0
      %478 = vmatpush1.bf16.msra.mxu0 0
      %479 = vmatprep.subr.bf16.mxu0 0
      %480 = vmatpush1.bf16.msra.mxu0 0
      %481 = vmatprep.subr.bf16.mxu0 0
      %482 = vmatpush1.bf16.msra.mxu0 0
      %483 = vmatprep.subr.bf16.mxu0 0
      %484 = vmatpush1.bf16.msra.mxu0 0
      %485 = vmatprep.subr.bf16.mxu0 0
      %486 = vmatpush1.bf16.msra.mxu0 0
      %487 = vmatprep.subr.bf16.mxu0 0
      %488 = vmatpush1.bf16.msra.mxu0 0
      %489 = vmatprep.subr.bf16.mxu0 0
      %490 = vmatpush1.bf16.msra.mxu0 0
      %491 = vmatprep.subr.bf16.mxu0 0
      %492 = vmatpush1.bf16.msra.mxu0 0
      %493 = vmatprep.subr.bf16.mxu0 0
      %494 = vmatpush1.bf16.msra.mxu0 0
      %495 = vmatprep.subr.bf16.mxu0 0
      %496 = vmatpush1.bf16.msra.mxu0 0
      %497 = vmatprep.subr.bf16.mxu0 0
      %498 = vmatpush1.bf16.msra.mxu0 0
      %499 = vmatprep.subr.bf16.mxu0 0
      %500 = vmatpush1.bf16.msra.mxu0 0
      %501 = vmatprep.subr.bf16.mxu0 0
      %502 = vmatpush1.bf16.msra.mxu0 0
      %503 = vmatprep.mubr.bf16.mxu0 0
      %504 = vmatmul.mubr.bf16.gmra.mrb[0].mxu0 %v466
      %v505 = vpop.f32.mrb[0].mxu0
      %v506 = vadd.f32 0.0, %v505
      %v507 = vpop.f32.mrb[0].mxu0
      %v508 = vpop.f32.mrb[0].mxu0
      %v509 = vadd.f32 0.0, %v508
      %v510 = vpop.f32.mrb[0].mxu0
      %511 = vmatprep.mubr.bf16.mxu0 0
      %512 = vmatmul.mubr.bf16.gmra.mrb[0].mxu0 %v469
      %v513 = vpop.f32.mrb[0].mxu0
      %v514 = vadd.f32 0.0, %v513
      %v515 = vpop.f32.mrb[0].mxu0
      %v516 = vpop.f32.mrb[0].mxu0
      %v517 = vadd.f32 0.0, %v516
      %v518 = vpop.f32.mrb[0].mxu0
      %519 = vdwg.mxu0
      %v520 = vadd.f32 %v283, %v506
      %v521 = vadd.f32 %v284, %v509
      %v522 = vadd.f32 %v285, %v514
      %v523 = vadd.f32 %v286, %v517
      %v524 = vld [vmem:[%s6] sm:$0x1]
      %v526 = vlaneseq
      %v527 = vshrl.u32 %v526, 7
      %v528 = vsub.s32 0, %v527
      %v529 = vrot.slane %v524, %v528
      %v531 = vadd.f32 %v520, %v529
      %v532 = vadd.f32 %v521, %v529
      %v533 = vadd.f32 %v522, %v529
      %v534 = vadd.f32 %v523, %v529
      %535 = vst.msk [vmem:[%s280] sm:$0xff] %vm287, %v531
      %536 = vst.msk [vmem:[%s280 + $0x8] sm:$0xff] %vm287, %v532
      %537 = vst.msk [vmem:[%s280 + $0x10] sm:$0xff] %vm287, %v533
      %538 = vst.msk [vmem:[%s280 + $0x18] sm:$0xff] %vm287, %v534
      %s539 = smul.u32 4, %s18
      %p540 = scmp.lt.s32.totalorder %s539, 15
      %s541 = scalar_select %p540, %s539, 15
      %s542 = smul.addr %s541, 8
      %s543 = scalar_lea.vmem %s7, %s542
      // Predicated region
      $region49: #{pvam_forward.6} parent=47 // pred_check
        %p544 = pneg %p188
      $region50: #{pvam_forward.6} parent=47 // pred_check_branch
        %546 = sbr.rel (%p544) target = $region52
      $region51: #{pvam_forward.6} parent=47 // pred_region
        %s547 = smul.u32 4, %s18
      $region52: #{pvam_forward.6} parent=47 // pred_fallthru
        _
    $region48: #{pvam_forward.6} parent=5 // pred_fallthru
      _
    %p548 = scmp.le.s32.totalorder 2, %s13
    // Predicated region
    $region53: #{pvam_forward.6} parent=5 // pred_check
      %p549 = pneg %p548
    $region54: #{pvam_forward.6} parent=5 // pred_check_branch
      %551 = sbr.rel (%p549) target = $region56
    $region55: #{pvam_forward.6} parent=5 // pred_region
      %s552 = ssub.s32 %s13, 2
      // Predicated region
      $region57: #{pvam_forward.6} parent=55 // pred_check
        %p553 = pneg %p194
      $region58: #{pvam_forward.6} parent=55 // pred_check_branch
        %555 = sbr.rel (%p553) target = $region60
      $region59: #{pvam_forward.6} parent=55 // pred_region
        %s556 = smul.u32 4, %s19
        %p557 = scmp.lt.s32.totalorder %s556, 15
        %s558 = scalar_select %p557, %s556, 15
        %s559 = smul.addr %s558, 8
        %s560 = scalar_lea.vmem %s7, %s559
      $region60: #{pvam_forward.6} parent=55 // pred_fallthru
        _
    $region56: #{pvam_forward.6} parent=5 // pred_fallthru
      _
  $region6: #{pvam_forward.6} parent=0 // loop_footer
    %s17 = sadd.s32 1, %s13
  $region7: #{pvam_forward.6} parent=0 // loop_footer_branch
    %12 = sbr.rel target = $region3
  $region8: #{pvam_forward.6} parent=0 // loop_exit
    _

// kernel: pvam_forward.5
$region0: #{pvam_forward.5}
  #allocation0 [shape = 'u32[]', space=smem, size = 0x4, offset = 0x4, fixed_abs, tag = 'smem constant byte address 0x4 - core index']
  #allocation1 [shape = 'u32[144,128]{1,0:T(1,128)}', space=vmem, size = 0x12000, scoped, tag = 'internal scratch']
  #allocation2 [shape = 'f32[64,32]{1,0:T(8,128)}', space=vmem, size = 0x8000, scoped, tag = 'scratch operand']
  %s0 = inlined_call_operand.vmem [shape: f32[2,64,32], index: 0, kind: input, shape index: {}]
  %s1 = inlined_call_operand.vmem [shape: f32[1,32], index: 1, kind: input, shape index: {}]
  %s2 = inlined_call_operand.vmem [shape: f32[1,32], index: 2, kind: input, shape index: {}]
  %s3 = inlined_call_operand.vmem [shape: bf16[32,96], index: 3, kind: input, shape index: {}]
  %s4 = inlined_call_operand.vmem [shape: bf16[32,32], index: 4, kind: input, shape index: {}]
  %s5 = inlined_call_operand.vmem [shape: f32[2,64,32], index: 5, kind: output, shape index: {}]
  %s6 = sld [smem:[#allocation0]]
  $region53: #{pvam_forward.5} parent=0
    _
  %s8 = ssub.s32 1, %s6
  %s9 = scalar_select 0, %s8, %s6
  loop: start=0, step=1, limit=4
  $region2: #{pvam_forward.5} parent=0 // loop_pre_header
    _
  $region3: #{pvam_forward.5} parent=0 // loop_header
    %s11 = sphi 0, %s15
    %p12 = scmp.ge.s32.totalorder %s11, 4
    %s21 = sphi 0, %s23
    %s24 = sphi 0, %s21
    %s25 = sphi 0, %s24
    %s41 = sphi 0, %s25
    %s45 = sphi 0, %s45
    %s47 = sphi 0, %s45
    %s48 = sphi 0, %s47
    %s62 = sphi 0, %s48
    %s66 = sphi 0, %s66
    %s68 = sphi 0, %s66
    %s69 = sphi 0, %s68
    %s83 = sphi 0, %s69
    %s87 = sphi 0, %s87
    %s89 = sphi 0, %s87
    %s90 = sphi 0, %s89
    %s104 = sphi 0, %s90
    %s108 = sphi 0, %s108
    %s110 = sphi 0, %s108
    %s111 = sphi 0, %s110
    %s125 = sphi 0, %s111
    %s131 = sphi 0, %s133
    %s134 = sphi 0, %s131
    %s135 = sphi 0, %s134
    %s151 = sphi 0, %s135
  $region4: #{pvam_forward.5} parent=0 // loop_header_branch
    %14 = sbr.rel (%p12) target = $region8
  $region5: #{pvam_forward.5} parent=0 // loop_body
    %s16 = ssub.s32 %s11, 1
    %s17 = ssub.s32 %s11, 2
    %s18 = sadd.s32 %s11, 1
    %s19 = ssub.s32 %s11, %s18
    %p20 = scmp.eq.s32.totalorder %s19, 0
    %s22 = sadd.s32 %s21, 1
    %s23 = scalar_select %p20, %s21, %s22
    %p26 = pneg %p20
    %p27 = scmp.eq.s32.totalorder %s11, 1
    %p28 = por %p26, %p27
    %p29 = scmp.ne.s32.totalorder %s21, %s24
    %p30 = scmp.eq.s32.totalorder %s11, 0
    %p31 = por %p29, %p30
    %p32 = scmp.ne.s32.totalorder %s21, %s24
    %p33 = scmp.eq.s32.totalorder %s16, 1
    %p34 = por %p32, %p33
    %p35 = scmp.ne.s32.totalorder %s24, %s25
    %p36 = scmp.eq.s32.totalorder %s16, 0
    %p37 = por %p35, %p36
    %p38 = scmp.ne.s32.totalorder %s24, %s25
    %p39 = scmp.eq.s32.totalorder %s17, 1
    %p40 = por %p38, %p39
    %p42 = scmp.ne.s32.totalorder %s25, %s41
    %p43 = scmp.eq.s32.totalorder %s17, 0
    %p44 = por %p42, %p43
    %s46 = sadd.s32 %s45, 1
    %p49 = scmp.eq.s32.totalorder %s11, 1
    %p50 = scmp.ne.s32.totalorder %s45, %s47
    %p51 = scmp.eq.s32.totalorder %s11, 0
    %p52 = por %p50, %p51
    %p53 = scmp.ne.s32.totalorder %s45, %s47
    %p54 = scmp.eq.s32.totalorder %s16, 1
    %p55 = por %p53, %p54
    %p56 = scmp.ne.s32.totalorder %s47, %s48
    %p57 = scmp.eq.s32.totalorder %s16, 0
    %p58 = por %p56, %p57
    %p59 = scmp.ne.s32.totalorder %s47, %s48
    %p60 = scmp.eq.s32.totalorder %s17, 1
    %p61 = por %p59, %p60
    %p63 = scmp.ne.s32.totalorder %s48, %s62
    %p64 = scmp.eq.s32.totalorder %s17, 0
    %p65 = por %p63, %p64
    %s67 = sadd.s32 %s66, 1
    %p70 = scmp.eq.s32.totalorder %s11, 1
    %p71 = scmp.ne.s32.totalorder %s66, %s68
    %p72 = scmp.eq.s32.totalorder %s11, 0
    %p73 = por %p71, %p72
    %p74 = scmp.ne.s32.totalorder %s66, %s68
    %p75 = scmp.eq.s32.totalorder %s16, 1
    %p76 = por %p74, %p75
    %p77 = scmp.ne.s32.totalorder %s68, %s69
    %p78 = scmp.eq.s32.totalorder %s16, 0
    %p79 = por %p77, %p78
    %p80 = scmp.ne.s32.totalorder %s68, %s69
    %p81 = scmp.eq.s32.totalorder %s17, 1
    %p82 = por %p80, %p81
    %p84 = scmp.ne.s32.totalorder %s69, %s83
    %p85 = scmp.eq.s32.totalorder %s17, 0
    %p86 = por %p84, %p85
    %s88 = sadd.s32 %s87, 1
    %p91 = scmp.eq.s32.totalorder %s11, 1
    %p92 = scmp.ne.s32.totalorder %s87, %s89
    %p93 = scmp.eq.s32.totalorder %s11, 0
    %p94 = por %p92, %p93
    %p95 = scmp.ne.s32.totalorder %s87, %s89
    %p96 = scmp.eq.s32.totalorder %s16, 1
    %p97 = por %p95, %p96
    %p98 = scmp.ne.s32.totalorder %s89, %s90
    %p99 = scmp.eq.s32.totalorder %s16, 0
    %p100 = por %p98, %p99
    %p101 = scmp.ne.s32.totalorder %s89, %s90
    %p102 = scmp.eq.s32.totalorder %s17, 1
    %p103 = por %p101, %p102
    %p105 = scmp.ne.s32.totalorder %s90, %s104
    %p106 = scmp.eq.s32.totalorder %s17, 0
    %p107 = por %p105, %p106
    %s109 = sadd.s32 %s108, 1
    %p112 = scmp.eq.s32.totalorder %s11, 1
    %p113 = scmp.ne.s32.totalorder %s108, %s110
    %p114 = scmp.eq.s32.totalorder %s11, 0
    %p115 = por %p113, %p114
    %p116 = scmp.ne.s32.totalorder %s108, %s110
    %p117 = scmp.eq.s32.totalorder %s16, 1
    %p118 = por %p116, %p117
    %p119 = scmp.ne.s32.totalorder %s110, %s111
    %p120 = scmp.eq.s32.totalorder %s16, 0
    %p121 = por %p119, %p120
    %p122 = scmp.ne.s32.totalorder %s110, %s111
    %p123 = scmp.eq.s32.totalorder %s17, 1
    %p124 = por %p122, %p123
    %p126 = scmp.ne.s32.totalorder %s111, %s125
    %p127 = scmp.eq.s32.totalorder %s17, 0
    %p128 = por %p126, %p127
    %s129 = ssub.s32 %s11, %s18
    %p130 = scmp.eq.s32.totalorder %s129, 0
    %s132 = sadd.s32 %s131, 1
    %s133 = scalar_select %p130, %s131, %s132
    %p136 = pneg %p130
    %p137 = scmp.eq.s32.totalorder %s11, 1
    %p138 = por %p136, %p137
    %p139 = scmp.ne.s32.totalorder %s131, %s134
    %p140 = scmp.eq.s32.totalorder %s11, 0
    %p141 = por %p139, %p140
    %p142 = scmp.ne.s32.totalorder %s131, %s134
    %p143 = scmp.eq.s32.totalorder %s16, 1
    %p144 = por %p142, %p143
    %p145 = scmp.ne.s32.totalorder %s134, %s135
    %p146 = scmp.eq.s32.totalorder %s16, 0
    %p147 = por %p145, %p146
    %p148 = scmp.ne.s32.totalorder %s134, %s135
    %p149 = scmp.eq.s32.totalorder %s17, 1
    %p150 = por %p148, %p149
    %p152 = scmp.ne.s32.totalorder %s135, %s151
    %p153 = scmp.eq.s32.totalorder %s17, 0
    %p154 = por %p152, %p153
    %p155 = scmp.le.s32.totalorder 1, %s11
    %p156 = scmp.lt.s32.totalorder %s11, 3
    %p157 = pnand %p155, %p156
    %p158 = pneg %p157
    // Predicated region
    $region9: #{pvam_forward.5} parent=5 // pred_check
      _
    $region10: #{pvam_forward.5} parent=5 // pred_check_branch
      %160 = sbr.rel (%p157) target = $region12
    $region11: #{pvam_forward.5} parent=5 // pred_region
      %s161 = ssub.s32 %s11, 1
      // Predicated region
      $region13: #{pvam_forward.5} parent=11 // pred_check
        %p162 = pneg %p58
      $region14: #{pvam_forward.5} parent=11 // pred_check_branch
        %164 = sbr.rel (%p162) target = $region16
      $region15: #{pvam_forward.5} parent=11 // pred_region
        _
      $region16: #{pvam_forward.5} parent=11 // pred_fallthru
        _
      // Predicated region
      $region17: #{pvam_forward.5} parent=11 // pred_check
        %p165 = pneg %p79
      $region18: #{pvam_forward.5} parent=11 // pred_check_branch
        %167 = sbr.rel (%p165) target = $region20
      $region19: #{pvam_forward.5} parent=11 // pred_region
        _
      $region20: #{pvam_forward.5} parent=11 // pred_fallthru
        _
      // Predicated region
      $region21: #{pvam_forward.5} parent=11 // pred_check
        %p168 = pneg %p100
      $region22: #{pvam_forward.5} parent=11 // pred_check_branch
        %170 = sbr.rel (%p168) target = $region24
      $region23: #{pvam_forward.5} parent=11 // pred_region
        _
      $region24: #{pvam_forward.5} parent=11 // pred_fallthru
        _
      // Predicated region
      $region25: #{pvam_forward.5} parent=11 // pred_check
        %p171 = pneg %p121
      $region26: #{pvam_forward.5} parent=11 // pred_check_branch
        %173 = sbr.rel (%p171) target = $region28
      $region27: #{pvam_forward.5} parent=11 // pred_region
        _
      $region28: #{pvam_forward.5} parent=11 // pred_fallthru
        _
    $region12: #{pvam_forward.5} parent=5 // pred_fallthru
      _
    %p174 = scmp.lt.s32.totalorder %s11, 2
    // Predicated region
    $region29: #{pvam_forward.5} parent=5 // pred_check
      %p175 = pneg %p174
    $region30: #{pvam_forward.5} parent=5 // pred_check_branch
      %177 = sbr.rel (%p175) target = $region32
    $region31: #{pvam_forward.5} parent=5 // pred_region
      // Predicated region
      $region33: #{pvam_forward.5} parent=31 // pred_check
        %p178 = pneg %p31
      $region34: #{pvam_forward.5} parent=31 // pred_check_branch
        %180 = sbr.rel (%p178) target = $region36
      $region35: #{pvam_forward.5} parent=31 // pred_region
        %p181 = scmp.lt.s32.totalorder %s11, 1
        %s182 = scalar_select %p181, %s11, 1
        %s183 = smul.addr %s182, 8
        %s184 = smul.addr %s183, 8
        %s185 = scalar_lea.vmem %s0, %s184
      $region36: #{pvam_forward.5} parent=31 // pred_fallthru
        _
    $region32: #{pvam_forward.5} parent=5 // pred_fallthru
      _
    %p186 = scmp.le.s32.totalorder 1, %s11
    %p187 = scmp.lt.s32.totalorder %s11, 3
    %p188 = pnand %p186, %p187
    %p189 = pneg %p188
    // Predicated region
    $region37: #{pvam_forward.5} parent=5 // pred_check
      _
    $region38: #{pvam_forward.5} parent=5 // pred_check_branch
      %191 = sbr.rel (%p188) target = $region40
    $region39: #{pvam_forward.5} parent=5 // pred_region
      %s192 = ssub.s32 %s11, 1
      %p193 = scmp.lt.s32.totalorder %s16, 1
      %s194 = scalar_select %p193, %s16, 1
      %s195 = smul.addr %s194, 8
      %s196 = smul.addr %s195, 8
      %s197 = scalar_lea.vmem %s0, %s196
      %p198 = pneg %p37
      %p199 = pneg %p34
      %p200 = pneg %p58
      %p201 = pneg %p55
      %p202 = pneg %p79
      %p203 = pneg %p76
      %p204 = pneg %p100
      %p205 = pneg %p97
      %p206 = pneg %p121
      %p207 = pneg %p118
      %p208 = pneg %p147
      %p209 = pneg %p144
      %p210 = scmp.lt.s32.totalorder %s16, 1
      %s211 = scalar_select %p210, %s16, 1
      %s212 = smul.addr %s211, 8
      %s213 = smul.addr %s212, 8
      %s214 = scalar_lea.vmem %s5, %s213
      %p215 = scmp.lt.s32.totalorder %s16, 1
      %s216 = scalar_select %p215, %s16, 1
      %s217 = smul.addr %s216, 8
      %s218 = smul.addr %s217, 8
      %s219 = scalar_lea.vmem %s0, %s218
      %p220 = scmp.lt.s32.totalorder %s16, 1
      %s221 = scalar_select %p220, %s16, 1
      %s222 = smul.addr %s221, 8
      %s223 = smul.addr %s222, 8
      %s224 = scalar_lea.vmem %s5, %s223
      %v226 = vld [vmem:[%s219] sm:$0xff]
      %v227 = vld [vmem:[%s219 + $0x8] sm:$0xff]
      %v228 = vld [vmem:[%s219 + $0x10] sm:$0xff]
      %v229 = vld [vmem:[%s219 + $0x18] sm:$0xff]
      %v230 = vld [vmem:[%s219 + $0x20] sm:$0xff]
      %v231 = vld [vmem:[%s219 + $0x28] sm:$0xff]
      %v232 = vld [vmem:[%s219 + $0x30] sm:$0xff]
      %v233 = vld [vmem:[%s219 + $0x38] sm:$0xff]
      %vm234 = vcmask 261120
      %v235 = vsel %vm234, %v226, 0.0
      %236 = vadd.xlane.f32.xlu0 %v235
      %v237 = vpop.xlane.xlu0 %236
      %v238 = vsel %vm234, %v227, 0.0
      %239 = vadd.xlane.f32.xlu0 %v238
      %v240 = vpop.xlane.xlu0 %239
      %v241 = vsel %vm234, %v228, 0.0
      %242 = vadd.xlane.f32.xlu0 %v241
      %v243 = vpop.xlane.xlu0 %242
      %v244 = vsel %vm234, %v229, 0.0
      %245 = vadd.xlane.f32.xlu0 %v244
      %v246 = vpop.xlane.xlu0 %245
      %v247 = vsel %vm234, %v230, 0.0
      %248 = vadd.xlane.f32.xlu0 %v247
      %v249 = vpop.xlane.xlu0 %248
      %v250 = vsel %vm234, %v231, 0.0
      %251 = vadd.xlane.f32.xlu0 %v250
      %v252 = vpop.xlane.xlu0 %251
      %v253 = vsel %vm234, %v232, 0.0
      %254 = vadd.xlane.f32.xlu0 %v253
      %v255 = vpop.xlane.xlu0 %254
      %v256 = vsel %vm234, %v233, 0.0
      %257 = vadd.xlane.f32.xlu0 %v256
      %v258 = vpop.xlane.xlu0 %257
      %v259 = vrcp.pop 32.0
      %v260 = vmul.f32 %v237, %v259
      %v261 = vmul.f32 %v240, %v259
      %v262 = vmul.f32 %v243, %v259
      %v263 = vmul.f32 %v246, %v259
      %v264 = vmul.f32 %v249, %v259
      %v265 = vmul.f32 %v252, %v259
      %v266 = vmul.f32 %v255, %v259
      %v267 = vmul.f32 %v258, %v259
      %v268 = vsub.f32 %v226, %v260
      %v269 = vsub.f32 %v227, %v261
      %v270 = vsub.f32 %v228, %v262
      %v271 = vsub.f32 %v229, %v263
      %v272 = vsub.f32 %v230, %v264
      %v273 = vsub.f32 %v231, %v265
      %v274 = vsub.f32 %v232, %v266
      %v275 = vsub.f32 %v233, %v267
      %v276 = vmul.f32 %v268, %v268
      %v277 = vmul.f32 %v269, %v269
      %v278 = vmul.f32 %v270, %v270
      %v279 = vmul.f32 %v271, %v271
      %v280 = vmul.f32 %v272, %v272
      %v281 = vmul.f32 %v273, %v273
      %v282 = vmul.f32 %v274, %v274
      %v283 = vmul.f32 %v275, %v275
      %v284 = vsel %vm234, %v276, 0.0
      %285 = vadd.xlane.f32.xlu0 %v284
      %v286 = vpop.xlane.xlu0 %285
      %v287 = vsel %vm234, %v277, 0.0
      %288 = vadd.xlane.f32.xlu0 %v287
      %v289 = vpop.xlane.xlu0 %288
      %v290 = vsel %vm234, %v278, 0.0
      %291 = vadd.xlane.f32.xlu0 %v290
      %v292 = vpop.xlane.xlu0 %291
      %v293 = vsel %vm234, %v279, 0.0
      %294 = vadd.xlane.f32.xlu0 %v293
      %v295 = vpop.xlane.xlu0 %294
      %v296 = vsel %vm234, %v280, 0.0
      %297 = vadd.xlane.f32.xlu0 %v296
      %v298 = vpop.xlane.xlu0 %297
      %v299 = vsel %vm234, %v281, 0.0
      %300 = vadd.xlane.f32.xlu0 %v299
      %v301 = vpop.xlane.xlu0 %300
      %v302 = vsel %vm234, %v282, 0.0
      %303 = vadd.xlane.f32.xlu0 %v302
      %v304 = vpop.xlane.xlu0 %303
      %v305 = vsel %vm234, %v283, 0.0
      %306 = vadd.xlane.f32.xlu0 %v305
      %v307 = vpop.xlane.xlu0 %306
      %v308 = vmul.f32 %v286, %v259
      %v309 = vmul.f32 %v289, %v259
      %v310 = vmul.f32 %v292, %v259
      %v311 = vmul.f32 %v295, %v259
      %v312 = vmul.f32 %v298, %v259
      %v313 = vmul.f32 %v301, %v259
      %v314 = vmul.f32 %v304, %v259
      %v315 = vmul.f32 %v307, %v259
      %v316 = vadd.f32 %v308, 1e-05
      %v317 = vadd.f32 %v309, 1e-05
      %v318 = vadd.f32 %v310, 1e-05
      %v319 = vadd.f32 %v311, 1e-05
      %v320 = vadd.f32 %v312, 1e-05
      %v321 = vadd.f32 %v313, 1e-05
      %v322 = vadd.f32 %v314, 1e-05
      %v323 = vadd.f32 %v315, 1e-05
      %v324 = vrsqrt.pop %v316
      %v325 = vrsqrt.pop %v317
      %v326 = vrsqrt.pop %v318
      %v327 = vrsqrt.pop %v319
      %v328 = vrsqrt.pop %v320
      %v329 = vrsqrt.pop %v321
      %v330 = vrsqrt.pop %v322
      %v331 = vrsqrt.pop %v323
      %v332 = vmul.f32 %v268, %v324
      %v333 = vmul.f32 %v269, %v325
      %v334 = vmul.f32 %v270, %v326
      %v335 = vmul.f32 %v271, %v327
      %v336 = vmul.f32 %v272, %v328
      %v337 = vmul.f32 %v273, %v329
      %v338 = vmul.f32 %v274, %v330
      %v339 = vmul.f32 %v275, %v331
      %v340 = vld [vmem:[%s1] sm:$0x1]
      %v342 = vlaneseq
      %v343 = vshrl.u32 %v342, 7
      %v344 = vsub.s32 0, %v343
      %v345 = vrot.slane %v340, %v344
      %v347 = vmul.f32 %v332, %v345
      %v348 = vmul.f32 %v333, %v345
      %v349 = vmul.f32 %v334, %v345
      %v350 = vmul.f32 %v335, %v345
      %v351 = vmul.f32 %v336, %v345
      %v352 = vmul.f32 %v337, %v345
      %v353 = vmul.f32 %v338, %v345
      %v354 = vmul.f32 %v339, %v345
      %v355 = vld [vmem:[%s2] sm:$0x1]
      %v357 = vlaneseq
      %v358 = vshrl.u32 %v357, 7
      %v359 = vsub.s32 0, %v358
      %v360 = vrot.slane %v355, %v359
      %v362 = vadd.f32 %v347, %v360
      %v363 = vadd.f32 %v348, %v360
      %v364 = vadd.f32 %v349, %v360
      %v365 = vadd.f32 %v350, %v360
      %v366 = vadd.f32 %v351, %v360
      %v367 = vadd.f32 %v352, %v360
      %v368 = vadd.f32 %v353, %v360
      %v369 = vadd.f32 %v354, %v360
      %v370 = vpack.c.bf16 %v363, %v362
      %v371 = vpack.c.bf16 %v365, %v364
      %v372 = vpack.c.bf16 %v367, %v366
      %v373 = vpack.c.bf16 %v369, %v368
      %v374 = vld [vmem:[%s3] sm:$0xf]
      %v375 = vld [vmem:[%s3 + $0x4] sm:$0xf]
      %v376 = vld [vmem:[%s3 + $0x8] sm:$0xf]
      %v377 = vld [vmem:[%s3 + $0xc] sm:$0xf]
      %v382 = vunpack.c.l.b16 %v374
      %v383 = vunpack.c.l.b16 %v375
      %v384 = vunpack.c.l.b16 %v376
      %v385 = vunpack.c.l.b16 %v377
      %v386 = vpack.c.b16 %v383, %v382
      %v387 = vpack.c.b16 %v385, %v384
      %v391 = vsel %vm234, %v370, 0
      %v394 = vsel %vm234, %v371, 0
      %v397 = vsel %vm234, %v372, 0
      %v400 = vsel %vm234, %v373, 0
      %402 = vmatprep.subr.bf16.mxu0 0
      %403 = vmatpush1.bf16.msra.mxu0 %v386
      %404 = vmatprep.subr.bf16.mxu0 0
      %405 = vmatpush1.bf16.msra.mxu0 %v387
      %406 = vmatprep.subr.bf16.mxu0 0
      %407 = vmatpush1.bf16.msra.mxu0 0
      %408 = vmatprep.subr.bf16.mxu0 0
      %409 = vmatpush1.bf16.msra.mxu0 0
      %410 = vmatprep.subr.bf16.mxu0 0
      %411 = vmatpush1.bf16.msra.mxu0 0
      %412 = vmatprep.subr.bf16.mxu0 0
      %413 = vmatpush1.bf16.msra.mxu0 0
      %414 = vmatprep.subr.bf16.mxu0 0
      %415 = vmatpush1.bf16.msra.mxu0 0
      %416 = vmatprep.subr.bf16.mxu0 0
      %417 = vmatpush1.bf16.msra.mxu0 0
      %418 = vmatprep.subr.bf16.mxu0 0
      %419 = vmatpush1.bf16.msra.mxu0 0
      %420 = vmatprep.subr.bf16.mxu0 0
      %421 = vmatpush1.bf16.msra.mxu0 0
      %422 = vmatprep.subr.bf16.mxu0 0
      %423 = vmatpush1.bf16.msra.mxu0 0
      %424 = vmatprep.subr.bf16.mxu0 0
      %425 = vmatpush1.bf16.msra.mxu0 0
      %426 = vmatprep.subr.bf16.mxu0 0
      %427 = vmatpush1.bf16.msra.mxu0 0
      %428 = vmatprep.subr.bf16.mxu0 0
      %429 = vmatpush1.bf16.msra.mxu0 0
      %430 = vmatprep.subr.bf16.mxu0 0
      %431 = vmatpush1.bf16.msra.mxu0 0
      %432 = vmatprep.subr.bf16.mxu0 0
      %433 = vmatpush1.bf16.msra.mxu0 0
      %434 = vmatprep.mubr.bf16.mxu0 0
      %435 = vmatmul.mubr.bf16.gmra.mrb[0].mxu0 %v391
      %v436 = vpop.f32.mrb[0].mxu0
      %v437 = vadd.f32 0.0, %v436
      %v438 = vpop.f32.mrb[0].mxu0
      %v439 = vpop.f32.mrb[0].mxu0
      %v440 = vadd.f32 0.0, %v439
      %v441 = vpop.f32.mrb[0].mxu0
      %442 = vmatprep.mubr.bf16.mxu0 0
      %443 = vmatmul.mubr.bf16.gmra.mrb[0].mxu0 %v394
      %v444 = vpop.f32.mrb[0].mxu0
      %v445 = vadd.f32 0.0, %v444
      %v446 = vpop.f32.mrb[0].mxu0
      %v447 = vpop.f32.mrb[0].mxu0
      %v448 = vadd.f32 0.0, %v447
      %v449 = vpop.f32.mrb[0].mxu0
      %450 = vmatprep.mubr.bf16.mxu0 0
      %451 = vmatmul.mubr.bf16.gmra.mrb[0].mxu0 %v397
      %v452 = vpop.f32.mrb[0].mxu0
      %v453 = vadd.f32 0.0, %v452
      %v454 = vpop.f32.mrb[0].mxu0
      %v455 = vpop.f32.mrb[0].mxu0
      %v456 = vadd.f32 0.0, %v455
      %v457 = vpop.f32.mrb[0].mxu0
      %458 = vmatprep.mubr.bf16.mxu0 0
      %459 = vmatmul.mubr.bf16.gmra.mrb[0].mxu0 %v400
      %v460 = vpop.f32.mrb[0].mxu0
      %v461 = vadd.f32 0.0, %v460
      %v462 = vpop.f32.mrb[0].mxu0
      %v463 = vpop.f32.mrb[0].mxu0
      %v464 = vadd.f32 0.0, %v463
      %v465 = vpop.f32.mrb[0].mxu0
      %466 = vdwg.mxu0
      %v467 = vpack.c.bf16 %v440, %v437
      %v468 = vpack.c.bf16 %v448, %v445
      %v469 = vpack.c.bf16 %v456, %v453
      %v470 = vpack.c.bf16 %v464, %v461
      %475 = vrot.lane.b32.xlu0 %v467, 96
      %v476 = vpop.permute.xlu0 %475
      %477 = vrot.lane.b32.xlu0 %v468, 96
      %v478 = vpop.permute.xlu0 %477
      %479 = vrot.lane.b32.xlu0 %v469, 96
      %v480 = vpop.permute.xlu0 %479
      %481 = vrot.lane.b32.xlu0 %v470, 96
      %v482 = vpop.permute.xlu0 %481
      %vm483 = vcmask 64512
      %v485 = vsel %vm483, %v467, 0
      %v488 = vsel %vm483, %v468, 0
      %v491 = vsel %vm483, %v469, 0
      %v494 = vsel %vm483, %v470, 0
      %v497 = vsel %vm483, %v476, 0
      %v500 = vsel %vm483, %v478, 0
      %v503 = vsel %vm483, %v480, 0
      %v506 = vsel %vm483, %v482, 0
      %508 = vmatprep.subr.bf16.mxu0 0
      %509 = vmatpush1.bf16.xpose.msra.mxu0 %v497
      %510 = vmatprep.subr.bf16.mxu0 0
      %511 = vmatpush1.bf16.xpose.msra.mxu0 %v500
      %512 = vmatprep.subr.bf16.mxu0 0
      %513 = vmatpush1.bf16.xpose.msra.mxu0 %v503
      %514 = vmatprep.subr.bf16.mxu0 0
      %515 = vmatpush1.bf16.xpose.msra.mxu0 %v506
      %516 = vmatprep.subr.bf16.mxu0 0
      %517 = vmatpush1.bf16.xpose.msra.mxu0 0
      %518 = vmatprep.subr.bf16.mxu0 0
      %519 = vmatpush1.bf16.xpose.msra.mxu0 0
      %520 = vmatprep.subr.bf16.mxu0 0
      %521 = vmatpush1.bf16.xpose.msra.mxu0 0
      %522 = vmatprep.subr.bf16.mxu0 0
      %523 = vmatpush1.bf16.xpose.msra.mxu0 0
      %524 = vmatprep.subr.bf16.mxu0 0
      %525 = vmatpush1.bf16.xpose.msra.mxu0 0
      %526 = vmatprep.subr.bf16.mxu0 0
      %527 = vmatpush1.bf16.xpose.msra.mxu0 0
      %528 = vmatprep.subr.bf16.mxu0 0
      %529 = vmatpush1.bf16.xpose.msra.mxu0 0
      %530 = vmatprep.subr.bf16.mxu0 0
      %531 = vmatpush1.bf16.xpose.msra.mxu0 0
      %532 = vmatprep.subr.bf16.mxu0 0
      %533 = vmatpush1.bf16.xpose.msra.mxu0 0
      %534 = vmatprep.subr.bf16.mxu0 0
      %535 = vmatpush1.bf16.xpose.msra.mxu0 0
      %536 = vmatprep.subr.bf16.mxu0 0
      %537 = vmatpush1.bf16.xpose.msra.mxu0 0
      %538 = vmatprep.subr.bf16.mxu0 0
      %539 = vmatpush1.bf16.xpose.msra.mxu0 0
      %540 = vmatprep.mubr.bf16.mxu0 0
      %541 = vmatmul.mubr.bf16.gmra.mrb[0].mxu0 %v485
      %v542 = vpop.f32.mrb[0].mxu0
      %v543 = vadd.f32 0.0, %v542
      %v544 = vpop.f32.mrb[0].mxu0
      %v545 = vpop.f32.mrb[0].mxu0
      %v546 = vadd.f32 0.0, %v545
      %v547 = vpop.f32.mrb[0].mxu0
      %548 = vmatprep.mubr.bf16.mxu0 0
      %549 = vmatmul.mubr.bf16.gmra.mrb[0].mxu0 %v488
      %v550 = vpop.f32.mrb[0].mxu0
      %v551 = vadd.f32 0.0, %v550
      %v552 = vpop.f32.mrb[0].mxu0
      %v553 = vpop.f32.mrb[0].mxu0
      %v554 = vadd.f32 0.0, %v553
      %v555 = vpop.f32.mrb[0].mxu0
      %556 = vmatprep.mubr.bf16.mxu0 0
      %557 = vmatmul.mubr.bf16.gmra.mrb[0].mxu0 %v491
      %v558 = vpop.f32.mrb[0].mxu0
      %v559 = vadd.f32 0.0, %v558
      %v560 = vpop.f32.mrb[0].mxu0
      %v561 = vpop.f32.mrb[0].mxu0
      %v562 = vadd.f32 0.0, %v561
      %v563 = vpop.f32.mrb[0].mxu0
      %564 = vmatprep.mubr.bf16.mxu0 0
      %565 = vmatmul.mubr.bf16.gmra.mrb[0].mxu0 %v494
      %v566 = vpop.f32.mrb[0].mxu0
      %v567 = vadd.f32 0.0, %v566
      %v568 = vpop.f32.mrb[0].mxu0
      %v569 = vpop.f32.mrb[0].mxu0
      %v570 = vadd.f32 0.0, %v569
      %v571 = vpop.f32.mrb[0].mxu0
      %572 = vdwg.mxu0
      %v573 = vmul.f32 %v543, 0.17677669
      %v574 = vmul.f32 %v546, 0.17677669
      %v575 = vmul.f32 %v551, 0.17677669
      %v576 = vmul.f32 %v554, 0.17677669
      %v577 = vmul.f32 %v559, 0.17677669
      %v578 = vmul.f32 %v562, 0.17677669
      %v579 = vmul.f32 %v567, 0.17677669
      %v580 = vmul.f32 %v570, 0.17677669
      %vm581 = vcmask 523264
      %v582 = vsel %vm581, %v573, -inf
      %583 = vmax.xlane.f32.xlu0 %v582
      %v584 = vpop.xlane.xlu0 %583
      %v585 = vsel %vm581, %v574, -inf
      %586 = vmax.xlane.f32.xlu0 %v585
      %v587 = vpop.xlane.xlu0 %586
      %v588 = vsel %vm581, %v575, -inf
      %589 = vmax.xlane.f32.xlu0 %v588
      %v590 = vpop.xlane.xlu0 %589
      %v591 = vsel %vm581, %v576, -inf
      %592 = vmax.xlane.f32.xlu0 %v591
      %v593 = vpop.xlane.xlu0 %592
      %v594 = vsel %vm581, %v577, -inf
      %595 = vmax.xlane.f32.xlu0 %v594
      %v596 = vpop.xlane.xlu0 %595
      %v597 = vsel %vm581, %v578, -inf
      %598 = vmax.xlane.f32.xlu0 %v597
      %v599 = vpop.xlane.xlu0 %598
      %v600 = vsel %vm581, %v579, -inf
      %601 = vmax.xlane.f32.xlu0 %v600
      %v602 = vpop.xlane.xlu0 %601
      %v603 = vsel %vm581, %v580, -inf
      %604 = vmax.xlane.f32.xlu0 %v603
      %v605 = vpop.xlane.xlu0 %604
      %v606 = vsub.f32 %v573, %v584
      %v607 = vsub.f32 %v574, %v587
      %v608 = vsub.f32 %v575, %v590
      %v609 = vsub.f32 %v576, %v593
      %v610 = vsub.f32 %v577, %v596
      %v611 = vsub.f32 %v578, %v599
      %v612 = vsub.f32 %v579, %v602
      %v613 = vsub.f32 %v580, %v605
      %v614 = vmul.f32 %v606, 1.442695
      %v615 = vpow.pop %v614
      %v616 = vmul.f32 %v607, 1.442695
      %v617 = vpow.pop %v616
      %v618 = vmul.f32 %v608, 1.442695
      %v619 = vpow.pop %v618
      %v620 = vmul.f32 %v609, 1.442695
      %v621 = vpow.pop %v620
      %v622 = vmul.f32 %v610, 1.442695
      %v623 = vpow.pop %v622
      %v624 = vmul.f32 %v611, 1.442695
      %v625 = vpow.pop %v624
      %v626 = vmul.f32 %v612, 1.442695
      %v627 = vpow.pop %v626
      %v628 = vmul.f32 %v613, 1.442695
      %v629 = vpow.pop %v628
      %v630 = vsel %vm581, %v615, 0.0
      %631 = vadd.xlane.f32.xlu0 %v630
      %v632 = vpop.xlane.xlu0 %631
      %v633 = vsel %vm581, %v617, 0.0
      %634 = vadd.xlane.f32.xlu0 %v633
      %v635 = vpop.xlane.xlu0 %634
      %v636 = vsel %vm581, %v619, 0.0
      %637 = vadd.xlane.f32.xlu0 %v636
      %v638 = vpop.xlane.xlu0 %637
      %v639 = vsel %vm581, %v621, 0.0
      %640 = vadd.xlane.f32.xlu0 %v639
      %v641 = vpop.xlane.xlu0 %640
      %v642 = vsel %vm581, %v623, 0.0
      %643 = vadd.xlane.f32.xlu0 %v642
      %v644 = vpop.xlane.xlu0 %643
      %v645 = vsel %vm581, %v625, 0.0
      %646 = vadd.xlane.f32.xlu0 %v645
      %v647 = vpop.xlane.xlu0 %646
      %v648 = vsel %vm581, %v627, 0.0
      %649 = vadd.xlane.f32.xlu0 %v648
      %v650 = vpop.xlane.xlu0 %649
      %v651 = vsel %vm581, %v629, 0.0
      %652 = vadd.xlane.f32.xlu0 %v651
      %v653 = vpop.xlane.xlu0 %652
      %v654 = vrcp.pop %v632
      %v655 = vmul.f32 %v615, %v654
      %v656 = vrcp.pop %v635
      %v657 = vmul.f32 %v617, %v656
      %v658 = vrcp.pop %v638
      %v659 = vmul.f32 %v619, %v658
      %v660 = vrcp.pop %v641
      %v661 = vmul.f32 %v621, %v660
      %v662 = vrcp.pop %v644
      %v663 = vmul.f32 %v623, %v662
      %v664 = vrcp.pop %v647
      %v665 = vmul.f32 %v625, %v664
      %v666 = vrcp.pop %v650
      %v667 = vmul.f32 %v627, %v666
      %v668 = vrcp.pop %v653
      %v669 = vmul.f32 %v629, %v668
      %v670 = vpack.c.bf16 %v657, %v655
      %v671 = vpack.c.bf16 %v661, %v659
      %v672 = vpack.c.bf16 %v665, %v663
      %v673 = vpack.c.bf16 %v669, %v667
      %674 = vrot.lane.b32.xlu0 %v467, 64
      %v675 = vpop.permute.xlu0 %674
      %676 = vrot.lane.b32.xlu0 %v468, 64
      %v677 = vpop.permute.xlu0 %676
      %678 = vrot.lane.b32.xlu0 %v469, 64
      %v679 = vpop.permute.xlu0 %678
      %680 = vrot.lane.b32.xlu0 %v470, 64
      %v681 = vpop.permute.xlu0 %680
      %v687 = vsel %vm581, %v670, 0
      %v690 = vsel %vm581, %v671, 0
      %v693 = vsel %vm581, %v672, 0
      %v696 = vsel %vm581, %v673, 0
      %698 = vmatprep.subr.bf16.mxu0 0
      %699 = vmatpush1.bf16.msra.mxu0 %v675
      %700 = vmatprep.subr.bf16.mxu0 0
      %701 = vmatpush1.bf16.msra.mxu0 %v677
      %702 = vmatprep.subr.bf16.mxu0 0
      %703 = vmatpush1.bf16.msra.mxu0 %v679
      %704 = vmatprep.subr.bf16.mxu0 0
      %705 = vmatpush1.bf16.msra.mxu0 %v681
      %706 = vmatprep.subr.bf16.mxu0 0
      %707 = vmatpush1.bf16.msra.mxu0 0
      %708 = vmatprep.subr.bf16.mxu0 0
      %709 = vmatpush1.bf16.msra.mxu0 0
      %710 = vmatprep.subr.bf16.mxu0 0
      %711 = vmatpush1.bf16.msra.mxu0 0
      %712 = vmatprep.subr.bf16.mxu0 0
      %713 = vmatpush1.bf16.msra.mxu0 0
      %714 = vmatprep.subr.bf16.mxu0 0
      %715 = vmatpush1.bf16.msra.mxu0 0
      %716 = vmatprep.subr.bf16.mxu0 0
      %717 = vmatpush1.bf16.msra.mxu0 0
      %718 = vmatprep.subr.bf16.mxu0 0
      %719 = vmatpush1.bf16.msra.mxu0 0
      %720 = vmatprep.subr.bf16.mxu0 0
      %721 = vmatpush1.bf16.msra.mxu0 0
      %722 = vmatprep.subr.bf16.mxu0 0
      %723 = vmatpush1.bf16.msra.mxu0 0
      %724 = vmatprep.subr.bf16.mxu0 0
      %725 = vmatpush1.bf16.msra.mxu0 0
      %726 = vmatprep.subr.bf16.mxu0 0
      %727 = vmatpush1.bf16.msra.mxu0 0
      %728 = vmatprep.subr.bf16.mxu0 0
      %729 = vmatpush1.bf16.msra.mxu0 0
      %730 = vmatprep.mubr.bf16.mxu0 0
      %731 = vmatmul.mubr.bf16.gmra.mrb[0].mxu0 %v687
      %v732 = vpop.f32.mrb[0].mxu0
      %v733 = vadd.f32 0.0, %v732
      %v734 = vpop.f32.mrb[0].mxu0
      %v735 = vpop.f32.mrb[0].mxu0
      %v736 = vadd.f32 0.0, %v735
      %v737 = vpop.f32.mrb[0].mxu0
      %738 = vmatprep.mubr.bf16.mxu0 0
      %739 = vmatmul.mubr.bf16.gmra.mrb[0].mxu0 %v690
      %v740 = vpop.f32.mrb[0].mxu0
      %v741 = vadd.f32 0.0, %v740
      %v742 = vpop.f32.mrb[0].mxu0
      %v743 = vpop.f32.mrb[0].mxu0
      %v744 = vadd.f32 0.0, %v743
      %v745 = vpop.f32.mrb[0].mxu0
      %746 = vmatprep.mubr.bf16.mxu0 0
      %747 = vmatmul.mubr.bf16.gmra.mrb[0].mxu0 %v693
      %v748 = vpop.f32.mrb[0].mxu0
      %v749 = vadd.f32 0.0, %v748
      %v750 = vpop.f32.mrb[0].mxu0
      %v751 = vpop.f32.mrb[0].mxu0
      %v752 = vadd.f32 0.0, %v751
      %v753 = vpop.f32.mrb[0].mxu0
      %754 = vmatprep.mubr.bf16.mxu0 0
      %755 = vmatmul.mubr.bf16.gmra.mrb[0].mxu0 %v696
      %v756 = vpop.f32.mrb[0].mxu0
      %v757 = vadd.f32 0.0, %v756
      %v758 = vpop.f32.mrb[0].mxu0
      %v759 = vpop.f32.mrb[0].mxu0
      %v760 = vadd.f32 0.0, %v759
      %v761 = vpop.f32.mrb[0].mxu0
      %762 = vdwg.mxu0
      %763 = vst.msk [vmem:[#allocation2] sm:$0xff] %vm483, %v733
      %764 = vst.msk [vmem:[#allocation2 + $0x8] sm:$0xff] %vm483, %v736
      %765 = vst.msk [vmem:[#allocation2 + $0x10] sm:$0xff] %vm483, %v741
      %766 = vst.msk [vmem:[#allocation2 + $0x18] sm:$0xff] %vm483, %v744
      %767 = vst.msk [vmem:[#allocation2 + $0x20] sm:$0xff] %vm483, %v749
      %768 = vst.msk [vmem:[#allocation2 + $0x28] sm:$0xff] %vm483, %v752
      %769 = vst.msk [vmem:[#allocation2 + $0x30] sm:$0xff] %vm483, %v757
      %770 = vst.msk [vmem:[#allocation2 + $0x38] sm:$0xff] %vm483, %v760
      %771 = vrot.lane.b32.xlu0 %v467, 120
      %v772 = vpop.permute.xlu0 %771
      %773 = vrot.lane.b32.xlu0 %v468, 120
      %v774 = vpop.permute.xlu0 %773
      %775 = vrot.lane.b32.xlu0 %v469, 120
      %v776 = vpop.permute.xlu0 %775
      %777 = vrot.lane.b32.xlu0 %v470, 120
      %v778 = vpop.permute.xlu0 %777
      %779 = vrot.lane.b32.xlu0 %v467, 88
      %v780 = vpop.permute.xlu0 %779
      %781 = vrot.lane.b32.xlu0 %v468, 88
      %v782 = vpop.permute.xlu0 %781
      %783 = vrot.lane.b32.xlu0 %v469, 88
      %v784 = vpop.permute.xlu0 %783
      %785 = vrot.lane.b32.xlu0 %v470, 88
      %v786 = vpop.permute.xlu0 %785
      %v788 = vsel %vm483, %v772, 0
      %v791 = vsel %vm483, %v774, 0
      %v794 = vsel %vm483, %v776, 0
      %v797 = vsel %vm483, %v778, 0
      %v800 = vsel %vm483, %v780, 0
      %v803 = vsel %vm483, %v782, 0
      %v806 = vsel %vm483, %v784, 0
      %v809 = vsel %vm483, %v786, 0
      %811 = vmatprep.subr.bf16.mxu0 0
      %812 = vmatpush1.bf16.xpose.msra.mxu0 %v800
      %813 = vmatprep.subr.bf16.mxu0 0
      %814 = vmatpush1.bf16.xpose.msra.mxu0 %v803
      %815 = vmatprep.subr.bf16.mxu0 0
      %816 = vmatpush1.bf16.xpose.msra.mxu0 %v806
      %817 = vmatprep.subr.bf16.mxu0 0
      %818 = vmatpush1.bf16.xpose.msra.mxu0 %v809
      %819 = vmatprep.subr.bf16.mxu0 0
      %820 = vmatpush1.bf16.xpose.msra.mxu0 0
      %821 = vmatprep.subr.bf16.mxu0 0
      %822 = vmatpush1.bf16.xpose.msra.mxu0 0
      %823 = vmatprep.subr.bf16.mxu0 0
      %824 = vmatpush1.bf16.xpose.msra.mxu0 0
      %825 = vmatprep.subr.bf16.mxu0 0
      %826 = vmatpush1.bf16.xpose.msra.mxu0 0
      %827 = vmatprep.subr.bf16.mxu0 0
      %828 = vmatpush1.bf16.xpose.msra.mxu0 0
      %829 = vmatprep.subr.bf16.mxu0 0
      %830 = vmatpush1.bf16.xpose.msra.mxu0 0
      %831 = vmatprep.subr.bf16.mxu0 0
      %832 = vmatpush1.bf16.xpose.msra.mxu0 0
      %833 = vmatprep.subr.bf16.mxu0 0
      %834 = vmatpush1.bf16.xpose.msra.mxu0 0
      %835 = vmatprep.subr.bf16.mxu0 0
      %836 = vmatpush1.bf16.xpose.msra.mxu0 0
      %837 = vmatprep.subr.bf16.mxu0 0
      %838 = vmatpush1.bf16.xpose.msra.mxu0 0
      %839 = vmatprep.subr.bf16.mxu0 0
      %840 = vmatpush1.bf16.xpose.msra.mxu0 0
      %841 = vmatprep.subr.bf16.mxu0 0
      %842 = vmatpush1.bf16.xpose.msra.mxu0 0
      %843 = vmatprep.mubr.bf16.mxu0 0
      %844 = vmatmul.mubr.bf16.gmra.mrb[0].mxu0 %v788
      %v845 = vpop.f32.mrb[0].mxu0
      %v846 = vadd.f32 0.0, %v845
      %v847 = vpop.f32.mrb[0].mxu0
      %v848 = vpop.f32.mrb[0].mxu0
      %v849 = vadd.f32 0.0, %v848
      %v850 = vpop.f32.mrb[0].mxu0
      %851 = vmatprep.mubr.bf16.mxu0 0
      %852 = vmatmul.mubr.bf16.gmra.mrb[0].mxu0 %v791
      %v853 = vpop.f32.mrb[0].mxu0
      %v854 = vadd.f32 0.0, %v853
      %v855 = vpop.f32.mrb[0].mxu0
      %v856 = vpop.f32.mrb[0].mxu0
      %v857 = vadd.f32 0.0, %v856
      %v858 = vpop.f32.mrb[0].mxu0
      %859 = vmatprep.mubr.bf16.mxu0 0
      %860 = vmatmul.mubr.bf16.gmra.mrb[0].mxu0 %v794
      %v861 = vpop.f32.mrb[0].mxu0
      %v862 = vadd.f32 0.0, %v861
      %v863 = vpop.f32.mrb[0].mxu0
      %v864 = vpop.f32.mrb[0].mxu0
      %v865 = vadd.f32 0.0, %v864
      %v866 = vpop.f32.mrb[0].mxu0
      %867 = vmatprep.mubr.bf16.mxu0 0
      %868 = vmatmul.mubr.bf16.gmra.mrb[0].mxu0 %v797
      %v869 = vpop.f32.mrb[0].mxu0
      %v870 = vadd.f32 0.0, %v869
      %v871 = vpop.f32.mrb[0].mxu0
      %v872 = vpop.f32.mrb[0].mxu0
      %v873 = vadd.f32 0.0, %v872
      %v874 = vpop.f32.mrb[0].mxu0
      %875 = vdwg.mxu0
      %v876 = vmul.f32 %v846, 0.17677669
      %v877 = vmul.f32 %v849, 0.17677669
      %v878 = vmul.f32 %v854, 0.17677669
      %v879 = vmul.f32 %v857, 0.17677669
      %v880 = vmul.f32 %v862, 0.17677669
      %v881 = vmul.f32 %v865, 0.17677669
      %v882 = vmul.f32 %v870, 0.17677669
      %v883 = vmul.f32 %v873, 0.17677669
      %v884 = vsel %vm581, %v876, -inf
      %885 = vmax.xlane.f32.xlu0 %v884
      %v886 = vpop.xlane.xlu0 %885
      %v887 = vsel %vm581, %v877, -inf
      %888 = vmax.xlane.f32.xlu0 %v887
      %v889 = vpop.xlane.xlu0 %888
      %v890 = vsel %vm581, %v878, -inf
      %891 = vmax.xlane.f32.xlu0 %v890
      %v892 = vpop.xlane.xlu0 %891
      %v893 = vsel %vm581, %v879, -inf
      %894 = vmax.xlane.f32.xlu0 %v893
      %v895 = vpop.xlane.xlu0 %894
      %v896 = vsel %vm581, %v880, -inf
      %897 = vmax.xlane.f32.xlu0 %v896
      %v898 = vpop.xlane.xlu0 %897
      %v899 = vsel %vm581, %v881, -inf
      %900 = vmax.xlane.f32.xlu0 %v899
      %v901 = vpop.xlane.xlu0 %900
      %v902 = vsel %vm581, %v882, -inf
      %903 = vmax.xlane.f32.xlu0 %v902
      %v904 = vpop.xlane.xlu0 %903
      %v905 = vsel %vm581, %v883, -inf
      %906 = vmax.xlane.f32.xlu0 %v905
      %v907 = vpop.xlane.xlu0 %906
      %v908 = vsub.f32 %v876, %v886
      %v909 = vsub.f32 %v877, %v889
      %v910 = vsub.f32 %v878, %v892
      %v911 = vsub.f32 %v879, %v895
      %v912 = vsub.f32 %v880, %v898
      %v913 = vsub.f32 %v881, %v901
      %v914 = vsub.f32 %v882, %v904
      %v915 = vsub.f32 %v883, %v907
      %v916 = vmul.f32 %v908, 1.442695
      %v917 = vpow.pop %v916
      %v918 = vmul.f32 %v909, 1.442695
      %v919 = vpow.pop %v918
      %v920 = vmul.f32 %v910, 1.442695
      %v921 = vpow.pop %v920
      %v922 = vmul.f32 %v911, 1.442695
      %v923 = vpow.pop %v922
      %v924 = vmul.f32 %v912, 1.442695
      %v925 = vpow.pop %v924
      %v926 = vmul.f32 %v913, 1.442695
      %v927 = vpow.pop %v926
      %v928 = vmul.f32 %v914, 1.442695
      %v929 = vpow.pop %v928
      %v930 = vmul.f32 %v915, 1.442695
      %v931 = vpow.pop %v930
      %v932 = vsel %vm581, %v917, 0.0
      %933 = vadd.xlane.f32.xlu0 %v932
      %v934 = vpop.xlane.xlu0 %933
      %v935 = vsel %vm581, %v919, 0.0
      %936 = vadd.xlane.f32.xlu0 %v935
      %v937 = vpop.xlane.xlu0 %936
      %v938 = vsel %vm581, %v921, 0.0
      %939 = vadd.xlane.f32.xlu0 %v938
      %v940 = vpop.xlane.xlu0 %939
      %v941 = vsel %vm581, %v923, 0.0
      %942 = vadd.xlane.f32.xlu0 %v941
      %v943 = vpop.xlane.xlu0 %942
      %v944 = vsel %vm581, %v925, 0.0
      %945 = vadd.xlane.f32.xlu0 %v944
      %v946 = vpop.xlane.xlu0 %945
      %v947 = vsel %vm581, %v927, 0.0
      %948 = vadd.xlane.f32.xlu0 %v947
      %v949 = vpop.xlane.xlu0 %948
      %v950 = vsel %vm581, %v929, 0.0
      %951 = vadd.xlane.f32.xlu0 %v950
      %v952 = vpop.xlane.xlu0 %951
      %v953 = vsel %vm581, %v931, 0.0
      %954 = vadd.xlane.f32.xlu0 %v953
      %v955 = vpop.xlane.xlu0 %954
      %v956 = vrcp.pop %v934
      %v957 = vmul.f32 %v917, %v956
      %v958 = vrcp.pop %v937
      %v959 = vmul.f32 %v919, %v958
      %v960 = vrcp.pop %v940
      %v961 = vmul.f32 %v921, %v960
      %v962 = vrcp.pop %v943
      %v963 = vmul.f32 %v923, %v962
      %v964 = vrcp.pop %v946
      %v965 = vmul.f32 %v925, %v964
      %v966 = vrcp.pop %v949
      %v967 = vmul.f32 %v927, %v966
      %v968 = vrcp.pop %v952
      %v969 = vmul.f32 %v929, %v968
      %v970 = vrcp.pop %v955
      %v971 = vmul.f32 %v931, %v970
      %v972 = vpack.c.bf16 %v959, %v957
      %v973 = vpack.c.bf16 %v963, %v961
      %v974 = vpack.c.bf16 %v967, %v965
      %v975 = vpack.c.bf16 %v971, %v969
      %976 = vrot.lane.b32.xlu0 %v467, 56
      %v977 = vpop.permute.xlu0 %976
      %978 = vrot.lane.b32.xlu0 %v468, 56
      %v979 = vpop.permute.xlu0 %978
      %980 = vrot.lane.b32.xlu0 %v469, 56
      %v981 = vpop.permute.xlu0 %980
      %982 = vrot.lane.b32.xlu0 %v470, 56
      %v983 = vpop.permute.xlu0 %982
      %v989 = vsel %vm581, %v972, 0
      %v992 = vsel %vm581, %v973, 0
      %v995 = vsel %vm581, %v974, 0
      %v998 = vsel %vm581, %v975, 0
      %1000 = vmatprep.subr.bf16.mxu0 0
      %1001 = vmatpush1.bf16.msra.mxu0 %v977
      %1002 = vmatprep.subr.bf16.mxu0 0
      %1003 = vmatpush1.bf16.msra.mxu0 %v979
      %1004 = vmatprep.subr.bf16.mxu0 0
      %1005 = vmatpush1.bf16.msra.mxu0 %v981
      %1006 = vmatprep.subr.bf16.mxu0 0
      %1007 = vmatpush1.bf16.msra.mxu0 %v983
      %1008 = vmatprep.subr.bf16.mxu0 0
      %1009 = vmatpush1.bf16.msra.mxu0 0
      %1010 = vmatprep.subr.bf16.mxu0 0
      %1011 = vmatpush1.bf16.msra.mxu0 0
      %1012 = vmatprep.subr.bf16.mxu0 0
      %1013 = vmatpush1.bf16.msra.mxu0 0
      %1014 = vmatprep.subr.bf16.mxu0 0
      %1015 = vmatpush1.bf16.msra.mxu0 0
      %1016 = vmatprep.subr.bf16.mxu0 0
      %1017 = vmatpush1.bf16.msra.mxu0 0
      %1018 = vmatprep.subr.bf16.mxu0 0
      %1019 = vmatpush1.bf16.msra.mxu0 0
      %1020 = vmatprep.subr.bf16.mxu0 0
      %1021 = vmatpush1.bf16.msra.mxu0 0
      %1022 = vmatprep.subr.bf16.mxu0 0
      %1023 = vmatpush1.bf16.msra.mxu0 0
      %1024 = vmatprep.subr.bf16.mxu0 0
      %1025 = vmatpush1.bf16.msra.mxu0 0
      %1026 = vmatprep.subr.bf16.mxu0 0
      %1027 = vmatpush1.bf16.msra.mxu0 0
      %1028 = vmatprep.subr.bf16.mxu0 0
      %1029 = vmatpush1.bf16.msra.mxu0 0
      %1030 = vmatprep.subr.bf16.mxu0 0
      %1031 = vmatpush1.bf16.msra.mxu0 0
      %1032 = vmatprep.mubr.bf16.mxu0 0
      %1033 = vmatmul.mubr.bf16.gmra.mrb[0].mxu0 %v989
      %v1034 = vpop.f32.mrb[0].mxu0
      %v1035 = vadd.f32 0.0, %v1034
      %v1036 = vpop.f32.mrb[0].mxu0
      %v1037 = vpop.f32.mrb[0].mxu0
      %v1038 = vadd.f32 0.0, %v1037
      %v1039 = vpop.f32.mrb[0].mxu0
      %1040 = vmatprep.mubr.bf16.mxu0 0
      %1041 = vmatmul.mubr.bf16.gmra.mrb[0].mxu0 %v992
      %v1042 = vpop.f32.mrb[0].mxu0
      %v1043 = vadd.f32 0.0, %v1042
      %v1044 = vpop.f32.mrb[0].mxu0
      %v1045 = vpop.f32.mrb[0].mxu0
      %v1046 = vadd.f32 0.0, %v1045
      %v1047 = vpop.f32.mrb[0].mxu0
      %1048 = vmatprep.mubr.bf16.mxu0 0
      %1049 = vmatmul.mubr.bf16.gmra.mrb[0].mxu0 %v995
      %v1050 = vpop.f32.mrb[0].mxu0
      %v1051 = vadd.f32 0.0, %v1050
      %v1052 = vpop.f32.mrb[0].mxu0
      %v1053 = vpop.f32.mrb[0].mxu0
      %v1054 = vadd.f32 0.0, %v1053
      %v1055 = vpop.f32.mrb[0].mxu0
      %1056 = vmatprep.mubr.bf16.mxu0 0
      %1057 = vmatmul.mubr.bf16.gmra.mrb[0].mxu0 %v998
      %v1058 = vpop.f32.mrb[0].mxu0
      %v1059 = vadd.f32 0.0, %v1058
      %v1060 = vpop.f32.mrb[0].mxu0
      %v1061 = vpop.f32.mrb[0].mxu0
      %v1062 = vadd.f32 0.0, %v1061
      %v1063 = vpop.f32.mrb[0].mxu0
      %1064 = vdwg.mxu0
      %1073 = vrot.lane.b32.xlu0 %v1035, 8
      %v1074 = vpop.permute.xlu0 %1073
      %1075 = vrot.lane.b32.xlu0 %v1038, 8
      %v1076 = vpop.permute.xlu0 %1075
      %1077 = vrot.lane.b32.xlu0 %v1043, 8
      %v1078 = vpop.permute.xlu0 %1077
      %1079 = vrot.lane.b32.xlu0 %v1046, 8
      %v1080 = vpop.permute.xlu0 %1079
      %1081 = vrot.lane.b32.xlu0 %v1051, 8
      %v1082 = vpop.permute.xlu0 %1081
      %1083 = vrot.lane.b32.xlu0 %v1054, 8
      %v1084 = vpop.permute.xlu0 %1083
      %1085 = vrot.lane.b32.xlu0 %v1059, 8
      %v1086 = vpop.permute.xlu0 %1085
      %1087 = vrot.lane.b32.xlu0 %v1062, 8
      %v1088 = vpop.permute.xlu0 %1087
      %vm1097 = vcmask 130112
      %1098 = vst.msk [vmem:[#allocation2] sm:$0xff] %vm1097, %v1074
      %1099 = vst.msk [vmem:[#allocation2 + $0x8] sm:$0xff] %vm1097, %v1076
      %1100 = vst.msk [vmem:[#allocation2 + $0x10] sm:$0xff] %vm1097, %v1078
      %1101 = vst.msk [vmem:[#allocation2 + $0x18] sm:$0xff] %vm1097, %v1080
      %1102 = vst.msk [vmem:[#allocation2 + $0x20] sm:$0xff] %vm1097, %v1082
      %1103 = vst.msk [vmem:[#allocation2 + $0x28] sm:$0xff] %vm1097, %v1084
      %1104 = vst.msk [vmem:[#allocation2 + $0x30] sm:$0xff] %vm1097, %v1086
      %1105 = vst.msk [vmem:[#allocation2 + $0x38] sm:$0xff] %vm1097, %v1088
      %1106 = vrot.lane.b32.xlu0 %v467, 112
      %v1107 = vpop.permute.xlu0 %1106
      %1108 = vrot.lane.b32.xlu0 %v468, 112
      %v1109 = vpop.permute.xlu0 %1108
      %1110 = vrot.lane.b32.xlu0 %v469, 112
      %v1111 = vpop.permute.xlu0 %1110
      %1112 = vrot.lane.b32.xlu0 %v470, 112
      %v1113 = vpop.permute.xlu0 %1112
      %1114 = vrot.lane.b32.xlu0 %v467, 80
      %v1115 = vpop.permute.xlu0 %1114
      %1116 = vrot.lane.b32.xlu0 %v468, 80
      %v1117 = vpop.permute.xlu0 %1116
      %1118 = vrot.lane.b32.xlu0 %v469, 80
      %v1119 = vpop.permute.xlu0 %1118
      %1120 = vrot.lane.b32.xlu0 %v470, 80
      %v1121 = vpop.permute.xlu0 %1120
      %v1123 = vsel %vm483, %v1107, 0
      %v1126 = vsel %vm483, %v1109, 0
      %v1129 = vsel %vm483, %v1111, 0
      %v1132 = vsel %vm483, %v1113, 0
      %v1135 = vsel %vm483, %v1115, 0
      %v1138 = vsel %vm483, %v1117, 0
      %v1141 = vsel %vm483, %v1119, 0
      %v1144 = vsel %vm483, %v1121, 0
      %1146 = vmatprep.subr.bf16.mxu0 0
      %1147 = vmatpush1.bf16.xpose.msra.mxu0 %v1135
      %1148 = vmatprep.subr.bf16.mxu0 0
      %1149 = vmatpush1.bf16.xpose.msra.mxu0 %v1138
      %1150 = vmatprep.subr.bf16.mxu0 0
      %1151 = vmatpush1.bf16.xpose.msra.mxu0 %v1141
      %1152 = vmatprep.subr.bf16.mxu0 0
      %1153 = vmatpush1.bf16.xpose.msra.mxu0 %v1144
      %1154 = vmatprep.subr.bf16.mxu0 0
      %1155 = vmatpush1.bf16.xpose.msra.mxu0 0
      %1156 = vmatprep.subr.bf16.mxu0 0
      %1157 = vmatpush1.bf16.xpose.msra.mxu0 0
      %1158 = vmatprep.subr.bf16.mxu0 0
      %1159 = vmatpush1.bf16.xpose.msra.mxu0 0
      %1160 = vmatprep.subr.bf16.mxu0 0
      %1161 = vmatpush1.bf16.xpose.msra.mxu0 0
      %1162 = vmatprep.subr.bf16.mxu0 0
      %1163 = vmatpush1.bf16.xpose.msra.mxu0 0
      %1164 = vmatprep.subr.bf16.mxu0 0
      %1165 = vmatpush1.bf16.xpose.msra.mxu0 0
      %1166 = vmatprep.subr.bf16.mxu0 0
      %1167 = vmatpush1.bf16.xpose.msra.mxu0 0
      %1168 = vmatprep.subr.bf16.mxu0 0
      %1169 = vmatpush1.bf16.xpose.msra.mxu0 0
      %1170 = vmatprep.subr.bf16.mxu0 0
      %1171 = vmatpush1.bf16.xpose.msra.mxu0 0
      %1172 = vmatprep.subr.bf16.mxu0 0
      %1173 = vmatpush1.bf16.xpose.msra.mxu0 0
      %1174 = vmatprep.subr.bf16.mxu0 0
      %1175 = vmatpush1.bf16.xpose.msra.mxu0 0
      %1176 = vmatprep.subr.bf16.mxu0 0
      %1177 = vmatpush1.bf16.xpose.msra.mxu0 0
      %1178 = vmatprep.mubr.bf16.mxu0 0
      %1179 = vmatmul.mubr.bf16.gmra.mrb[0].mxu0 %v1123
      %v1180 = vpop.f32.mrb[0].mxu0
      %v1181 = vadd.f32 0.0, %v1180
      %v1182 = vpop.f32.mrb[0].mxu0
      %v1183 = vpop.f32.mrb[0].mxu0
      %v1184 = vadd.f32 0.0, %v1183
      %v1185 = vpop.f32.mrb[0].mxu0
      %1186 = vmatprep.mubr.bf16.mxu0 0
      %1187 = vmatmul.mubr.bf16.gmra.mrb[0].mxu0 %v1126
      %v1188 = vpop.f32.mrb[0].mxu0
      %v1189 = vadd.f32 0.0, %v1188
      %v1190 = vpop.f32.mrb[0].mxu0
      %v1191 = vpop.f32.mrb[0].mxu0
      %v1192 = vadd.f32 0.0, %v1191
      %v1193 = vpop.f32.mrb[0].mxu0
      %1194 = vmatprep.mubr.bf16.mxu0 0
      %1195 = vmatmul.mubr.bf16.gmra.mrb[0].mxu0 %v1129
      %v1196 = vpop.f32.mrb[0].mxu0
      %v1197 = vadd.f32 0.0, %v1196
      %v1198 = vpop.f32.mrb[0].mxu0
      %v1199 = vpop.f32.mrb[0].mxu0
      %v1200 = vadd.f32 0.0, %v1199
      %v1201 = vpop.f32.mrb[0].mxu0
      %1202 = vmatprep.mubr.bf16.mxu0 0
      %1203 = vmatmul.mubr.bf16.gmra.mrb[0].mxu0 %v1132
      %v1204 = vpop.f32.mrb[0].mxu0
      %v1205 = vadd.f32 0.0, %v1204
      %v1206 = vpop.f32.mrb[0].mxu0
      %v1207 = vpop.f32.mrb[0].mxu0
      %v1208 = vadd.f32 0.0, %v1207
      %v1209 = vpop.f32.mrb[0].mxu0
      %1210 = vdwg.mxu0
      %v1211 = vmul.f32 %v1181, 0.17677669
      %v1212 = vmul.f32 %v1184, 0.17677669
      %v1213 = vmul.f32 %v1189, 0.17677669
      %v1214 = vmul.f32 %v1192, 0.17677669
      %v1215 = vmul.f32 %v1197, 0.17677669
      %v1216 = vmul.f32 %v1200, 0.17677669
      %v1217 = vmul.f32 %v1205, 0.17677669
      %v1218 = vmul.f32 %v1208, 0.17677669
      %v1219 = vsel %vm581, %v1211, -inf
      %1220 = vmax.xlane.f32.xlu0 %v1219
      %v1221 = vpop.xlane.xlu0 %1220
      %v1222 = vsel %vm581, %v1212, -inf
      %1223 = vmax.xlane.f32.xlu0 %v1222
      %v1224 = vpop.xlane.xlu0 %1223
      %v1225 = vsel %vm581, %v1213, -inf
      %1226 = vmax.xlane.f32.xlu0 %v1225
      %v1227 = vpop.xlane.xlu0 %1226
      %v1228 = vsel %vm581, %v1214, -inf
      %1229 = vmax.xlane.f32.xlu0 %v1228
      %v1230 = vpop.xlane.xlu0 %1229
      %v1231 = vsel %vm581, %v1215, -inf
      %1232 = vmax.xlane.f32.xlu0 %v1231
      %v1233 = vpop.xlane.xlu0 %1232
      %v1234 = vsel %vm581, %v1216, -inf
      %1235 = vmax.xlane.f32.xlu0 %v1234
      %v1236 = vpop.xlane.xlu0 %1235
      %v1237 = vsel %vm581, %v1217, -inf
      %1238 = vmax.xlane.f32.xlu0 %v1237
      %v1239 = vpop.xlane.xlu0 %1238
      %v1240 = vsel %vm581, %v1218, -inf
      %1241 = vmax.xlane.f32.xlu0 %v1240
      %v1242 = vpop.xlane.xlu0 %1241
      %v1243 = vsub.f32 %v1211, %v1221
      %v1244 = vsub.f32 %v1212, %v1224
      %v1245 = vsub.f32 %v1213, %v1227
      %v1246 = vsub.f32 %v1214, %v1230
      %v1247 = vsub.f32 %v1215, %v1233
      %v1248 = vsub.f32 %v1216, %v1236
      %v1249 = vsub.f32 %v1217, %v1239
      %v1250 = vsub.f32 %v1218, %v1242
      %v1251 = vmul.f32 %v1243, 1.442695
      %v1252 = vpow.pop %v1251
      %v1253 = vmul.f32 %v1244, 1.442695
      %v1254 = vpow.pop %v1253
      %v1255 = vmul.f32 %v1245, 1.442695
      %v1256 = vpow.pop %v1255
      %v1257 = vmul.f32 %v1246, 1.442695
      %v1258 = vpow.pop %v1257
      %v1259 = vmul.f32 %v1247, 1.442695
      %v1260 = vpow.pop %v1259
      %v1261 = vmul.f32 %v1248, 1.442695
      %v1262 = vpow.pop %v1261
      %v1263 = vmul.f32 %v1249, 1.442695
      %v1264 = vpow.pop %v1263
      %v1265 = vmul.f32 %v1250, 1.442695
      %v1266 = vpow.pop %v1265
      %v1267 = vsel %vm581, %v1252, 0.0
      %1268 = vadd.xlane.f32.xlu0 %v1267
      %v1269 = vpop.xlane.xlu0 %1268
      %v1270 = vsel %vm581, %v1254, 0.0
      %1271 = vadd.xlane.f32.xlu0 %v1270
      %v1272 = vpop.xlane.xlu0 %1271
      %v1273 = vsel %vm581, %v1256, 0.0
      %1274 = vadd.xlane.f32.xlu0 %v1273
      %v1275 = vpop.xlane.xlu0 %1274
      %v1276 = vsel %vm581, %v1258, 0.0
      %1277 = vadd.xlane.f32.xlu0 %v1276
      %v1278 = vpop.xlane.xlu0 %1277
      %v1279 = vsel %vm581, %v1260, 0.0
      %1280 = vadd.xlane.f32.xlu0 %v1279
      %v1281 = vpop.xlane.xlu0 %1280
      %v1282 = vsel %vm581, %v1262, 0.0
      %1283 = vadd.xlane.f32.xlu0 %v1282
      %v1284 = vpop.xlane.xlu0 %1283
      %v1285 = vsel %vm581, %v1264, 0.0
      %1286 = vadd.xlane.f32.xlu0 %v1285
      %v1287 = vpop.xlane.xlu0 %1286
      %v1288 = vsel %vm581, %v1266, 0.0
      %1289 = vadd.xlane.f32.xlu0 %v1288
      %v1290 = vpop.xlane.xlu0 %1289
      %v1291 = vrcp.pop %v1269
      %v1292 = vmul.f32 %v1252, %v1291
      %v1293 = vrcp.pop %v1272
      %v1294 = vmul.f32 %v1254, %v1293
      %v1295 = vrcp.pop %v1275
      %v1296 = vmul.f32 %v1256, %v1295
      %v1297 = vrcp.pop %v1278
      %v1298 = vmul.f32 %v1258, %v1297
      %v1299 = vrcp.pop %v1281
      %v1300 = vmul.f32 %v1260, %v1299
      %v1301 = vrcp.pop %v1284
      %v1302 = vmul.f32 %v1262, %v1301
      %v1303 = vrcp.pop %v1287
      %v1304 = vmul.f32 %v1264, %v1303
      %v1305 = vrcp.pop %v1290
      %v1306 = vmul.f32 %v1266, %v1305
      %v1307 = vpack.c.bf16 %v1294, %v1292
      %v1308 = vpack.c.bf16 %v1298, %v1296
      %v1309 = vpack.c.bf16 %v1302, %v1300
      %v1310 = vpack.c.bf16 %v1306, %v1304
      %1311 = vrot.lane.b32.xlu0 %v467, 48
      %v1312 = vpop.permute.xlu0 %1311
      %1313 = vrot.lane.b32.xlu0 %v468, 48
      %v1314 = vpop.permute.xlu0 %1313
      %1315 = vrot.lane.b32.xlu0 %v469, 48
      %v1316 = vpop.permute.xlu0 %1315
      %1317 = vrot.lane.b32.xlu0 %v470, 48
      %v1318 = vpop.permute.xlu0 %1317
      %v1324 = vsel %vm581, %v1307, 0
      %v1327 = vsel %vm581, %v1308, 0
      %v1330 = vsel %vm581, %v1309, 0
      %v1333 = vsel %vm581, %v1310, 0
      %1335 = vmatprep.subr.bf16.mxu0 0
      %1336 = vmatpush1.bf16.msra.mxu0 %v1312
      %1337 = vmatprep.subr.bf16.mxu0 0
      %1338 = vmatpush1.bf16.msra.mxu0 %v1314
      %1339 = vmatprep.subr.bf16.mxu0 0
      %1340 = vmatpush1.bf16.msra.mxu0 %v1316
      %1341 = vmatprep.subr.bf16.mxu0 0
      %1342 = vmatpush1.bf16.msra.mxu0 %v1318
      %1343 = vmatprep.subr.bf16.mxu0 0
      %1344 = vmatpush1.bf16.msra.mxu0 0
      %1345 = vmatprep.subr.bf16.mxu0 0
      %1346 = vmatpush1.bf16.msra.mxu0 0
      %1347 = vmatprep.subr.bf16.mxu0 0
      %1348 = vmatpush1.bf16.msra.mxu0 0
      %1349 = vmatprep.subr.bf16.mxu0 0
      %1350 = vmatpush1.bf16.msra.mxu0 0
      %1351 = vmatprep.subr.bf16.mxu0 0
      %1352 = vmatpush1.bf16.msra.mxu0 0
      %1353 = vmatprep.subr.bf16.mxu0 0
      %1354 = vmatpush1.bf16.msra.mxu0 0
      %1355 = vmatprep.subr.bf16.mxu0 0
      %1356 = vmatpush1.bf16.msra.mxu0 0
      %1357 = vmatprep.subr.bf16.mxu0 0
      %1358 = vmatpush1.bf16.msra.mxu0 0
      %1359 = vmatprep.subr.bf16.mxu0 0
      %1360 = vmatpush1.bf16.msra.mxu0 0
      %1361 = vmatprep.subr.bf16.mxu0 0
      %1362 = vmatpush1.bf16.msra.mxu0 0
      %1363 = vmatprep.subr.bf16.mxu0 0
      %1364 = vmatpush1.bf16.msra.mxu0 0
      %1365 = vmatprep.subr.bf16.mxu0 0
      %1366 = vmatpush1.bf16.msra.mxu0 0
      %1367 = vmatprep.mubr.bf16.mxu0 0
      %1368 = vmatmul.mubr.bf16.gmra.mrb[0].mxu0 %v1324
      %v1369 = vpop.f32.mrb[0].mxu0
      %v1370 = vadd.f32 0.0, %v1369
      %v1371 = vpop.f32.mrb[0].mxu0
      %v1372 = vpop.f32.mrb[0].mxu0
      %v1373 = vadd.f32 0.0, %v1372
      %v1374 = vpop.f32.mrb[0].mxu0
      %1375 = vmatprep.mubr.bf16.mxu0 0
      %1376 = vmatmul.mubr.bf16.gmra.mrb[0].mxu0 %v1327
      %v1377 = vpop.f32.mrb[0].mxu0
      %v1378 = vadd.f32 0.0, %v1377
      %v1379 = vpop.f32.mrb[0].mxu0
      %v1380 = vpop.f32.mrb[0].mxu0
      %v1381 = vadd.f32 0.0, %v1380
      %v1382 = vpop.f32.mrb[0].mxu0
      %1383 = vmatprep.mubr.bf16.mxu0 0
      %1384 = vmatmul.mubr.bf16.gmra.mrb[0].mxu0 %v1330
      %v1385 = vpop.f32.mrb[0].mxu0
      %v1386 = vadd.f32 0.0, %v1385
      %v1387 = vpop.f32.mrb[0].mxu0
      %v1388 = vpop.f32.mrb[0].mxu0
      %v1389 = vadd.f32 0.0, %v1388
      %v1390 = vpop.f32.mrb[0].mxu0
      %1391 = vmatprep.mubr.bf16.mxu0 0
      %1392 = vmatmul.mubr.bf16.gmra.mrb[0].mxu0 %v1333
      %v1393 = vpop.f32.mrb[0].mxu0
      %v1394 = vadd.f32 0.0, %v1393
      %v1395 = vpop.f32.mrb[0].mxu0
      %v1396 = vpop.f32.mrb[0].mxu0
      %v1397 = vadd.f32 0.0, %v1396
      %v1398 = vpop.f32.mrb[0].mxu0
      %1399 = vdwg.mxu0
      %1408 = vrot.lane.b32.xlu0 %v1370, 16
      %v1409 = vpop.permute.xlu0 %1408
      %1410 = vrot.lane.b32.xlu0 %v1373, 16
      %v1411 = vpop.permute.xlu0 %1410
      %1412 = vrot.lane.b32.xlu0 %v1378, 16
      %v1413 = vpop.permute.xlu0 %1412
      %1414 = vrot.lane.b32.xlu0 %v1381, 16
      %v1415 = vpop.permute.xlu0 %1414
      %1416 = vrot.lane.b32.xlu0 %v1386, 16
      %v1417 = vpop.permute.xlu0 %1416
      %1418 = vrot.lane.b32.xlu0 %v1389, 16
      %v1419 = vpop.permute.xlu0 %1418
      %1420 = vrot.lane.b32.xlu0 %v1394, 16
      %v1421 = vpop.permute.xlu0 %1420
      %1422 = vrot.lane.b32.xlu0 %v1397, 16
      %v1423 = vpop.permute.xlu0 %1422
      %vm1432 = vcmask 195712
      %1433 = vst.msk [vmem:[#allocation2] sm:$0xff] %vm1432, %v1409
      %1434 = vst.msk [vmem:[#allocation2 + $0x8] sm:$0xff] %vm1432, %v1411
      %1435 = vst.msk [vmem:[#allocation2 + $0x10] sm:$0xff] %vm1432, %v1413
      %1436 = vst.msk [vmem:[#allocation2 + $0x18] sm:$0xff] %vm1432, %v1415
      %1437 = vst.msk [vmem:[#allocation2 + $0x20] sm:$0xff] %vm1432, %v1417
      %1438 = vst.msk [vmem:[#allocation2 + $0x28] sm:$0xff] %vm1432, %v1419
      %1439 = vst.msk [vmem:[#allocation2 + $0x30] sm:$0xff] %vm1432, %v1421
      %1440 = vst.msk [vmem:[#allocation2 + $0x38] sm:$0xff] %vm1432, %v1423
      %1441 = vrot.lane.b32.xlu0 %v467, 104
      %v1442 = vpop.permute.xlu0 %1441
      %1443 = vrot.lane.b32.xlu0 %v468, 104
      %v1444 = vpop.permute.xlu0 %1443
      %1445 = vrot.lane.b32.xlu0 %v469, 104
      %v1446 = vpop.permute.xlu0 %1445
      %1447 = vrot.lane.b32.xlu0 %v470, 104
      %v1448 = vpop.permute.xlu0 %1447
      %1449 = vrot.lane.b32.xlu0 %v467, 72
      %v1450 = vpop.permute.xlu0 %1449
      %1451 = vrot.lane.b32.xlu0 %v468, 72
      %v1452 = vpop.permute.xlu0 %1451
      %1453 = vrot.lane.b32.xlu0 %v469, 72
      %v1454 = vpop.permute.xlu0 %1453
      %1455 = vrot.lane.b32.xlu0 %v470, 72
      %v1456 = vpop.permute.xlu0 %1455
      %v1458 = vsel %vm483, %v1442, 0
      %v1461 = vsel %vm483, %v1444, 0
      %v1464 = vsel %vm483, %v1446, 0
      %v1467 = vsel %vm483, %v1448, 0
      %v1470 = vsel %vm483, %v1450, 0
      %v1473 = vsel %vm483, %v1452, 0
      %v1476 = vsel %vm483, %v1454, 0
      %v1479 = vsel %vm483, %v1456, 0
      %1481 = vmatprep.subr.bf16.mxu0 0
      %1482 = vmatpush1.bf16.xpose.msra.mxu0 %v1470
      %1483 = vmatprep.subr.bf16.mxu0 0
      %1484 = vmatpush1.bf16.xpose.msra.mxu0 %v1473
      %1485 = vmatprep.subr.bf16.mxu0 0
      %1486 = vmatpush1.bf16.xpose.msra.mxu0 %v1476
      %1487 = vmatprep.subr.bf16.mxu0 0
      %1488 = vmatpush1.bf16.xpose.msra.mxu0 %v1479
      %1489 = vmatprep.subr.bf16.mxu0 0
      %1490 = vmatpush1.bf16.xpose.msra.mxu0 0
      %1491 = vmatprep.subr.bf16.mxu0 0
      %1492 = vmatpush1.bf16.xpose.msra.mxu0 0
      %1493 = vmatprep.subr.bf16.mxu0 0
      %1494 = vmatpush1.bf16.xpose.msra.mxu0 0
      %1495 = vmatprep.subr.bf16.mxu0 0
      %1496 = vmatpush1.bf16.xpose.msra.mxu0 0
      %1497 = vmatprep.subr.bf16.mxu0 0
      %1498 = vmatpush1.bf16.xpose.msra.mxu0 0
      %1499 = vmatprep.subr.bf16.mxu0 0
      %1500 = vmatpush1.bf16.xpose.msra.mxu0 0
      %1501 = vmatprep.subr.bf16.mxu0 0
      %1502 = vmatpush1.bf16.xpose.msra.mxu0 0
      %1503 = vmatprep.subr.bf16.mxu0 0
      %1504 = vmatpush1.bf16.xpose.msra.mxu0 0
      %1505 = vmatprep.subr.bf16.mxu0 0
      %1506 = vmatpush1.bf16.xpose.msra.mxu0 0
      %1507 = vmatprep.subr.bf16.mxu0 0
      %1508 = vmatpush1.bf16.xpose.msra.mxu0 0
      %1509 = vmatprep.subr.bf16.mxu0 0
      %1510 = vmatpush1.bf16.xpose.msra.mxu0 0
      %1511 = vmatprep.subr.bf16.mxu0 0
      %1512 = vmatpush1.bf16.xpose.msra.mxu0 0
      %1513 = vmatprep.mubr.bf16.mxu0 0
      %1514 = vmatmul.mubr.bf16.gmra.mrb[0].mxu0 %v1458
      %v1515 = vpop.f32.mrb[0].mxu0
      %v1516 = vadd.f32 0.0, %v1515
      %v1517 = vpop.f32.mrb[0].mxu0
      %v1518 = vpop.f32.mrb[0].mxu0
      %v1519 = vadd.f32 0.0, %v1518
      %v1520 = vpop.f32.mrb[0].mxu0
      %1521 = vmatprep.mubr.bf16.mxu0 0
      %1522 = vmatmul.mubr.bf16.gmra.mrb[0].mxu0 %v1461
      %v1523 = vpop.f32.mrb[0].mxu0
      %v1524 = vadd.f32 0.0, %v1523
      %v1525 = vpop.f32.mrb[0].mxu0
      %v1526 = vpop.f32.mrb[0].mxu0
      %v1527 = vadd.f32 0.0, %v1526
      %v1528 = vpop.f32.mrb[0].mxu0
      %1529 = vmatprep.mubr.bf16.mxu0 0
      %1530 = vmatmul.mubr.bf16.gmra.mrb[0].mxu0 %v1464
      %v1531 = vpop.f32.mrb[0].mxu0
      %v1532 = vadd.f32 0.0, %v1531
      %v1533 = vpop.f32.mrb[0].mxu0
      %v1534 = vpop.f32.mrb[0].mxu0
      %v1535 = vadd.f32 0.0, %v1534
      %v1536 = vpop.f32.mrb[0].mxu0
      %1537 = vmatprep.mubr.bf16.mxu0 0
      %1538 = vmatmul.mubr.bf16.gmra.mrb[0].mxu0 %v1467
      %v1539 = vpop.f32.mrb[0].mxu0
      %v1540 = vadd.f32 0.0, %v1539
      %v1541 = vpop.f32.mrb[0].mxu0
      %v1542 = vpop.f32.mrb[0].mxu0
      %v1543 = vadd.f32 0.0, %v1542
      %v1544 = vpop.f32.mrb[0].mxu0
      %1545 = vdwg.mxu0
      %v1546 = vmul.f32 %v1516, 0.17677669
      %v1547 = vmul.f32 %v1519, 0.17677669
      %v1548 = vmul.f32 %v1524, 0.17677669
      %v1549 = vmul.f32 %v1527, 0.17677669
      %v1550 = vmul.f32 %v1532, 0.17677669
      %v1551 = vmul.f32 %v1535, 0.17677669
      %v1552 = vmul.f32 %v1540, 0.17677669
      %v1553 = vmul.f32 %v1543, 0.17677669
      %v1554 = vsel %vm581, %v1546, -inf
      %1555 = vmax.xlane.f32.xlu0 %v1554
      %v1556 = vpop.xlane.xlu0 %1555
      %v1557 = vsel %vm581, %v1547, -inf
      %1558 = vmax.xlane.f32.xlu0 %v1557
      %v1559 = vpop.xlane.xlu0 %1558
      %v1560 = vsel %vm581, %v1548, -inf
      %1561 = vmax.xlane.f32.xlu0 %v1560
      %v1562 = vpop.xlane.xlu0 %1561
      %v1563 = vsel %vm581, %v1549, -inf
      %1564 = vmax.xlane.f32.xlu0 %v1563
      %v1565 = vpop.xlane.xlu0 %1564
      %v1566 = vsel %vm581, %v1550, -inf
      %1567 = vmax.xlane.f32.xlu0 %v1566
      %v1568 = vpop.xlane.xlu0 %1567
      %v1569 = vsel %vm581, %v1551, -inf
      %1570 = vmax.xlane.f32.xlu0 %v1569
      %v1571 = vpop.xlane.xlu0 %1570
      %v1572 = vsel %vm581, %v1552, -inf
      %1573 = vmax.xlane.f32.xlu0 %v1572
      %v1574 = vpop.xlane.xlu0 %1573
      %v1575 = vsel %vm581, %v1553, -inf
      %1576 = vmax.xlane.f32.xlu0 %v1575
      %v1577 = vpop.xlane.xlu0 %1576
      %v1578 = vsub.f32 %v1546, %v1556
      %v1579 = vsub.f32 %v1547, %v1559
      %v1580 = vsub.f32 %v1548, %v1562
      %v1581 = vsub.f32 %v1549, %v1565
      %v1582 = vsub.f32 %v1550, %v1568
      %v1583 = vsub.f32 %v1551, %v1571
      %v1584 = vsub.f32 %v1552, %v1574
      %v1585 = vsub.f32 %v1553, %v1577
      %v1586 = vmul.f32 %v1578, 1.442695
      %v1587 = vpow.pop %v1586
      %v1588 = vmul.f32 %v1579, 1.442695
      %v1589 = vpow.pop %v1588
      %v1590 = vmul.f32 %v1580, 1.442695
      %v1591 = vpow.pop %v1590
      %v1592 = vmul.f32 %v1581, 1.442695
      %v1593 = vpow.pop %v1592
      %v1594 = vmul.f32 %v1582, 1.442695
      %v1595 = vpow.pop %v1594
      %v1596 = vmul.f32 %v1583, 1.442695
      %v1597 = vpow.pop %v1596
      %v1598 = vmul.f32 %v1584, 1.442695
      %v1599 = vpow.pop %v1598
      %v1600 = vmul.f32 %v1585, 1.442695
      %v1601 = vpow.pop %v1600
      %v1602 = vsel %vm581, %v1587, 0.0
      %1603 = vadd.xlane.f32.xlu0 %v1602
      %v1604 = vpop.xlane.xlu0 %1603
      %v1605 = vsel %vm581, %v1589, 0.0
      %1606 = vadd.xlane.f32.xlu0 %v1605
      %v1607 = vpop.xlane.xlu0 %1606
      %v1608 = vsel %vm581, %v1591, 0.0
      %1609 = vadd.xlane.f32.xlu0 %v1608
      %v1610 = vpop.xlane.xlu0 %1609
      %v1611 = vsel %vm581, %v1593, 0.0
      %1612 = vadd.xlane.f32.xlu0 %v1611
      %v1613 = vpop.xlane.xlu0 %1612
      %v1614 = vsel %vm581, %v1595, 0.0
      %1615 = vadd.xlane.f32.xlu0 %v1614
      %v1616 = vpop.xlane.xlu0 %1615
      %v1617 = vsel %vm581, %v1597, 0.0
      %1618 = vadd.xlane.f32.xlu0 %v1617
      %v1619 = vpop.xlane.xlu0 %1618
      %v1620 = vsel %vm581, %v1599, 0.0
      %1621 = vadd.xlane.f32.xlu0 %v1620
      %v1622 = vpop.xlane.xlu0 %1621
      %v1623 = vsel %vm581, %v1601, 0.0
      %1624 = vadd.xlane.f32.xlu0 %v1623
      %v1625 = vpop.xlane.xlu0 %1624
      %v1626 = vrcp.pop %v1604
      %v1627 = vmul.f32 %v1587, %v1626
      %v1628 = vrcp.pop %v1607
      %v1629 = vmul.f32 %v1589, %v1628
      %v1630 = vrcp.pop %v1610
      %v1631 = vmul.f32 %v1591, %v1630
      %v1632 = vrcp.pop %v1613
      %v1633 = vmul.f32 %v1593, %v1632
      %v1634 = vrcp.pop %v1616
      %v1635 = vmul.f32 %v1595, %v1634
      %v1636 = vrcp.pop %v1619
      %v1637 = vmul.f32 %v1597, %v1636
      %v1638 = vrcp.pop %v1622
      %v1639 = vmul.f32 %v1599, %v1638
      %v1640 = vrcp.pop %v1625
      %v1641 = vmul.f32 %v1601, %v1640
      %v1642 = vpack.c.bf16 %v1629, %v1627
      %v1643 = vpack.c.bf16 %v1633, %v1631
      %v1644 = vpack.c.bf16 %v1637, %v1635
      %v1645 = vpack.c.bf16 %v1641, %v1639
      %1646 = vrot.lane.b32.xlu0 %v467, 40
      %v1647 = vpop.permute.xlu0 %1646
      %1648 = vrot.lane.b32.xlu0 %v468, 40
      %v1649 = vpop.permute.xlu0 %1648
      %1650 = vrot.lane.b32.xlu0 %v469, 40
      %v1651 = vpop.permute.xlu0 %1650
      %1652 = vrot.lane.b32.xlu0 %v470, 40
      %v1653 = vpop.permute.xlu0 %1652
      %v1659 = vsel %vm581, %v1642, 0
      %v1662 = vsel %vm581, %v1643, 0
      %v1665 = vsel %vm581, %v1644, 0
      %v1668 = vsel %vm581, %v1645, 0
      %1670 = vmatprep.subr.bf16.mxu0 0
      %1671 = vmatpush1.bf16.msra.mxu0 %v1647
      %1672 = vmatprep.subr.bf16.mxu0 0
      %1673 = vmatpush1.bf16.msra.mxu0 %v1649
      %1674 = vmatprep.subr.bf16.mxu0 0
      %1675 = vmatpush1.bf16.msra.mxu0 %v1651
      %1676 = vmatprep.subr.bf16.mxu0 0
      %1677 = vmatpush1.bf16.msra.mxu0 %v1653
      %1678 = vmatprep.subr.bf16.mxu0 0
      %1679 = vmatpush1.bf16.msra.mxu0 0
      %1680 = vmatprep.subr.bf16.mxu0 0
      %1681 = vmatpush1.bf16.msra.mxu0 0
      %1682 = vmatprep.subr.bf16.mxu0 0
      %1683 = vmatpush1.bf16.msra.mxu0 0
      %1684 = vmatprep.subr.bf16.mxu0 0
      %1685 = vmatpush1.bf16.msra.mxu0 0
      %1686 = vmatprep.subr.bf16.mxu0 0
      %1687 = vmatpush1.bf16.msra.mxu0 0
      %1688 = vmatprep.subr.bf16.mxu0 0
      %1689 = vmatpush1.bf16.msra.mxu0 0
      %1690 = vmatprep.subr.bf16.mxu0 0
      %1691 = vmatpush1.bf16.msra.mxu0 0
      %1692 = vmatprep.subr.bf16.mxu0 0
      %1693 = vmatpush1.bf16.msra.mxu0 0
      %1694 = vmatprep.subr.bf16.mxu0 0
      %1695 = vmatpush1.bf16.msra.mxu0 0
      %1696 = vmatprep.subr.bf16.mxu0 0
      %1697 = vmatpush1.bf16.msra.mxu0 0
      %1698 = vmatprep.subr.bf16.mxu0 0
      %1699 = vmatpush1.bf16.msra.mxu0 0
      %1700 = vmatprep.subr.bf16.mxu0 0
      %1701 = vmatpush1.bf16.msra.mxu0 0
      %1702 = vmatprep.mubr.bf16.mxu0 0
      %1703 = vmatmul.mubr.bf16.gmra.mrb[0].mxu0 %v1659
      %v1704 = vpop.f32.mrb[0].mxu0
      %v1705 = vadd.f32 0.0, %v1704
      %v1706 = vpop.f32.mrb[0].mxu0
      %v1707 = vpop.f32.mrb[0].mxu0
      %v1708 = vadd.f32 0.0, %v1707
      %v1709 = vpop.f32.mrb[0].mxu0
      %1710 = vmatprep.mubr.bf16.mxu0 0
      %1711 = vmatmul.mubr.bf16.gmra.mrb[0].mxu0 %v1662
      %v1712 = vpop.f32.mrb[0].mxu0
      %v1713 = vadd.f32 0.0, %v1712
      %v1714 = vpop.f32.mrb[0].mxu0
      %v1715 = vpop.f32.mrb[0].mxu0
      %v1716 = vadd.f32 0.0, %v1715
      %v1717 = vpop.f32.mrb[0].mxu0
      %1718 = vmatprep.mubr.bf16.mxu0 0
      %1719 = vmatmul.mubr.bf16.gmra.mrb[0].mxu0 %v1665
      %v1720 = vpop.f32.mrb[0].mxu0
      %v1721 = vadd.f32 0.0, %v1720
      %v1722 = vpop.f32.mrb[0].mxu0
      %v1723 = vpop.f32.mrb[0].mxu0
      %v1724 = vadd.f32 0.0, %v1723
      %v1725 = vpop.f32.mrb[0].mxu0
      %1726 = vmatprep.mubr.bf16.mxu0 0
      %1727 = vmatmul.mubr.bf16.gmra.mrb[0].mxu0 %v1668
      %v1728 = vpop.f32.mrb[0].mxu0
      %v1729 = vadd.f32 0.0, %v1728
      %v1730 = vpop.f32.mrb[0].mxu0
      %v1731 = vpop.f32.mrb[0].mxu0
      %v1732 = vadd.f32 0.0, %v1731
      %v1733 = vpop.f32.mrb[0].mxu0
      %1734 = vdwg.mxu0
      %1743 = vrot.lane.b32.xlu0 %v1705, 24
      %v1744 = vpop.permute.xlu0 %1743
      %1745 = vrot.lane.b32.xlu0 %v1708, 24
      %v1746 = vpop.permute.xlu0 %1745
      %1747 = vrot.lane.b32.xlu0 %v1713, 24
      %v1748 = vpop.permute.xlu0 %1747
      %1749 = vrot.lane.b32.xlu0 %v1716, 24
      %v1750 = vpop.permute.xlu0 %1749
      %1751 = vrot.lane.b32.xlu0 %v1721, 24
      %v1752 = vpop.permute.xlu0 %1751
      %1753 = vrot.lane.b32.xlu0 %v1724, 24
      %v1754 = vpop.permute.xlu0 %1753
      %1755 = vrot.lane.b32.xlu0 %v1729, 24
      %v1756 = vpop.permute.xlu0 %1755
      %1757 = vrot.lane.b32.xlu0 %v1732, 24
      %v1758 = vpop.permute.xlu0 %1757
      %vm1767 = vcmask 261312
      %1768 = vst.msk [vmem:[#allocation2] sm:$0xff] %vm1767, %v1744
      %1769 = vst.msk [vmem:[#allocation2 + $0x8] sm:$0xff] %vm1767, %v1746
      %1770 = vst.msk [vmem:[#allocation2 + $0x10] sm:$0xff] %vm1767, %v1748
      %1771 = vst.msk [vmem:[#allocation2 + $0x18] sm:$0xff] %vm1767, %v1750
      %1772 = vst.msk [vmem:[#allocation2 + $0x20] sm:$0xff] %vm1767, %v1752
      %1773 = vst.msk [vmem:[#allocation2 + $0x28] sm:$0xff] %vm1767, %v1754
      %1774 = vst.msk [vmem:[#allocation2 + $0x30] sm:$0xff] %vm1767, %v1756
      %1775 = vst.msk [vmem:[#allocation2 + $0x38] sm:$0xff] %vm1767, %v1758
      %v1776 = vld [vmem:[#allocation2] sm:$0xff]
      %v1777 = vld [vmem:[#allocation2 + $0x8] sm:$0xff]
      %v1778 = vld [vmem:[#allocation2 + $0x10] sm:$0xff]
      %v1779 = vld [vmem:[#allocation2 + $0x18] sm:$0xff]
      %v1780 = vld [vmem:[#allocation2 + $0x20] sm:$0xff]
      %v1781 = vld [vmem:[#allocation2 + $0x28] sm:$0xff]
      %v1782 = vld [vmem:[#allocation2 + $0x30] sm:$0xff]
      %v1783 = vld [vmem:[#allocation2 + $0x38] sm:$0xff]
      %v1784 = vpack.c.bf16 %v1777, %v1776
      %v1785 = vpack.c.bf16 %v1779, %v1778
      %v1786 = vpack.c.bf16 %v1781, %v1780
      %v1787 = vpack.c.bf16 %v1783, %v1782
      %v1788 = vld [vmem:[%s4] sm:$0xf]
      %v1789 = vld [vmem:[%s4 + $0x4] sm:$0xf]
      %v1790 = vld [vmem:[%s4 + $0x8] sm:$0xf]
      %v1791 = vld [vmem:[%s4 + $0xc] sm:$0xf]
      %v1796 = vunpack.c.l.b16 %v1788
      %v1797 = vunpack.c.l.b16 %v1789
      %v1798 = vunpack.c.l.b16 %v1790
      %v1799 = vunpack.c.l.b16 %v1791
      %v1800 = vpack.c.b16 %v1797, %v1796
      %v1801 = vpack.c.b16 %v1799, %v1798
      %v1805 = vsel %vm234, %v1784, 0
      %v1808 = vsel %vm234, %v1785, 0
      %v1811 = vsel %vm234, %v1786, 0
      %v1814 = vsel %vm234, %v1787, 0
      %1816 = vmatprep.subr.bf16.mxu0 0
      %1817 = vmatpush1.bf16.msra.mxu0 %v1800
      %1818 = vmatprep.subr.bf16.mxu0 0
      %1819 = vmatpush1.bf16.msra.mxu0 %v1801
      %1820 = vmatprep.subr.bf16.mxu0 0
      %1821 = vmatpush1.bf16.msra.mxu0 0
      %1822 = vmatprep.subr.bf16.mxu0 0
      %1823 = vmatpush1.bf16.msra.mxu0 0
      %1824 = vmatprep.subr.bf16.mxu0 0
      %1825 = vmatpush1.bf16.msra.mxu0 0
      %1826 = vmatprep.subr.bf16.mxu0 0
      %1827 = vmatpush1.bf16.msra.mxu0 0
      %1828 = vmatprep.subr.bf16.mxu0 0
      %1829 = vmatpush1.bf16.msra.mxu0 0
      %1830 = vmatprep.subr.bf16.mxu0 0
      %1831 = vmatpush1.bf16.msra.mxu0 0
      %1832 = vmatprep.subr.bf16.mxu0 0
      %1833 = vmatpush1.bf16.msra.mxu0 0
      %1834 = vmatprep.subr.bf16.mxu0 0
      %1835 = vmatpush1.bf16.msra.mxu0 0
      %1836 = vmatprep.subr.bf16.mxu0 0
      %1837 = vmatpush1.bf16.msra.mxu0 0
      %1838 = vmatprep.subr.bf16.mxu0 0
      %1839 = vmatpush1.bf16.msra.mxu0 0
      %1840 = vmatprep.subr.bf16.mxu0 0
      %1841 = vmatpush1.bf16.msra.mxu0 0
      %1842 = vmatprep.subr.bf16.mxu0 0
      %1843 = vmatpush1.bf16.msra.mxu0 0
      %1844 = vmatprep.subr.bf16.mxu0 0
      %1845 = vmatpush1.bf16.msra.mxu0 0
      %1846 = vmatprep.subr.bf16.mxu0 0
      %1847 = vmatpush1.bf16.msra.mxu0 0
      %1848 = vmatprep.mubr.bf16.mxu0 0
      %1849 = vmatmul.mubr.bf16.gmra.mrb[0].mxu0 %v1805
      %v1850 = vpop.f32.mrb[0].mxu0
      %v1851 = vadd.f32 0.0, %v1850
      %v1852 = vpop.f32.mrb[0].mxu0
      %v1853 = vpop.f32.mrb[0].mxu0
      %v1854 = vadd.f32 0.0, %v1853
      %v1855 = vpop.f32.mrb[0].mxu0
      %1856 = vmatprep.mubr.bf16.mxu0 0
      %1857 = vmatmul.mubr.bf16.gmra.mrb[0].mxu0 %v1808
      %v1858 = vpop.f32.mrb[0].mxu0
      %v1859 = vadd.f32 0.0, %v1858
      %v1860 = vpop.f32.mrb[0].mxu0
      %v1861 = vpop.f32.mrb[0].mxu0
      %v1862 = vadd.f32 0.0, %v1861
      %v1863 = vpop.f32.mrb[0].mxu0
      %1864 = vmatprep.mubr.bf16.mxu0 0
      %1865 = vmatmul.mubr.bf16.gmra.mrb[0].mxu0 %v1811
      %v1866 = vpop.f32.mrb[0].mxu0
      %v1867 = vadd.f32 0.0, %v1866
      %v1868 = vpop.f32.mrb[0].mxu0
      %v1869 = vpop.f32.mrb[0].mxu0
      %v1870 = vadd.f32 0.0, %v1869
      %v1871 = vpop.f32.mrb[0].mxu0
      %1872 = vmatprep.mubr.bf16.mxu0 0
      %1873 = vmatmul.mubr.bf16.gmra.mrb[0].mxu0 %v1814
      %v1874 = vpop.f32.mrb[0].mxu0
      %v1875 = vadd.f32 0.0, %v1874
      %v1876 = vpop.f32.mrb[0].mxu0
      %v1877 = vpop.f32.mrb[0].mxu0
      %v1878 = vadd.f32 0.0, %v1877
      %v1879 = vpop.f32.mrb[0].mxu0
      %1880 = vdwg.mxu0
      %v1881 = vadd.f32 %v226, %v1851
      %v1882 = vadd.f32 %v227, %v1854
      %v1883 = vadd.f32 %v228, %v1859
      %v1884 = vadd.f32 %v229, %v1862
      %v1885 = vadd.f32 %v230, %v1867
      %v1886 = vadd.f32 %v231, %v1870
      %v1887 = vadd.f32 %v232, %v1875
      %v1888 = vadd.f32 %v233, %v1878
      %1889 = vst.msk [vmem:[%s224] sm:$0xff] %vm234, %v1881
      %1890 = vst.msk [vmem:[%s224 + $0x8] sm:$0xff] %vm234, %v1882
      %1891 = vst.msk [vmem:[%s224 + $0x10] sm:$0xff] %vm234, %v1883
      %1892 = vst.msk [vmem:[%s224 + $0x18] sm:$0xff] %vm234, %v1884
      %1893 = vst.msk [vmem:[%s224 + $0x20] sm:$0xff] %vm234, %v1885
      %1894 = vst.msk [vmem:[%s224 + $0x28] sm:$0xff] %vm234, %v1886
      %1895 = vst.msk [vmem:[%s224 + $0x30] sm:$0xff] %vm234, %v1887
      %1896 = vst.msk [vmem:[%s224 + $0x38] sm:$0xff] %vm234, %v1888
      %p1897 = scmp.lt.s32.totalorder %s16, 1
      %s1898 = scalar_select %p1897, %s16, 1
      %s1899 = smul.addr %s1898, 8
      %s1900 = smul.addr %s1899, 8
      %s1901 = scalar_lea.vmem %s5, %s1900
      // Predicated region
      $region41: #{pvam_forward.5} parent=39 // pred_check
        %p1902 = pneg %p144
      $region42: #{pvam_forward.5} parent=39 // pred_check_branch
        %1904 = sbr.rel (%p1902) target = $region44
      $region43: #{pvam_forward.5} parent=39 // pred_region
        _
      $region44: #{pvam_forward.5} parent=39 // pred_fallthru
        _
    $region40: #{pvam_forward.5} parent=5 // pred_fallthru
      _
    %p1905 = scmp.le.s32.totalorder 2, %s11
    // Predicated region
    $region45: #{pvam_forward.5} parent=5 // pred_check
      %p1906 = pneg %p1905
    $region46: #{pvam_forward.5} parent=5 // pred_check_branch
      %1908 = sbr.rel (%p1906) target = $region48
    $region47: #{pvam_forward.5} parent=5 // pred_region
      %s1909 = ssub.s32 %s11, 2
      // Predicated region
      $region49: #{pvam_forward.5} parent=47 // pred_check
        %p1910 = pneg %p150
      $region50: #{pvam_forward.5} parent=47 // pred_check_branch
        %1912 = sbr.rel (%p1910) target = $region52
      $region51: #{pvam_forward.5} parent=47 // pred_region
        %p1913 = scmp.lt.s32.totalorder %s17, 1
        %s1914 = scalar_select %p1913, %s17, 1
        %s1915 = smul.addr %s1914, 8
        %s1916 = smul.addr %s1915, 8
        %s1917 = scalar_lea.vmem %s5, %s1916
      $region52: #{pvam_forward.5} parent=47 // pred_fallthru
        _
    $region48: #{pvam_forward.5} parent=5 // pred_fallthru
      _
  $region6: #{pvam_forward.5} parent=0 // loop_footer
    %s15 = sadd.s32 1, %s11
  $region7: #{pvam_forward.5} parent=0 // loop_footer_branch
    %10 = sbr.rel target = $region3
  $region8: #{pvam_forward.5} parent=0 // loop_exit
    _

// kernel: pvam_forward.9
$region0: #{pvam_forward.9}
  #allocation0 [shape = 'u32[]', space=smem, size = 0x4, offset = 0x4, fixed_abs, tag = 'smem constant byte address 0x4 - core index']
  #allocation1 [shape = 'u32[144,128]{1,0:T(1,128)}', space=vmem, size = 0x12000, scoped, tag = 'internal scratch']
  #allocation2 [shape = 'f32[8,1]{1,0:T(8,128)}', space=vmem, size = 0x1000, scoped, tag = 'scratch operand']
  #allocation3 [shape = 'f32[8,1]{1,0:T(8,128)}', space=vmem, size = 0x1000, scoped, tag = 'scratch operand']
  #allocation4 [shape = 'f32[8,32]{1,0:T(8,128)}', space=vmem, size = 0x1000, scoped, tag = 'scratch operand']
  #allocation5 [shape = 'f32[8,32]{1,0:T(8,128)}', space=vmem, size = 0x1000, scoped, tag = 'scratch operand']
  %s0 = inlined_call_operand.vmem [shape: f32[2,64,32], index: 0, kind: input, shape index: {}]
  %s1 = inlined_call_operand.vmem [shape: f32[1,32], index: 1, kind: input, shape index: {}]
  %s2 = inlined_call_operand.vmem [shape: f32[1,32], index: 2, kind: input, shape index: {}]
  %s3 = inlined_call_operand.vmem [shape: bf16[32,32], index: 3, kind: input, shape index: {}]
  %s4 = inlined_call_operand.vmem [shape: f32[1,32], index: 4, kind: input, shape index: {}]
  %s5 = inlined_call_operand.vmem [shape: f32[2,8,32], index: 5, kind: input, shape index: {}]
  %s6 = inlined_call_operand.vmem [shape: f32[1,32], index: 6, kind: input, shape index: {}]
  %s7 = inlined_call_operand.hbm [shape: f32[2,8,32], index: 7, kind: output, shape index: {}]
  %s8 = sld [smem:[#allocation0]]
  $region69: #{pvam_forward.9} parent=0
    _
  %s10 = ssub.s32 1, %s8
  %s11 = scalar_select 0, %s10, %s8
  $region1: #{pvam_forward.9} parent=0
    #allocation6 [shape = 'u8[8192]{0}', space=vmem, size = 0x2000, scoped, tag = 'output window, operand 0']
    #allocation7 [shape = 's32[2]{0}', space=sflag, size = 0x8, scoped, tag = 'scoped memory for pvam_forward.9']
    %12 = vsyncpa [#allocation7], 0
    %s13 = scalar_lea.sflag [#allocation7], 1
    %14 = vsyncpa %s13, 0
    loop: start=0, step=1, limit=6
    $region2: #{pvam_forward.9} parent=1 // loop_pre_header
      _
    $region3: #{pvam_forward.9} parent=1 // loop_header
      %s16 = sphi 0, %s20
      %p17 = scmp.ge.s32.totalorder %s16, 6
      %s23 = sphi 0, %s35
      %s24 = sphi 0, %s31
      %s25 = sphi 0, %s23
      %s26 = sphi 0, %s24
      %s27 = sphi 0, %s25
      %s28 = sphi 0, %s26
      %s40 = sphi 0, %s42
      %s43 = sphi 0, %s40
      %s44 = sphi 0, %s43
      %s60 = sphi 0, %s44
      %s64 = sphi 0, %s64
      %s66 = sphi 0, %s64
      %s67 = sphi 0, %s66
      %s81 = sphi 0, %s67
      %s85 = sphi 0, %s85
      %s87 = sphi 0, %s85
      %s88 = sphi 0, %s87
      %s102 = sphi 0, %s88
      %s106 = sphi 0, %s106
      %s108 = sphi 0, %s106
      %s109 = sphi 0, %s108
      %s123 = sphi 0, %s109
      %s127 = sphi 0, %s127
      %s129 = sphi 0, %s127
      %s130 = sphi 0, %s129
      %s144 = sphi 0, %s130
      %s150 = sphi 0, %s152
      %s153 = sphi 0, %s150
      %s154 = sphi 0, %s153
      %s170 = sphi 0, %s154
      %s174 = sphi 0, %s174
      %s176 = sphi 0, %s174
      %s177 = sphi 0, %s176
      %s191 = sphi 0, %s177
      %s197 = sphi 0, %s199
      %s200 = sphi 0, %s197
      %s201 = sphi 0, %s200
      %s217 = sphi 0, %s201
    $region4: #{pvam_forward.9} parent=1 // loop_header_branch
      %19 = sbr.rel (%p17) target = $region8
    $region5: #{pvam_forward.9} parent=1 // loop_body
      %s21 = ssub.s32 %s16, 1
      %s22 = ssub.s32 %s16, 2
      %s29 = sadd.s32 1, %s24
      %p30 = scmp.ge.s32.totalorder %s29, 2
      %s31 = scalar_select %p30, 0, %s29
      %s32 = sadd.s32 1, %s23
      %s33 = scalar_select %p30, %s32, %s23
      %p34 = scmp.ge.s32.totalorder %s33, 2
      %s35 = scalar_select %p34, 0, %s33
      %s36 = ssub.s32 %s23, %s35
      %s37 = ssub.s32 %s24, %s31
      %s38 = sor.u32 %s36, %s37
      %p39 = scmp.eq.s32.totalorder %s38, 0
      %s41 = sadd.s32 %s40, 1
      %s42 = scalar_select %p39, %s40, %s41
      %p45 = pneg %p39
      %p46 = scmp.eq.s32.totalorder %s16, 3
      %p47 = por %p45, %p46
      %p48 = scmp.ne.s32.totalorder %s40, %s43
      %p49 = scmp.eq.s32.totalorder %s16, 0
      %p50 = por %p48, %p49
      %p51 = scmp.ne.s32.totalorder %s40, %s43
      %p52 = scmp.eq.s32.totalorder %s21, 3
      %p53 = por %p51, %p52
      %p54 = scmp.ne.s32.totalorder %s43, %s44
      %p55 = scmp.eq.s32.totalorder %s21, 0
      %p56 = por %p54, %p55
      %p57 = scmp.ne.s32.totalorder %s43, %s44
      %p58 = scmp.eq.s32.totalorder %s22, 3
      %p59 = por %p57, %p58
      %p61 = scmp.ne.s32.totalorder %s44, %s60
      %p62 = scmp.eq.s32.totalorder %s22, 0
      %p63 = por %p61, %p62
      %s65 = sadd.s32 %s64, 1
      %p68 = scmp.eq.s32.totalorder %s16, 3
      %p69 = scmp.ne.s32.totalorder %s64, %s66
      %p70 = scmp.eq.s32.totalorder %s16, 0
      %p71 = por %p69, %p70
      %p72 = scmp.ne.s32.totalorder %s64, %s66
      %p73 = scmp.eq.s32.totalorder %s21, 3
      %p74 = por %p72, %p73
      %p75 = scmp.ne.s32.totalorder %s66, %s67
      %p76 = scmp.eq.s32.totalorder %s21, 0
      %p77 = por %p75, %p76
      %p78 = scmp.ne.s32.totalorder %s66, %s67
      %p79 = scmp.eq.s32.totalorder %s22, 3
      %p80 = por %p78, %p79
      %p82 = scmp.ne.s32.totalorder %s67, %s81
      %p83 = scmp.eq.s32.totalorder %s22, 0
      %p84 = por %p82, %p83
      %s86 = sadd.s32 %s85, 1
      %p89 = scmp.eq.s32.totalorder %s16, 3
      %p90 = scmp.ne.s32.totalorder %s85, %s87
      %p91 = scmp.eq.s32.totalorder %s16, 0
      %p92 = por %p90, %p91
      %p93 = scmp.ne.s32.totalorder %s85, %s87
      %p94 = scmp.eq.s32.totalorder %s21, 3
      %p95 = por %p93, %p94
      %p96 = scmp.ne.s32.totalorder %s87, %s88
      %p97 = scmp.eq.s32.totalorder %s21, 0
      %p98 = por %p96, %p97
      %p99 = scmp.ne.s32.totalorder %s87, %s88
      %p100 = scmp.eq.s32.totalorder %s22, 3
      %p101 = por %p99, %p100
      %p103 = scmp.ne.s32.totalorder %s88, %s102
      %p104 = scmp.eq.s32.totalorder %s22, 0
      %p105 = por %p103, %p104
      %s107 = sadd.s32 %s106, 1
      %p110 = scmp.eq.s32.totalorder %s16, 3
      %p111 = scmp.ne.s32.totalorder %s106, %s108
      %p112 = scmp.eq.s32.totalorder %s16, 0
      %p113 = por %p111, %p112
      %p114 = scmp.ne.s32.totalorder %s106, %s108
      %p115 = scmp.eq.s32.totalorder %s21, 3
      %p116 = por %p114, %p115
      %p117 = scmp.ne.s32.totalorder %s108, %s109
      %p118 = scmp.eq.s32.totalorder %s21, 0
      %p119 = por %p117, %p118
      %p120 = scmp.ne.s32.totalorder %s108, %s109
      %p121 = scmp.eq.s32.totalorder %s22, 3
      %p122 = por %p120, %p121
      %p124 = scmp.ne.s32.totalorder %s109, %s123
      %p125 = scmp.eq.s32.totalorder %s22, 0
      %p126 = por %p124, %p125
      %s128 = sadd.s32 %s127, 1
      %p131 = scmp.eq.s32.totalorder %s16, 3
      %p132 = scmp.ne.s32.totalorder %s127, %s129
      %p133 = scmp.eq.s32.totalorder %s16, 0
      %p134 = por %p132, %p133
      %p135 = scmp.ne.s32.totalorder %s127, %s129
      %p136 = scmp.eq.s32.totalorder %s21, 3
      %p137 = por %p135, %p136
      %p138 = scmp.ne.s32.totalorder %s129, %s130
      %p139 = scmp.eq.s32.totalorder %s21, 0
      %p140 = por %p138, %p139
      %p141 = scmp.ne.s32.totalorder %s129, %s130
      %p142 = scmp.eq.s32.totalorder %s22, 3
      %p143 = por %p141, %p142
      %p145 = scmp.ne.s32.totalorder %s130, %s144
      %p146 = scmp.eq.s32.totalorder %s22, 0
      %p147 = por %p145, %p146
      %s148 = ssub.s32 %s23, %s35
      %p149 = scmp.eq.s32.totalorder %s148, 0
      %s151 = sadd.s32 %s150, 1
      %s152 = scalar_select %p149, %s150, %s151
      %p155 = pneg %p149
      %p156 = scmp.eq.s32.totalorder %s16, 3
      %p157 = por %p155, %p156
      %p158 = scmp.ne.s32.totalorder %s150, %s153
      %p159 = scmp.eq.s32.totalorder %s16, 0
      %p160 = por %p158, %p159
      %p161 = scmp.ne.s32.totalorder %s150, %s153
      %p162 = scmp.eq.s32.totalorder %s21, 3
      %p163 = por %p161, %p162
      %p164 = scmp.ne.s32.totalorder %s153, %s154
      %p165 = scmp.eq.s32.totalorder %s21, 0
      %p166 = por %p164, %p165
      %p167 = scmp.ne.s32.totalorder %s153, %s154
      %p168 = scmp.eq.s32.totalorder %s22, 3
      %p169 = por %p167, %p168
      %p171 = scmp.ne.s32.totalorder %s154, %s170
      %p172 = scmp.eq.s32.totalorder %s22, 0
      %p173 = por %p171, %p172
      %s175 = sadd.s32 %s174, 1
      %p178 = scmp.eq.s32.totalorder %s16, 3
      %p179 = scmp.ne.s32.totalorder %s174, %s176
      %p180 = scmp.eq.s32.totalorder %s16, 0
      %p181 = por %p179, %p180
      %p182 = scmp.ne.s32.totalorder %s174, %s176
      %p183 = scmp.eq.s32.totalorder %s21, 3
      %p184 = por %p182, %p183
      %p185 = scmp.ne.s32.totalorder %s176, %s177
      %p186 = scmp.eq.s32.totalorder %s21, 0
      %p187 = por %p185, %p186
      %p188 = scmp.ne.s32.totalorder %s176, %s177
      %p189 = scmp.eq.s32.totalorder %s22, 3
      %p190 = por %p188, %p189
      %p192 = scmp.ne.s32.totalorder %s177, %s191
      %p193 = scmp.eq.s32.totalorder %s22, 0
      %p194 = por %p192, %p193
      %s195 = ssub.s32 %s23, %s35
      %p196 = scmp.eq.s32.totalorder %s195, 0
      %s198 = sadd.s32 %s197, 1
      %s199 = scalar_select %p196, %s197, %s198
      %p202 = pneg %p196
      %p203 = scmp.eq.s32.totalorder %s16, 3
      %p204 = por %p202, %p203
      %p205 = scmp.ne.s32.totalorder %s197, %s200
      %p206 = scmp.eq.s32.totalorder %s16, 0
      %p207 = por %p205, %p206
      %p208 = scmp.ne.s32.totalorder %s197, %s200
      %p209 = scmp.eq.s32.totalorder %s21, 3
      %p210 = por %p208, %p209
      %p211 = scmp.ne.s32.totalorder %s200, %s201
      %p212 = scmp.eq.s32.totalorder %s21, 0
      %p213 = por %p211, %p212
      %p214 = scmp.ne.s32.totalorder %s200, %s201
      %p215 = scmp.eq.s32.totalorder %s22, 3
      %p216 = por %p214, %p215
      %p218 = scmp.ne.s32.totalorder %s201, %s217
      %p219 = scmp.eq.s32.totalorder %s22, 0
      %p220 = por %p218, %p219
      %p221 = scmp.le.s32.totalorder 1, %s16
      %p222 = scmp.lt.s32.totalorder %s16, 5
      %p223 = pnand %p221, %p222
      %p224 = pneg %p223
      // Predicated region
      $region9: #{pvam_forward.9} parent=5 // pred_check
        _
      $region10: #{pvam_forward.9} parent=5 // pred_check_branch
        %226 = sbr.rel (%p223) target = $region12
      $region11: #{pvam_forward.9} parent=5 // pred_region
        %s227 = ssub.s32 %s16, 1
        // Predicated region
        $region13: #{pvam_forward.9} parent=11 // pred_check
          %p228 = pneg %p77
        $region14: #{pvam_forward.9} parent=11 // pred_check_branch
          %230 = sbr.rel (%p228) target = $region16
        $region15: #{pvam_forward.9} parent=11 // pred_region
          _
        $region16: #{pvam_forward.9} parent=11 // pred_fallthru
          _
        // Predicated region
        $region17: #{pvam_forward.9} parent=11 // pred_check
          %p231 = pneg %p98
        $region18: #{pvam_forward.9} parent=11 // pred_check_branch
          %233 = sbr.rel (%p231) target = $region20
        $region19: #{pvam_forward.9} parent=11 // pred_region
          _
        $region20: #{pvam_forward.9} parent=11 // pred_fallthru
          _
        // Predicated region
        $region21: #{pvam_forward.9} parent=11 // pred_check
          %p234 = pneg %p119
        $region22: #{pvam_forward.9} parent=11 // pred_check_branch
          %236 = sbr.rel (%p234) target = $region24
        $region23: #{pvam_forward.9} parent=11 // pred_region
          _
        $region24: #{pvam_forward.9} parent=11 // pred_fallthru
          _
        // Predicated region
        $region25: #{pvam_forward.9} parent=11 // pred_check
          %p237 = pneg %p140
        $region26: #{pvam_forward.9} parent=11 // pred_check_branch
          %239 = sbr.rel (%p237) target = $region28
        $region27: #{pvam_forward.9} parent=11 // pred_region
          _
        $region28: #{pvam_forward.9} parent=11 // pred_fallthru
          _
        // Predicated region
        $region29: #{pvam_forward.9} parent=11 // pred_check
          %p240 = pneg %p187
        $region30: #{pvam_forward.9} parent=11 // pred_check_branch
          %242 = sbr.rel (%p240) target = $region32
        $region31: #{pvam_forward.9} parent=11 // pred_region
          _
        $region32: #{pvam_forward.9} parent=11 // pred_fallthru
          _
      $region12: #{pvam_forward.9} parent=5 // pred_fallthru
        _
      %p243 = scmp.lt.s32.totalorder %s16, 4
      // Predicated region
      $region33: #{pvam_forward.9} parent=5 // pred_check
        %p244 = pneg %p243
      $region34: #{pvam_forward.9} parent=5 // pred_check_branch
        %246 = sbr.rel (%p244) target = $region36
      $region35: #{pvam_forward.9} parent=5 // pred_region
        // Predicated region
        $region37: #{pvam_forward.9} parent=35 // pred_check
          %p247 = pneg %p50
        $region38: #{pvam_forward.9} parent=35 // pred_check_branch
          %249 = sbr.rel (%p247) target = $region40
        $region39: #{pvam_forward.9} parent=35 // pred_region
          %s250 = smul.u32 4, %s24
          %p251 = scmp.lt.s32.totalorder %s23, 1
          %s252 = scalar_select %p251, %s23, 1
          %p253 = scmp.lt.s32.totalorder %s250, 7
          %s254 = scalar_select %p253, %s250, 7
          %s255 = smul.addr %s252, 8
          %s256 = sadd.s32 %s254, %s255
          %s257 = smul.addr %s256, 8
          %s258 = scalar_lea.vmem %s0, %s257
          %s259 = smul.u32 4, %s24
        $region40: #{pvam_forward.9} parent=35 // pred_fallthru
          _
        // Predicated region
        $region41: #{pvam_forward.9} parent=35 // pred_check
          %p260 = pneg %p160
        $region42: #{pvam_forward.9} parent=35 // pred_check_branch
          %262 = sbr.rel (%p260) target = $region44
        $region43: #{pvam_forward.9} parent=35 // pred_region
          %p263 = scmp.lt.s32.totalorder %s23, 1
          %s264 = scalar_select %p263, %s23, 1
          %s265 = smul.addr %s264, 8
          %s266 = scalar_lea.vmem %s5, %s265
        $region44: #{pvam_forward.9} parent=35 // pred_fallthru
          _
      $region36: #{pvam_forward.9} parent=5 // pred_fallthru
        _
      %p267 = scmp.le.s32.totalorder 1, %s16
      %p268 = scmp.lt.s32.totalorder %s16, 5
      %p269 = pnand %p267, %p268
      %p270 = pneg %p269
      // Predicated region
      $region45: #{pvam_forward.9} parent=5 // pred_check
        _
      $region46: #{pvam_forward.9} parent=5 // pred_check_branch
        %272 = sbr.rel (%p269) target = $region48
      $region47: #{pvam_forward.9} parent=5 // pred_region
        %s273 = ssub.s32 %s16, 1
        %s274 = smul.u32 4, %s26
        %p275 = scmp.lt.s32.totalorder %s25, 1
        %s276 = scalar_select %p275, %s25, 1
        %p277 = scmp.lt.s32.totalorder %s274, 7
        %s278 = scalar_select %p277, %s274, 7
        %s279 = smul.addr %s276, 8
        %s280 = sadd.s32 %s278, %s279
        %s281 = smul.addr %s280, 8
        %s282 = scalar_lea.vmem %s0, %s281
        %p283 = pneg %p56
        %p284 = pneg %p53
        %p285 = pneg %p77
        %p286 = pneg %p74
        %p287 = pneg %p98
        %p288 = pneg %p95
        %p289 = pneg %p119
        %p290 = pneg %p116
        %p291 = pneg %p140
        %p292 = pneg %p137
        %p293 = scmp.lt.s32.totalorder %s25, 1
        %s294 = scalar_select %p293, %s25, 1
        %s295 = smul.addr %s294, 8
        %s296 = scalar_lea.vmem %s5, %s295
        %p297 = pneg %p166
        %p298 = pneg %p163
        %p299 = pneg %p187
        %p300 = pneg %p184
        %p301 = pneg %p213
        %p302 = pneg %p210
        %s303 = sand.u32 %s200, 1
        %s304 = scalar_lea.sflag [#allocation7], %s303
        %s305 = sand.u32 %s200, 1
        %s306 = smul.addr %s305, 8
        %s307 = scalar_lea.vmem [#allocation6], %s306
        %s308 = smul.u32 4, %s26
        %p309 = scmp.lt.s32.totalorder %s25, 1
        %s310 = scalar_select %p309, %s25, 1
        %p311 = scmp.lt.s32.totalorder %s308, 7
        %s312 = scalar_select %p311, %s308, 7
        %s313 = smul.addr %s310, 8
        %s314 = sadd.s32 %s312, %s313
        %s315 = smul.addr %s314, 8
        %s316 = scalar_lea.vmem %s0, %s315
        %s317 = smul.u32 4, %s26
        %p318 = scmp.lt.s32.totalorder %s25, 1
        %s319 = scalar_select %p318, %s25, 1
        %s320 = smul.addr %s319, 8
        %s321 = scalar_lea.vmem %s5, %s320
        %p323 = scmp.eq.s32.totalorder %s26, 0
        // Predicated region
        $region49: #{pvam_forward.9} parent=47 // pred_check
          %p324 = pneg %p323
        $region50: #{pvam_forward.9} parent=47 // pred_check_branch
          %326 = sbr.rel (%p324) target = $region52
        $region51: #{pvam_forward.9} parent=47 // pred_region
          %vm327 = vcmask 7168
          %328 = vst.msk [vmem:[#allocation2] sm:$0xff] %vm327, -inf
          %329 = vst.msk [vmem:[#allocation3] sm:$0xff] %vm327, 0.0
          %vm330 = vcmask 261120
          %331 = vst.msk [vmem:[#allocation4] sm:$0xff] %vm330, 0.0
        $region52: #{pvam_forward.9} parent=47 // pred_fallthru
          _
        %v332 = vld [vmem:[%s316] sm:$0xff]
        %v333 = vld [vmem:[%s316 + $0x8] sm:$0xff]
        %v334 = vld [vmem:[%s316 + $0x10] sm:$0xff]
        %v335 = vld [vmem:[%s316 + $0x18] sm:$0xff]
        %vm336 = vcmask 261120
        %v337 = vsel %vm336, %v332, 0.0
        %338 = vadd.xlane.f32.xlu0 %v337
        %v339 = vpop.xlane.xlu0 %338
        %v340 = vsel %vm336, %v333, 0.0
        %341 = vadd.xlane.f32.xlu0 %v340
        %v342 = vpop.xlane.xlu0 %341
        %v343 = vsel %vm336, %v334, 0.0
        %344 = vadd.xlane.f32.xlu0 %v343
        %v345 = vpop.xlane.xlu0 %344
        %v346 = vsel %vm336, %v335, 0.0
        %347 = vadd.xlane.f32.xlu0 %v346
        %v348 = vpop.xlane.xlu0 %347
        %v349 = vrcp.pop 32.0
        %v350 = vmul.f32 %v339, %v349
        %v351 = vmul.f32 %v342, %v349
        %v352 = vmul.f32 %v345, %v349
        %v353 = vmul.f32 %v348, %v349
        %v354 = vsub.f32 %v332, %v350
        %v355 = vsub.f32 %v333, %v351
        %v356 = vsub.f32 %v334, %v352
        %v357 = vsub.f32 %v335, %v353
        %v358 = vmul.f32 %v354, %v354
        %v359 = vmul.f32 %v355, %v355
        %v360 = vmul.f32 %v356, %v356
        %v361 = vmul.f32 %v357, %v357
        %v362 = vsel %vm336, %v358, 0.0
        %363 = vadd.xlane.f32.xlu0 %v362
        %v364 = vpop.xlane.xlu0 %363
        %v365 = vsel %vm336, %v359, 0.0
        %366 = vadd.xlane.f32.xlu0 %v365
        %v367 = vpop.xlane.xlu0 %366
        %v368 = vsel %vm336, %v360, 0.0
        %369 = vadd.xlane.f32.xlu0 %v368
        %v370 = vpop.xlane.xlu0 %369
        %v371 = vsel %vm336, %v361, 0.0
        %372 = vadd.xlane.f32.xlu0 %v371
        %v373 = vpop.xlane.xlu0 %372
        %v374 = vmul.f32 %v364, %v349
        %v375 = vmul.f32 %v367, %v349
        %v376 = vmul.f32 %v370, %v349
        %v377 = vmul.f32 %v373, %v349
        %v378 = vadd.f32 %v374, 1e-05
        %v379 = vadd.f32 %v375, 1e-05
        %v380 = vadd.f32 %v376, 1e-05
        %v381 = vadd.f32 %v377, 1e-05
        %v382 = vrsqrt.pop %v378
        %v383 = vrsqrt.pop %v379
        %v384 = vrsqrt.pop %v380
        %v385 = vrsqrt.pop %v381
        %v386 = vmul.f32 %v354, %v382
        %v387 = vmul.f32 %v355, %v383
        %v388 = vmul.f32 %v356, %v384
        %v389 = vmul.f32 %v357, %v385
        %v390 = vld [vmem:[%s1] sm:$0x1]
        %v392 = vlaneseq
        %v393 = vshrl.u32 %v392, 7
        %v394 = vsub.s32 0, %v393
        %v395 = vrot.slane %v390, %v394
        %v397 = vmul.f32 %v386, %v395
        %v398 = vmul.f32 %v387, %v395
        %v399 = vmul.f32 %v388, %v395
        %v400 = vmul.f32 %v389, %v395
        %v401 = vld [vmem:[%s2] sm:$0x1]
        %v403 = vlaneseq
        %v404 = vshrl.u32 %v403, 7
        %v405 = vsub.s32 0, %v404
        %v406 = vrot.slane %v401, %v405
        %v408 = vadd.f32 %v397, %v406
        %v409 = vadd.f32 %v398, %v406
        %v410 = vadd.f32 %v399, %v406
        %v411 = vadd.f32 %v400, %v406
        %v412 = vpack.c.bf16 %v409, %v408
        %v413 = vpack.c.bf16 %v411, %v410
        %v414 = vld [vmem:[%s3] sm:$0xf]
        %v415 = vld [vmem:[%s3 + $0x4] sm:$0xf]
        %v416 = vld [vmem:[%s3 + $0x8] sm:$0xf]
        %v417 = vld [vmem:[%s3 + $0xc] sm:$0xf]
        %v418 = vld [vmem:[%s4] sm:$0x1]
        %v420 = vlaneseq
        %v421 = vshrl.u32 %v420, 7
        %v422 = vsub.s32 0, %v421
        %v423 = vrot.slane %v418, %v422
        %v429 = vunpack.c.l.b16 %v414
        %v430 = vunpack.c.l.b16 %v415
        %v431 = vunpack.c.l.b16 %v416
        %v432 = vunpack.c.l.b16 %v417
        %v433 = vpack.c.b16 %v430, %v429
        %v434 = vpack.c.b16 %v432, %v431
        %v438 = vsel %vm336, %v412, 0
        %v441 = vsel %vm336, %v413, 0
        %443 = vmatprep.subr.bf16.mxu0 0
        %444 = vmatpush1.bf16.msra.mxu0 %v433
        %445 = vmatprep.subr.bf16.mxu0 0
        %446 = vmatpush1.bf16.msra.mxu0 %v434
        %447 = vmatprep.subr.bf16.mxu0 0
        %448 = vmatpush1.bf16.msra.mxu0 0
        %449 = vmatprep.subr.bf16.mxu0 0
        %450 = vmatpush1.bf16.msra.mxu0 0
        %451 = vmatprep.subr.bf16.mxu0 0
        %452 = vmatpush1.bf16.msra.mxu0 0
        %453 = vmatprep.subr.bf16.mxu0 0
        %454 = vmatpush1.bf16.msra.mxu0 0
        %455 = vmatprep.subr.bf16.mxu0 0
        %456 = vmatpush1.bf16.msra.mxu0 0
        %457 = vmatprep.subr.bf16.mxu0 0
        %458 = vmatpush1.bf16.msra.mxu0 0
        %459 = vmatprep.subr.bf16.mxu0 0
        %460 = vmatpush1.bf16.msra.mxu0 0
        %461 = vmatprep.subr.bf16.mxu0 0
        %462 = vmatpush1.bf16.msra.mxu0 0
        %463 = vmatprep.subr.bf16.mxu0 0
        %464 = vmatpush1.bf16.msra.mxu0 0
        %465 = vmatprep.subr.bf16.mxu0 0
        %466 = vmatpush1.bf16.msra.mxu0 0
        %467 = vmatprep.subr.bf16.mxu0 0
        %468 = vmatpush1.bf16.msra.mxu0 0
        %469 = vmatprep.subr.bf16.mxu0 0
        %470 = vmatpush1.bf16.msra.mxu0 0
        %471 = vmatprep.subr.bf16.mxu0 0
        %472 = vmatpush1.bf16.msra.mxu0 0
        %473 = vmatprep.subr.bf16.mxu0 0
        %474 = vmatpush1.bf16.msra.mxu0 0
        %475 = vmatprep.mubr.bf16.mxu0 0
        %476 = vmatmul.mubr.bf16.gmra.mrb[0].mxu0 %v438
        %v477 = vpop.f32.mrb[0].mxu0
        %v478 = vadd.f32 %v423, %v477
        %v479 = vpop.f32.mrb[0].mxu0
        %v480 = vpop.f32.mrb[0].mxu0
        %v481 = vadd.f32 %v423, %v480
        %v482 = vpop.f32.mrb[0].mxu0
        %483 = vmatprep.mubr.bf16.mxu0 0
        %484 = vmatmul.mubr.bf16.gmra.mrb[0].mxu0 %v441
        %v485 = vpop.f32.mrb[0].mxu0
        %v486 = vadd.f32 %v423, %v485
        %v487 = vpop.f32.mrb[0].mxu0
        %v488 = vpop.f32.mrb[0].mxu0
        %v489 = vadd.f32 %v423, %v488
        %v490 = vpop.f32.mrb[0].mxu0
        %491 = vdwg.mxu0
        %v492 = vld [vmem:[%s321] sm:$0xff]
        %v493 = vld [vmem:[%s6] sm:$0x1]
        %v494 = vpack.c.bf16 %v493, %v493
        %v495 = vlaneseq
        %v496 = vshrl.u32 %v495, 7
        %v497 = vsub.s32 0, %v496
        %v498 = vrot.slane %v492, %v497
        %v499 = vadd.f32 %v478, %v498
        %v500 = vadd.f32 %v481, %v498
        %v501 = vadd.f32 %v486, %v498
        %v502 = vadd.f32 %v489, %v498
        %v503 = vtanh.pop %v499
        %v504 = vtanh.pop %v500
        %v505 = vtanh.pop %v501
        %v506 = vtanh.pop %v502
        %v507 = vpack.c.bf16 %v504, %v503
        %v508 = vpack.c.bf16 %v506, %v505
        %v510 = vsel %vm336, %v494, 0
        %v513 = vsel %vm336, %v507, 0
        %v516 = vsel %vm336, %v508, 0
        %518 = vmatprep.subr.bf16.mxu0 0
        %519 = vmatpush1.bf16.xpose.msra.mxu0 %v513
        %520 = vmatprep.subr.bf16.mxu0 0
        %521 = vmatpush1.bf16.xpose.msra.mxu0 %v516
        %522 = vmatprep.subr.bf16.mxu0 0
        %523 = vmatpush1.bf16.xpose.msra.mxu0 0
        %524 = vmatprep.subr.bf16.mxu0 0
        %525 = vmatpush1.bf16.xpose.msra.mxu0 0
        %526 = vmatprep.subr.bf16.mxu0 0
        %527 = vmatpush1.bf16.xpose.msra.mxu0 0
        %528 = vmatprep.subr.bf16.mxu0 0
        %529 = vmatpush1.bf16.xpose.msra.mxu0 0
        %530 = vmatprep.subr.bf16.mxu0 0
        %531 = vmatpush1.bf16.xpose.msra.mxu0 0
        %532 = vmatprep.subr.bf16.mxu0 0
        %533 = vmatpush1.bf16.xpose.msra.mxu0 0
        %534 = vmatprep.subr.bf16.mxu0 0
        %535 = vmatpush1.bf16.xpose.msra.mxu0 0
        %536 = vmatprep.subr.bf16.mxu0 0
        %537 = vmatpush1.bf16.xpose.msra.mxu0 0
        %538 = vmatprep.subr.bf16.mxu0 0
        %539 = vmatpush1.bf16.xpose.msra.mxu0 0
        %540 = vmatprep.subr.bf16.mxu0 0
        %541 = vmatpush1.bf16.xpose.msra.mxu0 0
        %542 = vmatprep.subr.bf16.mxu0 0
        %543 = vmatpush1.bf16.xpose.msra.mxu0 0
        %544 = vmatprep.subr.bf16.mxu0 0
        %545 = vmatpush1.bf16.xpose.msra.mxu0 0
        %546 = vmatprep.subr.bf16.mxu0 0
        %547 = vmatpush1.bf16.xpose.msra.mxu0 0
        %548 = vmatprep.subr.bf16.mxu0 0
        %549 = vmatpush1.bf16.xpose.msra.mxu0 0
        %550 = vmatprep.mubr.bf16.mxu0 0
        %551 = vmatmul.mubr.bf16.gmra.mrb[0].mxu0 %v510
        %v552 = vpop.f32.mrb[0].mxu0
        %v553 = vadd.f32 0.0, %v552
        %v554 = vpop.f32.mrb[0].mxu0
        %v555 = vpop.f32.mrb[0].mxu0
        %v556 = vpop.f32.mrb[0].mxu0
        %557 = vdwg.mxu0
        %vm558 = vcmask 253952
        %559 = vst.msk [vmem:[#allocation5] sm:$0x1] %vm558, %v553
        %v560 = vlaneseq
        %v561 = vshrl.u32 %v560, 7
        %v562 = vsub.s32 1, %v561
        %v563 = vrot.slane %v492, %v562
        %v564 = vadd.f32 %v478, %v563
        %v565 = vadd.f32 %v481, %v563
        %v566 = vadd.f32 %v486, %v563
        %v567 = vadd.f32 %v489, %v563
        %v568 = vtanh.pop %v564
        %v569 = vtanh.pop %v565
        %v570 = vtanh.pop %v566
        %v571 = vtanh.pop %v567
        %v572 = vpack.c.bf16 %v569, %v568
        %v573 = vpack.c.bf16 %v571, %v570
        %v575 = vsel %vm336, %v572, 0
        %v578 = vsel %vm336, %v573, 0
        %580 = vmatprep.subr.bf16.mxu0 0
        %581 = vmatpush1.bf16.xpose.msra.mxu0 %v575
        %582 = vmatprep.subr.bf16.mxu0 0
        %583 = vmatpush1.bf16.xpose.msra.mxu0 %v578
        %584 = vmatprep.subr.bf16.mxu0 0
        %585 = vmatpush1.bf16.xpose.msra.mxu0 0
        %586 = vmatprep.subr.bf16.mxu0 0
        %587 = vmatpush1.bf16.xpose.msra.mxu0 0
        %588 = vmatprep.subr.bf16.mxu0 0
        %589 = vmatpush1.bf16.xpose.msra.mxu0 0
        %590 = vmatprep.subr.bf16.mxu0 0
        %591 = vmatpush1.bf16.xpose.msra.mxu0 0
        %592 = vmatprep.subr.bf16.mxu0 0
        %593 = vmatpush1.bf16.xpose.msra.mxu0 0
        %594 = vmatprep.subr.bf16.mxu0 0
        %595 = vmatpush1.bf16.xpose.msra.mxu0 0
        %596 = vmatprep.subr.bf16.mxu0 0
        %597 = vmatpush1.bf16.xpose.msra.mxu0 0
        %598 = vmatprep.subr.bf16.mxu0 0
        %599 = vmatpush1.bf16.xpose.msra.mxu0 0
        %600 = vmatprep.subr.bf16.mxu0 0
        %601 = vmatpush1.bf16.xpose.msra.mxu0 0
        %602 = vmatprep.subr.bf16.mxu0 0
        %603 = vmatpush1.bf16.xpose.msra.mxu0 0
        %604 = vmatprep.subr.bf16.mxu0 0
        %605 = vmatpush1.bf16.xpose.msra.mxu0 0
        %606 = vmatprep.subr.bf16.mxu0 0
        %607 = vmatpush1.bf16.xpose.msra.mxu0 0
        %608 = vmatprep.subr.bf16.mxu0 0
        %609 = vmatpush1.bf16.xpose.msra.mxu0 0
        %610 = vmatprep.subr.bf16.mxu0 0
        %611 = vmatpush1.bf16.xpose.msra.mxu0 0
        %612 = vmatprep.mubr.bf16.mxu0 0
        %613 = vmatmul.mubr.bf16.gmra.mrb[0].mxu0 %v510
        %v614 = vpop.f32.mrb[0].mxu0
        %v615 = vadd.f32 0.0, %v614
        %v616 = vpop.f32.mrb[0].mxu0
        %v617 = vpop.f32.mrb[0].mxu0
        %v618 = vpop.f32.mrb[0].mxu0
        %619 = vdwg.mxu0
        %620 = vst.msk [vmem:[#allocation5 + $0x1] sm:$0x1] %vm558, %v615
        %v621 = vlaneseq
        %v622 = vshrl.u32 %v621, 7
        %v623 = vsub.s32 2, %v622
        %v624 = vrot.slane %v492, %v623
        %v625 = vadd.f32 %v478, %v624
        %v626 = vadd.f32 %v481, %v624
        %v627 = vadd.f32 %v486, %v624
        %v628 = vadd.f32 %v489, %v624
        %v629 = vtanh.pop %v625
        %v630 = vtanh.pop %v626
        %v631 = vtanh.pop %v627
        %v632 = vtanh.pop %v628
        %v633 = vpack.c.bf16 %v630, %v629
        %v634 = vpack.c.bf16 %v632, %v631
        %v636 = vsel %vm336, %v633, 0
        %v639 = vsel %vm336, %v634, 0
        %641 = vmatprep.subr.bf16.mxu0 0
        %642 = vmatpush1.bf16.xpose.msra.mxu0 %v636
        %643 = vmatprep.subr.bf16.mxu0 0
        %644 = vmatpush1.bf16.xpose.msra.mxu0 %v639
        %645 = vmatprep.subr.bf16.mxu0 0
        %646 = vmatpush1.bf16.xpose.msra.mxu0 0
        %647 = vmatprep.subr.bf16.mxu0 0
        %648 = vmatpush1.bf16.xpose.msra.mxu0 0
        %649 = vmatprep.subr.bf16.mxu0 0
        %650 = vmatpush1.bf16.xpose.msra.mxu0 0
        %651 = vmatprep.subr.bf16.mxu0 0
        %652 = vmatpush1.bf16.xpose.msra.mxu0 0
        %653 = vmatprep.subr.bf16.mxu0 0
        %654 = vmatpush1.bf16.xpose.msra.mxu0 0
        %655 = vmatprep.subr.bf16.mxu0 0
        %656 = vmatpush1.bf16.xpose.msra.mxu0 0
        %657 = vmatprep.subr.bf16.mxu0 0
        %658 = vmatpush1.bf16.xpose.msra.mxu0 0
        %659 = vmatprep.subr.bf16.mxu0 0
        %660 = vmatpush1.bf16.xpose.msra.mxu0 0
        %661 = vmatprep.subr.bf16.mxu0 0
        %662 = vmatpush1.bf16.xpose.msra.mxu0 0
        %663 = vmatprep.subr.bf16.mxu0 0
        %664 = vmatpush1.bf16.xpose.msra.mxu0 0
        %665 = vmatprep.subr.bf16.mxu0 0
        %666 = vmatpush1.bf16.xpose.msra.mxu0 0
        %667 = vmatprep.subr.bf16.mxu0 0
        %668 = vmatpush1.bf16.xpose.msra.mxu0 0
        %669 = vmatprep.subr.bf16.mxu0 0
        %670 = vmatpush1.bf16.xpose.msra.mxu0 0
        %671 = vmatprep.subr.bf16.mxu0 0
        %672 = vmatpush1.bf16.xpose.msra.mxu0 0
        %673 = vmatprep.mubr.bf16.mxu0 0
        %674 = vmatmul.mubr.bf16.gmra.mrb[0].mxu0 %v510
        %v675 = vpop.f32.mrb[0].mxu0
        %v676 = vadd.f32 0.0, %v675
        %v677 = vpop.f32.mrb[0].mxu0
        %v678 = vpop.f32.mrb[0].mxu0
        %v679 = vpop.f32.mrb[0].mxu0
        %680 = vdwg.mxu0
        %681 = vst.msk [vmem:[#allocation5 + $0x2] sm:$0x1] %vm558, %v676
        %v682 = vlaneseq
        %v683 = vshrl.u32 %v682, 7
        %v684 = vsub.s32 3, %v683
        %v685 = vrot.slane %v492, %v684
        %v686 = vadd.f32 %v478, %v685
        %v687 = vadd.f32 %v481, %v685
        %v688 = vadd.f32 %v486, %v685
        %v689 = vadd.f32 %v489, %v685
        %v690 = vtanh.pop %v686
        %v691 = vtanh.pop %v687
        %v692 = vtanh.pop %v688
        %v693 = vtanh.pop %v689
        %v694 = vpack.c.bf16 %v691, %v690
        %v695 = vpack.c.bf16 %v693, %v692
        %v697 = vsel %vm336, %v694, 0
        %v700 = vsel %vm336, %v695, 0
        %702 = vmatprep.subr.bf16.mxu0 0
        %703 = vmatpush1.bf16.xpose.msra.mxu0 %v697
        %704 = vmatprep.subr.bf16.mxu0 0
        %705 = vmatpush1.bf16.xpose.msra.mxu0 %v700
        %706 = vmatprep.subr.bf16.mxu0 0
        %707 = vmatpush1.bf16.xpose.msra.mxu0 0
        %708 = vmatprep.subr.bf16.mxu0 0
        %709 = vmatpush1.bf16.xpose.msra.mxu0 0
        %710 = vmatprep.subr.bf16.mxu0 0
        %711 = vmatpush1.bf16.xpose.msra.mxu0 0
        %712 = vmatprep.subr.bf16.mxu0 0
        %713 = vmatpush1.bf16.xpose.msra.mxu0 0
        %714 = vmatprep.subr.bf16.mxu0 0
        %715 = vmatpush1.bf16.xpose.msra.mxu0 0
        %716 = vmatprep.subr.bf16.mxu0 0
        %717 = vmatpush1.bf16.xpose.msra.mxu0 0
        %718 = vmatprep.subr.bf16.mxu0 0
        %719 = vmatpush1.bf16.xpose.msra.mxu0 0
        %720 = vmatprep.subr.bf16.mxu0 0
        %721 = vmatpush1.bf16.xpose.msra.mxu0 0
        %722 = vmatprep.subr.bf16.mxu0 0
        %723 = vmatpush1.bf16.xpose.msra.mxu0 0
        %724 = vmatprep.subr.bf16.mxu0 0
        %725 = vmatpush1.bf16.xpose.msra.mxu0 0
        %726 = vmatprep.subr.bf16.mxu0 0
        %727 = vmatpush1.bf16.xpose.msra.mxu0 0
        %728 = vmatprep.subr.bf16.mxu0 0
        %729 = vmatpush1.bf16.xpose.msra.mxu0 0
        %730 = vmatprep.subr.bf16.mxu0 0
        %731 = vmatpush1.bf16.xpose.msra.mxu0 0
        %732 = vmatprep.subr.bf16.mxu0 0
        %733 = vmatpush1.bf16.xpose.msra.mxu0 0
        %734 = vmatprep.mubr.bf16.mxu0 0
        %735 = vmatmul.mubr.bf16.gmra.mrb[0].mxu0 %v510
        %v736 = vpop.f32.mrb[0].mxu0
        %v737 = vadd.f32 0.0, %v736
        %v738 = vpop.f32.mrb[0].mxu0
        %v739 = vpop.f32.mrb[0].mxu0
        %v740 = vpop.f32.mrb[0].mxu0
        %741 = vdwg.mxu0
        %742 = vst.msk [vmem:[#allocation5 + $0x3] sm:$0x1] %vm558, %v737
        %v743 = vlaneseq
        %v744 = vshrl.u32 %v743, 7
        %v745 = vsub.s32 4, %v744
        %v746 = vrot.slane %v492, %v745
        %v747 = vadd.f32 %v478, %v746
        %v748 = vadd.f32 %v481, %v746
        %v749 = vadd.f32 %v486, %v746
        %v750 = vadd.f32 %v489, %v746
        %v751 = vtanh.pop %v747
        %v752 = vtanh.pop %v748
        %v753 = vtanh.pop %v749
        %v754 = vtanh.pop %v750
        %v755 = vpack.c.bf16 %v752, %v751
        %v756 = vpack.c.bf16 %v754, %v753
        %v758 = vsel %vm336, %v755, 0
        %v761 = vsel %vm336, %v756, 0
        %763 = vmatprep.subr.bf16.mxu0 0
        %764 = vmatpush1.bf16.xpose.msra.mxu0 %v758
        %765 = vmatprep.subr.bf16.mxu0 0
        %766 = vmatpush1.bf16.xpose.msra.mxu0 %v761
        %767 = vmatprep.subr.bf16.mxu0 0
        %768 = vmatpush1.bf16.xpose.msra.mxu0 0
        %769 = vmatprep.subr.bf16.mxu0 0
        %770 = vmatpush1.bf16.xpose.msra.mxu0 0
        %771 = vmatprep.subr.bf16.mxu0 0
        %772 = vmatpush1.bf16.xpose.msra.mxu0 0
        %773 = vmatprep.subr.bf16.mxu0 0
        %774 = vmatpush1.bf16.xpose.msra.mxu0 0
        %775 = vmatprep.subr.bf16.mxu0 0
        %776 = vmatpush1.bf16.xpose.msra.mxu0 0
        %777 = vmatprep.subr.bf16.mxu0 0
        %778 = vmatpush1.bf16.xpose.msra.mxu0 0
        %779 = vmatprep.subr.bf16.mxu0 0
        %780 = vmatpush1.bf16.xpose.msra.mxu0 0
        %781 = vmatprep.subr.bf16.mxu0 0
        %782 = vmatpush1.bf16.xpose.msra.mxu0 0
        %783 = vmatprep.subr.bf16.mxu0 0
        %784 = vmatpush1.bf16.xpose.msra.mxu0 0
        %785 = vmatprep.subr.bf16.mxu0 0
        %786 = vmatpush1.bf16.xpose.msra.mxu0 0
        %787 = vmatprep.subr.bf16.mxu0 0
        %788 = vmatpush1.bf16.xpose.msra.mxu0 0
        %789 = vmatprep.subr.bf16.mxu0 0
        %790 = vmatpush1.bf16.xpose.msra.mxu0 0
        %791 = vmatprep.subr.bf16.mxu0 0
        %792 = vmatpush1.bf16.xpose.msra.mxu0 0
        %793 = vmatprep.subr.bf16.mxu0 0
        %794 = vmatpush1.bf16.xpose.msra.mxu0 0
        %795 = vmatprep.mubr.bf16.mxu0 0
        %796 = vmatmul.mubr.bf16.gmra.mrb[0].mxu0 %v510
        %v797 = vpop.f32.mrb[0].mxu0
        %v798 = vadd.f32 0.0, %v797
        %v799 = vpop.f32.mrb[0].mxu0
        %v800 = vpop.f32.mrb[0].mxu0
        %v801 = vpop.f32.mrb[0].mxu0
        %802 = vdwg.mxu0
        %803 = vst.msk [vmem:[#allocation5 + $0x4] sm:$0x1] %vm558, %v798
        %v804 = vlaneseq
        %v805 = vshrl.u32 %v804, 7
        %v806 = vsub.s32 5, %v805
        %v807 = vrot.slane %v492, %v806
        %v808 = vadd.f32 %v478, %v807
        %v809 = vadd.f32 %v481, %v807
        %v810 = vadd.f32 %v486, %v807
        %v811 = vadd.f32 %v489, %v807
        %v812 = vtanh.pop %v808
        %v813 = vtanh.pop %v809
        %v814 = vtanh.pop %v810
        %v815 = vtanh.pop %v811
        %v816 = vpack.c.bf16 %v813, %v812
        %v817 = vpack.c.bf16 %v815, %v814
        %v819 = vsel %vm336, %v816, 0
        %v822 = vsel %vm336, %v817, 0
        %824 = vmatprep.subr.bf16.mxu0 0
        %825 = vmatpush1.bf16.xpose.msra.mxu0 %v819
        %826 = vmatprep.subr.bf16.mxu0 0
        %827 = vmatpush1.bf16.xpose.msra.mxu0 %v822
        %828 = vmatprep.subr.bf16.mxu0 0
        %829 = vmatpush1.bf16.xpose.msra.mxu0 0
        %830 = vmatprep.subr.bf16.mxu0 0
        %831 = vmatpush1.bf16.xpose.msra.mxu0 0
        %832 = vmatprep.subr.bf16.mxu0 0
        %833 = vmatpush1.bf16.xpose.msra.mxu0 0
        %834 = vmatprep.subr.bf16.mxu0 0
        %835 = vmatpush1.bf16.xpose.msra.mxu0 0
        %836 = vmatprep.subr.bf16.mxu0 0
        %837 = vmatpush1.bf16.xpose.msra.mxu0 0
        %838 = vmatprep.subr.bf16.mxu0 0
        %839 = vmatpush1.bf16.xpose.msra.mxu0 0
        %840 = vmatprep.subr.bf16.mxu0 0
        %841 = vmatpush1.bf16.xpose.msra.mxu0 0
        %842 = vmatprep.subr.bf16.mxu0 0
        %843 = vmatpush1.bf16.xpose.msra.mxu0 0
        %844 = vmatprep.subr.bf16.mxu0 0
        %845 = vmatpush1.bf16.xpose.msra.mxu0 0
        %846 = vmatprep.subr.bf16.mxu0 0
        %847 = vmatpush1.bf16.xpose.msra.mxu0 0
        %848 = vmatprep.subr.bf16.mxu0 0
        %849 = vmatpush1.bf16.xpose.msra.mxu0 0
        %850 = vmatprep.subr.bf16.mxu0 0
        %851 = vmatpush1.bf16.xpose.msra.mxu0 0
        %852 = vmatprep.subr.bf16.mxu0 0
        %853 = vmatpush1.bf16.xpose.msra.mxu0 0
        %854 = vmatprep.subr.bf16.mxu0 0
        %855 = vmatpush1.bf16.xpose.msra.mxu0 0
        %856 = vmatprep.mubr.bf16.mxu0 0
        %857 = vmatmul.mubr.bf16.gmra.mrb[0].mxu0 %v510
        %v858 = vpop.f32.mrb[0].mxu0
        %v859 = vadd.f32 0.0, %v858
        %v860 = vpop.f32.mrb[0].mxu0
        %v861 = vpop.f32.mrb[0].mxu0
        %v862 = vpop.f32.mrb[0].mxu0
        %863 = vdwg.mxu0
        %864 = vst.msk [vmem:[#allocation5 + $0x5] sm:$0x1] %vm558, %v859
        %v865 = vlaneseq
        %v866 = vshrl.u32 %v865, 7
        %v867 = vsub.s32 6, %v866
        %v868 = vrot.slane %v492, %v867
        %v869 = vadd.f32 %v478, %v868
        %v870 = vadd.f32 %v481, %v868
        %v871 = vadd.f32 %v486, %v868
        %v872 = vadd.f32 %v489, %v868
        %v873 = vtanh.pop %v869
        %v874 = vtanh.pop %v870
        %v875 = vtanh.pop %v871
        %v876 = vtanh.pop %v872
        %v877 = vpack.c.bf16 %v874, %v873
        %v878 = vpack.c.bf16 %v876, %v875
        %v880 = vsel %vm336, %v877, 0
        %v883 = vsel %vm336, %v878, 0
        %885 = vmatprep.subr.bf16.mxu0 0
        %886 = vmatpush1.bf16.xpose.msra.mxu0 %v880
        %887 = vmatprep.subr.bf16.mxu0 0
        %888 = vmatpush1.bf16.xpose.msra.mxu0 %v883
        %889 = vmatprep.subr.bf16.mxu0 0
        %890 = vmatpush1.bf16.xpose.msra.mxu0 0
        %891 = vmatprep.subr.bf16.mxu0 0
        %892 = vmatpush1.bf16.xpose.msra.mxu0 0
        %893 = vmatprep.subr.bf16.mxu0 0
        %894 = vmatpush1.bf16.xpose.msra.mxu0 0
        %895 = vmatprep.subr.bf16.mxu0 0
        %896 = vmatpush1.bf16.xpose.msra.mxu0 0
        %897 = vmatprep.subr.bf16.mxu0 0
        %898 = vmatpush1.bf16.xpose.msra.mxu0 0
        %899 = vmatprep.subr.bf16.mxu0 0
        %900 = vmatpush1.bf16.xpose.msra.mxu0 0
        %901 = vmatprep.subr.bf16.mxu0 0
        %902 = vmatpush1.bf16.xpose.msra.mxu0 0
        %903 = vmatprep.subr.bf16.mxu0 0
        %904 = vmatpush1.bf16.xpose.msra.mxu0 0
        %905 = vmatprep.subr.bf16.mxu0 0
        %906 = vmatpush1.bf16.xpose.msra.mxu0 0
        %907 = vmatprep.subr.bf16.mxu0 0
        %908 = vmatpush1.bf16.xpose.msra.mxu0 0
        %909 = vmatprep.subr.bf16.mxu0 0
        %910 = vmatpush1.bf16.xpose.msra.mxu0 0
        %911 = vmatprep.subr.bf16.mxu0 0
        %912 = vmatpush1.bf16.xpose.msra.mxu0 0
        %913 = vmatprep.subr.bf16.mxu0 0
        %914 = vmatpush1.bf16.xpose.msra.mxu0 0
        %915 = vmatprep.subr.bf16.mxu0 0
        %916 = vmatpush1.bf16.xpose.msra.mxu0 0
        %917 = vmatprep.mubr.bf16.mxu0 0
        %918 = vmatmul.mubr.bf16.gmra.mrb[0].mxu0 %v510
        %v919 = vpop.f32.mrb[0].mxu0
        %v920 = vadd.f32 0.0, %v919
        %v921 = vpop.f32.mrb[0].mxu0
        %v922 = vpop.f32.mrb[0].mxu0
        %v923 = vpop.f32.mrb[0].mxu0
        %924 = vdwg.mxu0
        %925 = vst.msk [vmem:[#allocation5 + $0x6] sm:$0x1] %vm558, %v920
        %v926 = vlaneseq
        %v927 = vshrl.u32 %v926, 7
        %v928 = vsub.s32 7, %v927
        %v929 = vrot.slane %v492, %v928
        %v930 = vadd.f32 %v478, %v929
        %v931 = vadd.f32 %v481, %v929
        %v932 = vadd.f32 %v486, %v929
        %v933 = vadd.f32 %v489, %v929
        %v934 = vtanh.pop %v930
        %v935 = vtanh.pop %v931
        %v936 = vtanh.pop %v932
        %v937 = vtanh.pop %v933
        %v938 = vpack.c.bf16 %v935, %v934
        %v939 = vpack.c.bf16 %v937, %v936
        %v941 = vsel %vm336, %v938, 0
        %v944 = vsel %vm336, %v939, 0
        %946 = vmatprep.subr.bf16.mxu0 0
        %947 = vmatpush1.bf16.xpose.msra.mxu0 %v941
        %948 = vmatprep.subr.bf16.mxu0 0
        %949 = vmatpush1.bf16.xpose.msra.mxu0 %v944
        %950 = vmatprep.subr.bf16.mxu0 0
        %951 = vmatpush1.bf16.xpose.msra.mxu0 0
        %952 = vmatprep.subr.bf16.mxu0 0
        %953 = vmatpush1.bf16.xpose.msra.mxu0 0
        %954 = vmatprep.subr.bf16.mxu0 0
        %955 = vmatpush1.bf16.xpose.msra.mxu0 0
        %956 = vmatprep.subr.bf16.mxu0 0
        %957 = vmatpush1.bf16.xpose.msra.mxu0 0
        %958 = vmatprep.subr.bf16.mxu0 0
        %959 = vmatpush1.bf16.xpose.msra.mxu0 0
        %960 = vmatprep.subr.bf16.mxu0 0
        %961 = vmatpush1.bf16.xpose.msra.mxu0 0
        %962 = vmatprep.subr.bf16.mxu0 0
        %963 = vmatpush1.bf16.xpose.msra.mxu0 0
        %964 = vmatprep.subr.bf16.mxu0 0
        %965 = vmatpush1.bf16.xpose.msra.mxu0 0
        %966 = vmatprep.subr.bf16.mxu0 0
        %967 = vmatpush1.bf16.xpose.msra.mxu0 0
        %968 = vmatprep.subr.bf16.mxu0 0
        %969 = vmatpush1.bf16.xpose.msra.mxu0 0
        %970 = vmatprep.subr.bf16.mxu0 0
        %971 = vmatpush1.bf16.xpose.msra.mxu0 0
        %972 = vmatprep.subr.bf16.mxu0 0
        %973 = vmatpush1.bf16.xpose.msra.mxu0 0
        %974 = vmatprep.subr.bf16.mxu0 0
        %975 = vmatpush1.bf16.xpose.msra.mxu0 0
        %976 = vmatprep.subr.bf16.mxu0 0
        %977 = vmatpush1.bf16.xpose.msra.mxu0 0
        %978 = vmatprep.mubr.bf16.mxu0 0
        %979 = vmatmul.mubr.bf16.gmra.mrb[0].mxu0 %v510
        %v980 = vpop.f32.mrb[0].mxu0
        %v981 = vadd.f32 0.0, %v980
        %v982 = vpop.f32.mrb[0].mxu0
        %v983 = vpop.f32.mrb[0].mxu0
        %v984 = vpop.f32.mrb[0].mxu0
        %985 = vdwg.mxu0
        %986 = vst.msk [vmem:[#allocation5 + $0x7] sm:$0x1] %vm558, %v981
        %v987 = vld [vmem:[#allocation5] sm:$0xff]
        %v988 = vld [vmem:[#allocation2] sm:$0xff]
        %v989 = vsel %vm336, %v987, -inf
        %990 = vmax.xlane.f32.xlu0 %v989
        %v991 = vpop.xlane.xlu0 %990
        %v992 = vmax.f32 %v988, %v991
        %v993 = vsub.f32 %v988, %v992
        %v994 = vmul.f32 %v993, 1.442695
        %v995 = vpow.pop %v994
        %997 = vset.pattern.permute.xlu0 0
        %998 = vperm.xlu0 %997, %v992
        %v999 = vpop.permute.xlu0 %998
        %v1001 = vsub.f32 %v987, %v999
        %v1002 = vmul.f32 %v1001, 1.442695
        %v1003 = vpow.pop %v1002
        %v1004 = vld [vmem:[#allocation3] sm:$0xff]
        %v1005 = vmul.f32 %v995, %v1004
        %v1006 = vsel %vm336, %v1003, 0.0
        %1007 = vadd.xlane.f32.xlu0 %v1006
        %v1008 = vpop.xlane.xlu0 %1007
        %v1009 = vadd.f32 %v1005, %v1008
        %vm1010 = vcmask 7168
        %1011 = vst.msk [vmem:[#allocation3] sm:$0xff] %vm1010, %v1009
        %v1012 = vld [vmem:[#allocation4] sm:$0xff]
        %1014 = vset.pattern.permute.xlu0 0
        %1015 = vperm.xlu0 %1014, %v995
        %v1016 = vpop.permute.xlu0 %1015
        %v1018 = vmul.f32 %v1016, %v1012
        %v1019 = vpack.c.bf16 %v1003, %v1003
        %v1020 = vpack.c.bf16 %v481, %v478
        %v1021 = vpack.c.bf16 %v489, %v486
        %v1023 = vsel %vm336, %v1019, 0
        %1025 = vmatprep.subr.bf16.mxu0 0
        %1026 = vmatpush1.bf16.msra.mxu0 %v1020
        %1027 = vmatprep.subr.bf16.mxu0 0
        %1028 = vmatpush1.bf16.msra.mxu0 %v1021
        %1029 = vmatprep.subr.bf16.mxu0 0
        %1030 = vmatpush1.bf16.msra.mxu0 0
        %1031 = vmatprep.subr.bf16.mxu0 0
        %1032 = vmatpush1.bf16.msra.mxu0 0
        %1033 = vmatprep.subr.bf16.mxu0 0
        %1034 = vmatpush1.bf16.msra.mxu0 0
        %1035 = vmatprep.subr.bf16.mxu0 0
        %1036 = vmatpush1.bf16.msra.mxu0 0
        %1037 = vmatprep.subr.bf16.mxu0 0
        %1038 = vmatpush1.bf16.msra.mxu0 0
        %1039 = vmatprep.subr.bf16.mxu0 0
        %1040 = vmatpush1.bf16.msra.mxu0 0
        %1041 = vmatprep.subr.bf16.mxu0 0
        %1042 = vmatpush1.bf16.msra.mxu0 0
        %1043 = vmatprep.subr.bf16.mxu0 0
        %1044 = vmatpush1.bf16.msra.mxu0 0
        %1045 = vmatprep.subr.bf16.mxu0 0
        %1046 = vmatpush1.bf16.msra.mxu0 0
        %1047 = vmatprep.subr.bf16.mxu0 0
        %1048 = vmatpush1.bf16.msra.mxu0 0
        %1049 = vmatprep.subr.bf16.mxu0 0
        %1050 = vmatpush1.bf16.msra.mxu0 0
        %1051 = vmatprep.subr.bf16.mxu0 0
        %1052 = vmatpush1.bf16.msra.mxu0 0
        %1053 = vmatprep.subr.bf16.mxu0 0
        %1054 = vmatpush1.bf16.msra.mxu0 0
        %1055 = vmatprep.subr.bf16.mxu0 0
        %1056 = vmatpush1.bf16.msra.mxu0 0
        %1057 = vmatprep.mubr.bf16.mxu0 0
        %1058 = vmatmul.mubr.bf16.gmra.mrb[0].mxu0 %v1023
        %v1059 = vpop.f32.mrb[0].mxu0
        %v1060 = vadd.f32 0.0, %v1059
        %v1061 = vpop.f32.mrb[0].mxu0
        %v1062 = vpop.f32.mrb[0].mxu0
        %v1063 = vpop.f32.mrb[0].mxu0
        %1064 = vdwg.mxu0
        %v1065 = vadd.f32 %v1018, %v1060
        %1066 = vst.msk [vmem:[#allocation4] sm:$0xff] %vm336, %v1065
        %1067 = vst.msk [vmem:[#allocation2] sm:$0xff] %vm1010, %v992
        %p1068 = scmp.eq.s32.totalorder %s26, 1
        // Predicated region
        $region53: #{pvam_forward.9} parent=47 // pred_check
          %p1069 = pneg %p1068
        $region54: #{pvam_forward.9} parent=47 // pred_check_branch
          %1071 = sbr.rel (%p1069) target = $region56
        $region55: #{pvam_forward.9} parent=47 // pred_region
          %v1072 = vld [vmem:[#allocation4] sm:$0xff]
          %v1073 = vld [vmem:[#allocation3] sm:$0xff]
          %1075 = vset.pattern.permute.xlu0 0
          %1076 = vperm.xlu0 %1075, %v1073
          %v1077 = vpop.permute.xlu0 %1076
          %v1079 = vrcp.pop %v1077
          %v1080 = vmul.f32 %v1072, %v1079
          %1081 = vst.msk [vmem:[%s307] sm:$0xff] %vm336, %v1080
        $region56: #{pvam_forward.9} parent=47 // pred_fallthru
          _
        %s1082 = sand.u32 %s200, 1
        %s1083 = scalar_lea.sflag [#allocation7], %s1082
        %s1084 = sand.u32 %s200, 1
        %s1085 = smul.addr %s1084, 8
        %s1086 = scalar_lea.vmem [#allocation6], %s1085
        // Predicated region
        $region57: #{pvam_forward.9} parent=47 // pred_check
          %p1087 = pneg %p210
        $region58: #{pvam_forward.9} parent=47 // pred_check_branch
          %1089 = sbr.rel (%p1087) target = $region60
        $region59: #{pvam_forward.9} parent=47 // pred_region
          %s1091 = ssub.s32 128, 128
          %1092 = vsyncadd %s1083, %s1091
          %s1093 = smul.addr %s25, 128
          %s1094 = scalar_lea.hbm %s7, %s1093
          %s1096 = sshll.u32 %s1086, 4
          %s1097 = int_to_ptr.vmem [resolvable:$true] %s1096
          %1099 = dma.vmem_to_hbm [thread:$0]  %s1097, 128, %s1094, %s1083
        $region60: #{pvam_forward.9} parent=47 // pred_fallthru
          _
      $region48: #{pvam_forward.9} parent=5 // pred_fallthru
        _
      %p1100 = scmp.le.s32.totalorder 2, %s16
      // Predicated region
      $region61: #{pvam_forward.9} parent=5 // pred_check
        %p1101 = pneg %p1100
      $region62: #{pvam_forward.9} parent=5 // pred_check_branch
        %1103 = sbr.rel (%p1101) target = $region64
      $region63: #{pvam_forward.9} parent=5 // pred_region
        %s1104 = ssub.s32 %s16, 2
        // Predicated region
        $region65: #{pvam_forward.9} parent=63 // pred_check
          %p1105 = pneg %p216
        $region66: #{pvam_forward.9} parent=63 // pred_check_branch
          %1107 = sbr.rel (%p1105) target = $region68
        $region67: #{pvam_forward.9} parent=63 // pred_region
          %s1108 = sand.u32 %s201, 1
          %s1109 = scalar_lea.sflag [#allocation7], %s1108
          %s1110 = sand.u32 %s201, 1
          %s1111 = smul.addr %s1110, 8
          %s1112 = scalar_lea.vmem [#allocation6], %s1111
          %1113 = dma.done %s1109, 128
        $region68: #{pvam_forward.9} parent=63 // pred_fallthru
          _
      $region64: #{pvam_forward.9} parent=5 // pred_fallthru
        _
    $region6: #{pvam_forward.9} parent=1 // loop_footer
      %s20 = sadd.s32 1, %s16
    $region7: #{pvam_forward.9} parent=1 // loop_footer_branch
      %15 = sbr.rel target = $region3
    $region8: #{pvam_forward.9} parent=1 // loop_exit
      _
    %1114 = vsyncpa [#allocation7], 1
    %s1115 = scalar_lea.sflag [#allocation7], 1
    %1116 = vsyncpa %s1115, 1

</llo_original>
